<compile_context>
chip_gen: v7x
topology: tpu7x:2x2x1
jax: 0.10.0
libtpu: 0.0.40
codegen_flags: <defaults>
</compile_context>

<pallas_src>
import jax
import jax.numpy as jnp
import numpy as np
from jax import lax
from jax.experimental import pallas as pl
from jax.experimental.pallas import tpu as pltpu


_NEG_BIG = -1.0e30   # finite "-inf" for the running max (avoids inf arithmetic in exp)
_TINY = 1.0e-30      # denominator guard for fully-underflowed rows / columns


def _bca_kernel(heads, dim_head):
    """Returns the kernel body for grid (batch, i_tile)."""

    def kernel(x_ref, ctx_ref,
               wqk_ref, wv_ref, wcqk_ref, wcv_ref,
               wout_ref, bout_ref, wcout_ref, bcout_ref,
               out_ref, ctx_out_ref,
               cqk_s, cv_s, oacc, cacc, csum, cmax):
        it = pl.program_id(1)
        last = pl.num_programs(1) - 1

        # Per-batch init (first i-tile of every batch element): project the tile-invariant
        # context once and cache it, zero the cross-tile column-softmax accumulators.
        @pl.when(it == 0)
        def _init():
            c = ctx_ref[0]                                          # (J, CTX_DIM) bf16
            cqk_s[...] = jnp.dot(c, wcqk_ref[...],
                                 preferred_element_type=jnp.float32).astype(jnp.bfloat16)
            cv_s[...] = jnp.dot(c, wcv_ref[...],
                                preferred_element_type=jnp.float32).astype(jnp.bfloat16)
            cacc[...] = jnp.zeros_like(cacc)
            csum[...] = jnp.zeros_like(csum)
            cmax[...] = jnp.full_like(cmax, _NEG_BIG)

        # Per-tile query-side projections: bf16 operands, f32 MXU accumulation.
        x = x_ref[0]                                                # (TI, DIM) bf16
        qk = jnp.dot(x, wqk_ref[...], preferred_element_type=jnp.float32).astype(jnp.bfloat16)
        v = jnp.dot(x, wv_ref[...], preferred_element_type=jnp.float32).astype(jnp.bfloat16)

        ti = x.shape[0]
        j_len = cqk_s.shape[0]
        # Hoisted ones-vectors for MXU row/column sums (no per-iteration broadcasts).
        ones_i = jnp.ones((ti, 1), jnp.bfloat16)
        ones_j = jnp.ones((j_len, 1), jnp.bfloat16)

        # Static head loop (heads <= 8).  Per-head results land in scratch refs, so the
        # large (TI, J) temporaries are consumed within each iteration.
        for h in range(heads):
            lo = h * dim_head
            hi = lo + dim_head
            qk_h, v_h = qk[:, lo:hi], v[:, lo:hi]                   # (TI, D) bf16
            cqk_h, cv_h = cqk_s[:, lo:hi], cv_s[:, lo:hi]           # (J, D)  bf16

            # sim[i, j] = <qk_i, cqk_j>; the 1/sqrt(dim_head) scale is folded into w_qk.
            sim = lax.dot_general(qk_h, cqk_h, (((1,), (1,)), ((), ())),
                                  preferred_element_type=jnp.float32)      # (TI, J) f32

            # Per-head scalar stabilizer, kept consistent across i-tiles via a running
            # max + rescale of the column accumulators (flash-style, scalar per head).
            m_tile = jnp.max(jnp.max(sim, axis=-1, keepdims=True), axis=0, keepdims=True)
            m_old = cmax[:, h:h + 1]                                        # (1, 1)
            m_new = jnp.maximum(m_old, m_tile)
            cmax[:, h:h + 1] = m_new
            alpha = jnp.exp(m_old - m_new)                                  # (1, 1)

            # One exp per head, shared by both softmax directions; bf16 for the MXU.
            # (Rows/cols whose max is >> below the running head max underflow; guarded
            #  with _TINY below so they produce 0 instead of inf/NaN.)
            e = jnp.exp(sim - m_new).astype(jnp.bfloat16)                   # (TI, J) bf16

            # Row-softmax path (complete within this i-tile): normalize AFTER the matmul.
            out_h = jnp.dot(e, cv_h, preferred_element_type=jnp.float32)    # (TI, D) f32
            rowsum = jnp.dot(e, ones_j, preferred_element_type=jnp.float32) # (TI, 1) f32
            inv_row = pl.reciprocal(jnp.maximum(rowsum, _TINY), approx=True)
            oacc[:, lo:hi] = (out_h * inv_row).astype(jnp.bfloat16)

            # Column-softmax path: accumulate un-normalized e^T @ v and column sums across
            # i-tiles (both via dot_general contracting dim 0 -> MXU, no transpose).
            cout_h = lax.dot_general(e, v_h, (((0,), (0,)), ((), ())),
                                     preferred_element_type=jnp.float32)    # (J, D) f32
            colsum = lax.dot_general(e, ones_i, (((0,), (0,)), ((), ())),
                                     preferred_element_type=jnp.float32)    # (J, 1) f32
            cacc[:, lo:hi] = cacc[:, lo:hi] * alpha + cout_h
            csum[:, lo:hi] = csum[:, lo:hi] * alpha + colsum                # (J,1)->(J,D)

        # Consolidated row-path output projection: one K=INNER matmul per tile.
        out_ref[0] = (jnp.dot(oacc[...], wout_ref[...],
                              preferred_element_type=jnp.float32)
                      + bout_ref[...]).astype(out_ref.dtype)

        # Column-path finalize: normalize and project once, on the last i-tile.
        @pl.when(it == last)
        def _finalize():
            inv_col = pl.reciprocal(jnp.maximum(csum[...], _TINY), approx=True)
            cnorm = (cacc[...] * inv_col).astype(jnp.bfloat16)              # (J, INNER)
            ctx_out_ref[0] = (jnp.dot(cnorm, wcout_ref[...],
                                      preferred_element_type=jnp.float32)
                              + bcout_ref[...]).astype(ctx_out_ref.dtype)

    return kernel


def _pick_i_tile(i):
    # Largest i-tile <= 512 that divides I (multiple of 8 sublanes); else no tiling.
    for t in (512, 256, 128, 64, 32, 16, 8):
        if i % t == 0:
            return t
    return i


def _vmem_limit_bytes():
    # Leave headroom for compiler scratch / double buffers:
    # ~48 MiB on v7x (64 MiB physical), ~100 MiB on v5e/v6e (128 MiB physical).
    try:
        cap = pltpu.get_tpu_info().vmem_capacity_bytes
    except Exception:
        cap = 64 * 1024 * 1024   # conservative fallback (safe on every chip)
    return int(min(cap - 16 * 1024 * 1024, 100 * 1024 * 1024))


def bidirectional_cross_attention(x, context, params, *, heads, dim_head, i_tile=None):
    """x: (B, I, DIM), context: (B, J, CTX_DIM)."""
    b, i, dim = x.shape
    _, j, cdim = context.shape
    inner = heads * dim_head
    scale = dim_head ** (-0.5)

    (w_qk, w_v, w_cqk, w_cv, w_out, b_out, w_cout, b_cout) = params

    ti = i_tile if i_tile is not None else _pick_i_tile(i)
    assert i % ti == 0, "i_tile must divide the query sequence length"
    n_it = i // ti

    # bf16 MXU operands everywhere (halves HBM->VMEM traffic); f32 accumulation in-kernel.
    # The attention scale is folded into w_qk.  Biases stay f32.
    x_b = x.astype(jnp.bfloat16)
    ctx_b = context.astype(jnp.bfloat16)
    w_qk_b = (w_qk * scale).astype(jnp.bfloat16)
    w_v_b = w_v.astype(jnp.bfloat16)
    w_cqk_b = w_cqk.astype(jnp.bfloat16)
    w_cv_b = w_cv.astype(jnp.bfloat16)
    w_out_b = w_out.astype(jnp.bfloat16)
    w_cout_b = w_cout.astype(jnp.bfloat16)
    b_out_f = b_out.astype(jnp.float32)
    b_cout_f = b_cout.astype(jnp.float32)

    args = (x_b, ctx_b, w_qk_b, w_v_b, w_cqk_b, w_cv_b,
            w_out_b, b_out_f, w_cout_b, b_cout_f)

    def build(single_buffer_weights):
        if single_buffer_weights:
            # Grid-invariant operands: constant block index, fetched once; single-buffered
            # so no dead second copy of the weights sits in VMEM.
            full = lambda shape: pl.BlockSpec(shape, lambda bi, it: (0,) * len(shape),
                                              pipeline_mode=pl.Buffered(1))
        else:
            full = lambda shape: pl.BlockSpec(shape, lambda bi, it: (0,) * len(shape))

        grid_spec = pltpu.PrefetchScalarGridSpec(
            num_scalar_prefetch=0,
            grid=(b, n_it),
            in_specs=[
                pl.BlockSpec((1, ti, dim), lambda bi, it: (bi, it, 0)),    # x (i-tiled)
                pl.BlockSpec((1, j, cdim), lambda bi, it: (bi, 0, 0)),     # context
                full((dim, inner)),     # w_qk (pre-scaled)
                full((dim, inner)),     # w_v
                full((cdim, inner)),    # w_cqk
                full((cdim, inner)),    # w_cv
                full((inner, dim)),     # w_out
                full((1, dim)),         # b_out
                full((inner, cdim)),    # w_cout
                full((1, cdim)),        # b_cout
            ],
            out_specs=[
                pl.BlockSpec((1, ti, dim), lambda bi, it: (bi, it, 0)),    # out
                pl.BlockSpec((1, j, cdim), lambda bi, it: (bi, 0, 0)),     # context_out (resident)
            ],
            scratch_shapes=[
                pltpu.VMEM((j, inner), jnp.bfloat16),   # cached context_qk
                pltpu.VMEM((j, inner), jnp.bfloat16),   # cached context_v
                pltpu.VMEM((ti, inner), jnp.bfloat16),  # per-tile row-path head slabs
                pltpu.VMEM((j, inner), jnp.float32),    # running un-normalized e^T @ v
                pltpu.VMEM((j, inner), jnp.float32),    # running column sums (per-head bcast)
                pltpu.VMEM((1, heads), jnp.float32),    # running per-head max stabilizer
            ],
        )
        return pl.pallas_call(
            _bca_kernel(heads, dim_head),
            out_shape=(jax.ShapeDtypeStruct((b, i, dim), x.dtype),
                       jax.ShapeDtypeStruct((b, j, cdim), context.dtype)),
            grid_spec=grid_spec,
            compiler_params=pltpu.CompilerParams(
                dimension_semantics=("parallel", "arbitrary"),
                vmem_limit_bytes=_vmem_limit_bytes()),
        )

    try:
        return build(True)(*args)
    except Exception:
        # pl.Buffered(1) single-buffered residents not accepted by this jax/libtpu build:
        # fall back to default double buffering (identical semantics, slightly more VMEM).
        return build(False)(*args)


def _reference(x, context, params, *, heads, dim_head):
    """Pure-JAX f32 reference mirroring the PyTorch forward (default config)."""
    (w_qk, w_v, w_cqk, w_cv, w_out, b_out, w_cout, b_cout) = params
    b, i, dim = x.shape
    _, j, cdim = context.shape
    scale = dim_head ** (-0.5)

    def split_heads(t):  # (b, n, h*d) -> (b, h, n, d)
        return t.reshape(b, -1, heads, dim_head).transpose(0, 2, 1, 3)

    qk = split_heads(x @ w_qk)
    v = split_heads(x @ w_v)
    cqk = split_heads(context @ w_cqk)
    cv = split_heads(context @ w_cv)

    sim = jnp.einsum('bhid,bhjd->bhij', qk, cqk) * scale
    attn = jax.nn.softmax(sim, axis=-1)
    cattn = jax.nn.softmax(sim, axis=-2)

    out = jnp.einsum('bhij,bhjd->bhid', attn, cv)
    cout = jnp.einsum('bhji,bhjd->bhid', cattn, v)

    out = out.transpose(0, 2, 1, 3).reshape(b, i, heads * dim_head)
    cout = cout.transpose(0, 2, 1, 3).reshape(b, j, heads * dim_head)

    return out @ w_out + b_out[0], cout @ w_cout + b_cout[0]


if __name__ == "__main__":
    # Small shapes consistent with the module; I=32 with i_tile=16 exercises the
    # multi-tile online column-softmax path.
    B, I, J = 2, 32, 8
    DIM, CTX_DIM = 32, 32
    HEADS, DIM_HEAD = 2, 16
    INNER = HEADS * DIM_HEAD

    key = jax.random.PRNGKey(0)
    keys = jax.random.split(key, 10)

    x = jax.random.normal(keys[0], (B, I, DIM), dtype=jnp.float32)
    context = jax.random.normal(keys[1], (B, J, CTX_DIM), dtype=jnp.float32)

    # Deterministic parameter init (Linear weights stored as (in, out)).
    params = (
        jax.random.normal(keys[2], (DIM, INNER), dtype=jnp.float32) * 0.05,      # to_qk
        jax.random.normal(keys[3], (DIM, INNER), dtype=jnp.float32) * 0.05,      # to_v
        jax.random.normal(keys[4], (CTX_DIM, INNER), dtype=jnp.float32) * 0.05,  # context_to_qk
        jax.random.normal(keys[5], (CTX_DIM, INNER), dtype=jnp.float32) * 0.05,  # context_to_v
        jax.random.normal(keys[6], (INNER, DIM), dtype=jnp.float32) * 0.05,      # to_out.weight^T
        jax.random.normal(keys[7], (1, DIM), dtype=jnp.float32) * 0.05,          # to_out.bias
        jax.random.normal(keys[8], (INNER, CTX_DIM), dtype=jnp.float32) * 0.05,  # context_to_out.weight^T
        jax.random.normal(keys[9], (1, CTX_DIM), dtype=jnp.float32) * 0.05,      # context_to_out.bias
    )

    out, ctx_out = bidirectional_cross_attention(
        x, context, params, heads=HEADS, dim_head=DIM_HEAD, i_tile=16)
    jax.block_until_ready((out, ctx_out))

    ref_out, ref_ctx_out = _reference(x, context, params, heads=HEADS, dim_head=DIM_HEAD)
    # Mixed-precision (bf16 MXU operands / bf16 e + approx reciprocal) tolerances.
    np.testing.assert_allclose(np.asarray(out), np.asarray(ref_out), rtol=2e-2, atol=2e-2)
    np.testing.assert_allclose(np.asarray(ctx_out), np.asarray(ref_ctx_out), rtol=2e-2, atol=2e-2)

    print("KERNEL_OK")
</pallas_src>

<mosaic_0001>
module attributes {stable_mosaic.version = 11 : i64} {
  func.func @kernel(%arg0: i32, %arg1: i32, %arg2: memref<1x16x32xbf16, #tpu.memory_space<vmem>>, %arg3: memref<1x8x32xbf16, #tpu.memory_space<vmem>>, %arg4: memref<32x32xbf16, #tpu.memory_space<vmem>>, %arg5: memref<32x32xbf16, #tpu.memory_space<vmem>>, %arg6: memref<32x32xbf16, #tpu.memory_space<vmem>>, %arg7: memref<32x32xbf16, #tpu.memory_space<vmem>>, %arg8: memref<32x32xbf16, #tpu.memory_space<vmem>>, %arg9: memref<1x32xf32, #tpu.memory_space<vmem>>, %arg10: memref<32x32xbf16, #tpu.memory_space<vmem>>, %arg11: memref<1x32xf32, #tpu.memory_space<vmem>>, %arg12: memref<1x16x32xf32, #tpu.memory_space<vmem>>, %arg13: memref<1x8x32xf32, #tpu.memory_space<vmem>>, %arg14: memref<8x32xbf16, #tpu.memory_space<vmem>>, %arg15: memref<8x32xbf16, #tpu.memory_space<vmem>>, %arg16: memref<16x32xbf16, #tpu.memory_space<vmem>>, %arg17: memref<8x32xf32, #tpu.memory_space<vmem>>, %arg18: memref<8x32xf32, #tpu.memory_space<vmem>>, %arg19: memref<1x2xf32, #tpu.memory_space<vmem>>) attributes {dimension_semantics = [#tpu.dimension_semantics<parallel>, #tpu.dimension_semantics<arbitrary>], iteration_bounds = array<i64: 2, 2>, scalar_prefetch = 0 : i64, scratch_operands = 6 : i64, tpu.core_type = #tpu.core_type<tc>, window_params = [{transform_indices = @transform_0, window_bounds = array<i64: 1, 16, 32>}, {transform_indices = @transform_1, window_bounds = array<i64: 1, 8, 32>}, {pipeline_mode = #tpu.pipeline_mode<synchronous>, transform_indices = @transform_2, window_bounds = array<i64: 32, 32>}, {pipeline_mode = #tpu.pipeline_mode<synchronous>, transform_indices = @transform_3, window_bounds = array<i64: 32, 32>}, {pipeline_mode = #tpu.pipeline_mode<synchronous>, transform_indices = @transform_4, window_bounds = array<i64: 32, 32>}, {pipeline_mode = #tpu.pipeline_mode<synchronous>, transform_indices = @transform_5, window_bounds = array<i64: 32, 32>}, {pipeline_mode = #tpu.pipeline_mode<synchronous>, transform_indices = @transform_6, window_bounds = array<i64: 32, 32>}, {pipeline_mode = #tpu.pipeline_mode<synchronous>, transform_indices = @transform_7, window_bounds = array<i64: 1, 32>}, {pipeline_mode = #tpu.pipeline_mode<synchronous>, transform_indices = @transform_8, window_bounds = array<i64: 32, 32>}, {pipeline_mode = #tpu.pipeline_mode<synchronous>, transform_indices = @transform_9, window_bounds = array<i64: 1, 32>}, {transform_indices = @transform_10, window_bounds = array<i64: 1, 16, 32>}, {transform_indices = @transform_11, window_bounds = array<i64: 1, 8, 32>}]} {
    %c0_i32 = arith.constant 0 : i32
    %0 = arith.cmpi eq, %arg1, %c0_i32 : i32
    %1 = arith.extui %0 : i1 to i32
    %c0_i32_0 = arith.constant 0 : i32
    %2 = arith.cmpi ne, %1, %c0_i32_0 : i32
    scf.if %2 {
      %c0_71 = arith.constant 0 : index
      %c0_72 = arith.constant 0 : index
      %c0_73 = arith.constant 0 : index
      %105 = vector.load %arg3[%c0_71, %c0_72, %c0_73] : memref<1x8x32xbf16, #tpu.memory_space<vmem>>, vector<1x8x32xbf16>
      %106 = vector.shape_cast %105 : vector<1x8x32xbf16> to vector<8x32xbf16>
      %c0_74 = arith.constant 0 : index
      %c0_75 = arith.constant 0 : index
      %107 = vector.load %arg6[%c0_74, %c0_75] : memref<32x32xbf16, #tpu.memory_space<vmem>>, vector<32x32xbf16>
      %cst_76 = arith.constant dense<0.000000e+00> : vector<8x32xf32>
      %108 = tpu.matmul %106, %107, %cst_76 {dimension_numbers = #tpu.dot_dimension_numbers<[1], [0], [0], [1], [0, 0, 1, 1], [], []>} : vector<8x32xbf16>, vector<32x32xbf16>, vector<8x32xf32> -> vector<8x32xf32>
      %109 = arith.truncf %108 : vector<8x32xf32> to vector<8x32xbf16>
      %c0_77 = arith.constant 0 : index
      %c0_78 = arith.constant 0 : index
      %110 = vector.load %arg14[%c0_77, %c0_78] : memref<8x32xbf16, #tpu.memory_space<vmem>>, vector<8x32xbf16>
      tpu.vector_store %arg14[%c0_77, %c0_78], %109 {strides = array<i32>} : memref<8x32xbf16, #tpu.memory_space<vmem>>, vector<8x32xbf16>,
      %c0_79 = arith.constant 0 : index
      %c0_80 = arith.constant 0 : index
      %111 = vector.load %arg7[%c0_79, %c0_80] : memref<32x32xbf16, #tpu.memory_space<vmem>>, vector<32x32xbf16>
      %cst_81 = arith.constant dense<0.000000e+00> : vector<8x32xf32>
      %112 = tpu.matmul %106, %111, %cst_81 {dimension_numbers = #tpu.dot_dimension_numbers<[1], [0], [0], [1], [0, 0, 1, 1], [], []>} : vector<8x32xbf16>, vector<32x32xbf16>, vector<8x32xf32> -> vector<8x32xf32>
      %113 = arith.truncf %112 : vector<8x32xf32> to vector<8x32xbf16>
      %c0_82 = arith.constant 0 : index
      %c0_83 = arith.constant 0 : index
      %114 = vector.load %arg15[%c0_82, %c0_83] : memref<8x32xbf16, #tpu.memory_space<vmem>>, vector<8x32xbf16>
      tpu.vector_store %arg15[%c0_82, %c0_83], %113 {strides = array<i32>} : memref<8x32xbf16, #tpu.memory_space<vmem>>, vector<8x32xbf16>,
      %cst_84 = arith.constant 0.000000e+00 : f32
      %115 = vector.broadcast %cst_84 : f32 to vector<8x32xf32>
      %c0_85 = arith.constant 0 : index
      %c0_86 = arith.constant 0 : index
      %116 = vector.load %arg17[%c0_85, %c0_86] : memref<8x32xf32, #tpu.memory_space<vmem>>, vector<8x32xf32>
      tpu.vector_store %arg17[%c0_85, %c0_86], %115 {strides = array<i32>} : memref<8x32xf32, #tpu.memory_space<vmem>>, vector<8x32xf32>,
      %cst_87 = arith.constant 0.000000e+00 : f32
      %117 = vector.broadcast %cst_87 : f32 to vector<8x32xf32>
      %c0_88 = arith.constant 0 : index
      %c0_89 = arith.constant 0 : index
      %118 = vector.load %arg18[%c0_88, %c0_89] : memref<8x32xf32, #tpu.memory_space<vmem>>, vector<8x32xf32>
      tpu.vector_store %arg18[%c0_88, %c0_89], %117 {strides = array<i32>} : memref<8x32xf32, #tpu.memory_space<vmem>>, vector<8x32xf32>,
      %cst_90 = arith.constant -1.000000e+30 : f32
      %119 = vector.broadcast %cst_90 : f32 to vector<1x2xf32>
      %c0_91 = arith.constant 0 : index
      %c0_92 = arith.constant 0 : index
      %120 = vector.load %arg19[%c0_91, %c0_92] : memref<1x2xf32, #tpu.memory_space<vmem>>, vector<1x2xf32>
      tpu.vector_store %arg19[%c0_91, %c0_92], %119 {strides = array<i32>} : memref<1x2xf32, #tpu.memory_space<vmem>>, vector<1x2xf32>,
    } else {
    }
    %c0 = arith.constant 0 : index
    %c0_1 = arith.constant 0 : index
    %c0_2 = arith.constant 0 : index
    %3 = vector.load %arg2[%c0, %c0_1, %c0_2] : memref<1x16x32xbf16, #tpu.memory_space<vmem>>, vector<1x16x32xbf16>
    %4 = vector.shape_cast %3 : vector<1x16x32xbf16> to vector<16x32xbf16>
    %c0_3 = arith.constant 0 : index
    %c0_4 = arith.constant 0 : index
    %5 = vector.load %arg4[%c0_3, %c0_4] : memref<32x32xbf16, #tpu.memory_space<vmem>>, vector<32x32xbf16>
    %cst = arith.constant dense<0.000000e+00> : vector<16x32xf32>
    %6 = tpu.matmul %4, %5, %cst {dimension_numbers = #tpu.dot_dimension_numbers<[1], [0], [0], [1], [0, 0, 1, 1], [], []>} : vector<16x32xbf16>, vector<32x32xbf16>, vector<16x32xf32> -> vector<16x32xf32>
    %7 = arith.truncf %6 : vector<16x32xf32> to vector<16x32xbf16>
    %c0_5 = arith.constant 0 : index
    %c0_6 = arith.constant 0 : index
    %8 = vector.load %arg5[%c0_5, %c0_6] : memref<32x32xbf16, #tpu.memory_space<vmem>>, vector<32x32xbf16>
    %cst_7 = arith.constant dense<0.000000e+00> : vector<16x32xf32>
    %9 = tpu.matmul %4, %8, %cst_7 {dimension_numbers = #tpu.dot_dimension_numbers<[1], [0], [0], [1], [0, 0, 1, 1], [], []>} : vector<16x32xbf16>, vector<32x32xbf16>, vector<16x32xf32> -> vector<16x32xf32>
    %10 = arith.truncf %9 : vector<16x32xf32> to vector<16x32xbf16>
    %cst_8 = arith.constant 1.000000e+00 : bf16
    %11 = vector.broadcast %cst_8 : bf16 to vector<16x1xbf16>
    %cst_9 = arith.constant 1.000000e+00 : bf16
    %12 = vector.broadcast %cst_9 : bf16 to vector<8x1xbf16>
    %13 = vector.extract_strided_slice %7 {offsets = [0, 0], sizes = [16, 16], strides = [1, 1]} : vector<16x32xbf16> to vector<16x16xbf16>
    %14 = vector.extract_strided_slice %10 {offsets = [0, 0], sizes = [16, 16], strides = [1, 1]} : vector<16x32xbf16> to vector<16x16xbf16>
    %c0_10 = arith.constant 0 : index
    %c0_11 = arith.constant 0 : index
    %15 = vector.load %arg14[%c0_10, %c0_11] : memref<8x32xbf16, #tpu.memory_space<vmem>>, vector<8x16xbf16>
    %c0_12 = arith.constant 0 : index
    %c0_13 = arith.constant 0 : index
    %16 = vector.load %arg15[%c0_12, %c0_13] : memref<8x32xbf16, #tpu.memory_space<vmem>>, vector<8x16xbf16>
    %cst_14 = arith.constant dense<0.000000e+00> : vector<16x8xf32>
    %17 = tpu.matmul %13, %15, %cst_14 {dimension_numbers = #tpu.dot_dimension_numbers<[1], [1], [0], [0], [0, 0, 1, 0], [], []>} : vector<16x16xbf16>, vector<8x16xbf16>, vector<16x8xf32> -> vector<16x8xf32>
    %cst_15 = arith.constant dense<0xFF800000> : vector<16xf32>
    %18 = vector.multi_reduction <maximumf>, %17, %cst_15 [1] : vector<16x8xf32> to vector<16xf32>
    %19 = vector.shape_cast %18 : vector<16xf32> to vector<16x1xf32>
    %cst_16 = arith.constant dense<0xFF800000> : vector<1xf32>
    %20 = vector.multi_reduction <maximumf>, %19, %cst_16 [0] : vector<16x1xf32> to vector<1xf32>
    %21 = vector.shape_cast %20 : vector<1xf32> to vector<1x1xf32>
    %c0_17 = arith.constant 0 : index
    %c0_18 = arith.constant 0 : index
    %22 = vector.load %arg19[%c0_17, %c0_18] : memref<1x2xf32, #tpu.memory_space<vmem>>, vector<1x1xf32>
    %23 = arith.maximumf %22, %21 : vector<1x1xf32>
    %c0_19 = arith.constant 0 : index
    %c0_20 = arith.constant 0 : index
    %24 = vector.load %arg19[%c0_19, %c0_20] : memref<1x2xf32, #tpu.memory_space<vmem>>, vector<1x1xf32>
    tpu.vector_store %arg19[%c0_19, %c0_20], %23 {strides = array<i32>} : memref<1x2xf32, #tpu.memory_space<vmem>>, vector<1x1xf32>,
    %25 = arith.subf %22, %23 : vector<1x1xf32>
    %26 = math.exp %25 : vector<1x1xf32>
    %27 = vector.broadcast %23 : vector<1x1xf32> to vector<16x8xf32>
    %28 = arith.subf %17, %27 : vector<16x8xf32>
    %29 = math.exp %28 : vector<16x8xf32>
    %30 = arith.truncf %29 : vector<16x8xf32> to vector<16x8xbf16>
    %cst_21 = arith.constant dense<0.000000e+00> : vector<16x16xf32>
    %31 = tpu.matmul %30, %16, %cst_21 {dimension_numbers = #tpu.dot_dimension_numbers<[1], [0], [0], [1], [0, 0, 1, 1], [], []>} : vector<16x8xbf16>, vector<8x16xbf16>, vector<16x16xf32> -> vector<16x16xf32>
    %cst_22 = arith.constant dense<0.000000e+00> : vector<16x1xf32>
    %32 = tpu.matmul %30, %12, %cst_22 {dimension_numbers = #tpu.dot_dimension_numbers<[1], [0], [0], [1], [0, 0, 1, 1], [], []>} : vector<16x8xbf16>, vector<8x1xbf16>, vector<16x1xf32> -> vector<16x1xf32>
    %cst_23 = arith.constant 1.000000e-30 : f32
    %33 = vector.broadcast %cst_23 : f32 to vector<16x1xf32>
    %34 = arith.maximumf %32, %33 : vector<16x1xf32>
    %35 = tpu.reciprocal %34 {approx = true} : vector<16x1xf32> -> vector<16x1xf32>
    %36 = vector.broadcast %35 : vector<16x1xf32> to vector<16x16xf32>
    %37 = arith.mulf %31, %36 : vector<16x16xf32>
    %38 = arith.truncf %37 : vector<16x16xf32> to vector<16x16xbf16>
    %c0_24 = arith.constant 0 : index
    %c0_25 = arith.constant 0 : index
    %39 = vector.load %arg16[%c0_24, %c0_25] : memref<16x32xbf16, #tpu.memory_space<vmem>>, vector<16x16xbf16>
    tpu.vector_store %arg16[%c0_24, %c0_25], %38 {strides = array<i32>} : memref<16x32xbf16, #tpu.memory_space<vmem>>, vector<16x16xbf16>,
    %cst_26 = arith.constant dense<0.000000e+00> : vector<8x16xf32>
    %40 = tpu.matmul %30, %14, %cst_26 {dimension_numbers = #tpu.dot_dimension_numbers<[0], [0], [1], [1], [0, 1, 1, 1], [], []>} : vector<16x8xbf16>, vector<16x16xbf16>, vector<8x16xf32> -> vector<8x16xf32>
    %cst_27 = arith.constant dense<0.000000e+00> : vector<8x1xf32>
    %41 = tpu.matmul %30, %11, %cst_27 {dimension_numbers = #tpu.dot_dimension_numbers<[0], [0], [1], [1], [0, 1, 1, 1], [], []>} : vector<16x8xbf16>, vector<16x1xbf16>, vector<8x1xf32> -> vector<8x1xf32>
    %c0_28 = arith.constant 0 : index
    %c0_29 = arith.constant 0 : index
    %42 = vector.load %arg17[%c0_28, %c0_29] : memref<8x32xf32, #tpu.memory_space<vmem>>, vector<8x16xf32>
    %43 = vector.broadcast %26 : vector<1x1xf32> to vector<8x16xf32>
    %44 = arith.mulf %42, %43 : vector<8x16xf32>
    %45 = arith.addf %44, %40 : vector<8x16xf32>
    %c0_30 = arith.constant 0 : index
    %c0_31 = arith.constant 0 : index
    %46 = vector.load %arg17[%c0_30, %c0_31] : memref<8x32xf32, #tpu.memory_space<vmem>>, vector<8x16xf32>
    tpu.vector_store %arg17[%c0_30, %c0_31], %45 {strides = array<i32>} : memref<8x32xf32, #tpu.memory_space<vmem>>, vector<8x16xf32>,
    %c0_32 = arith.constant 0 : index
    %c0_33 = arith.constant 0 : index
    %47 = vector.load %arg18[%c0_32, %c0_33] : memref<8x32xf32, #tpu.memory_space<vmem>>, vector<8x16xf32>
    %48 = vector.broadcast %26 : vector<1x1xf32> to vector<8x16xf32>
    %49 = arith.mulf %47, %48 : vector<8x16xf32>
    %50 = vector.broadcast %41 : vector<8x1xf32> to vector<8x16xf32>
    %51 = arith.addf %49, %50 : vector<8x16xf32>
    %c0_34 = arith.constant 0 : index
    %c0_35 = arith.constant 0 : index
    %52 = vector.load %arg18[%c0_34, %c0_35] : memref<8x32xf32, #tpu.memory_space<vmem>>, vector<8x16xf32>
    tpu.vector_store %arg18[%c0_34, %c0_35], %51 {strides = array<i32>} : memref<8x32xf32, #tpu.memory_space<vmem>>, vector<8x16xf32>,
    %53 = vector.extract_strided_slice %7 {offsets = [0, 16], sizes = [16, 16], strides = [1, 1]} : vector<16x32xbf16> to vector<16x16xbf16>
    %54 = vector.extract_strided_slice %10 {offsets = [0, 16], sizes = [16, 16], strides = [1, 1]} : vector<16x32xbf16> to vector<16x16xbf16>
    %c0_36 = arith.constant 0 : index
    %c16 = arith.constant 16 : index
    %55 = vector.load %arg14[%c0_36, %c16] : memref<8x32xbf16, #tpu.memory_space<vmem>>, vector<8x16xbf16>
    %c0_37 = arith.constant 0 : index
    %c16_38 = arith.constant 16 : index
    %56 = vector.load %arg15[%c0_37, %c16_38] : memref<8x32xbf16, #tpu.memory_space<vmem>>, vector<8x16xbf16>
    %cst_39 = arith.constant dense<0.000000e+00> : vector<16x8xf32>
    %57 = tpu.matmul %53, %55, %cst_39 {dimension_numbers = #tpu.dot_dimension_numbers<[1], [1], [0], [0], [0, 0, 1, 0], [], []>} : vector<16x16xbf16>, vector<8x16xbf16>, vector<16x8xf32> -> vector<16x8xf32>
    %cst_40 = arith.constant dense<0xFF800000> : vector<16xf32>
    %58 = vector.multi_reduction <maximumf>, %57, %cst_40 [1] : vector<16x8xf32> to vector<16xf32>
    %59 = vector.shape_cast %58 : vector<16xf32> to vector<16x1xf32>
    %cst_41 = arith.constant dense<0xFF800000> : vector<1xf32>
    %60 = vector.multi_reduction <maximumf>, %59, %cst_41 [0] : vector<16x1xf32> to vector<1xf32>
    %61 = vector.shape_cast %60 : vector<1xf32> to vector<1x1xf32>
    %c0_42 = arith.constant 0 : index
    %c1 = arith.constant 1 : index
    %62 = vector.load %arg19[%c0_42, %c1] : memref<1x2xf32, #tpu.memory_space<vmem>>, vector<1x1xf32>
    %63 = arith.maximumf %62, %61 : vector<1x1xf32>
    %c0_43 = arith.constant 0 : index
    %c1_44 = arith.constant 1 : index
    %64 = vector.load %arg19[%c0_43, %c1_44] : memref<1x2xf32, #tpu.memory_space<vmem>>, vector<1x1xf32>
    tpu.vector_store %arg19[%c0_43, %c1_44], %63 {strides = array<i32>} : memref<1x2xf32, #tpu.memory_space<vmem>>, vector<1x1xf32>,
    %65 = arith.subf %62, %63 : vector<1x1xf32>
    %66 = math.exp %65 : vector<1x1xf32>
    %67 = vector.broadcast %63 : vector<1x1xf32> to vector<16x8xf32>
    %68 = arith.subf %57, %67 : vector<16x8xf32>
    %69 = math.exp %68 : vector<16x8xf32>
    %70 = arith.truncf %69 : vector<16x8xf32> to vector<16x8xbf16>
    %cst_45 = arith.constant dense<0.000000e+00> : vector<16x16xf32>
    %71 = tpu.matmul %70, %56, %cst_45 {dimension_numbers = #tpu.dot_dimension_numbers<[1], [0], [0], [1], [0, 0, 1, 1], [], []>} : vector<16x8xbf16>, vector<8x16xbf16>, vector<16x16xf32> -> vector<16x16xf32>
    %cst_46 = arith.constant dense<0.000000e+00> : vector<16x1xf32>
    %72 = tpu.matmul %70, %12, %cst_46 {dimension_numbers = #tpu.dot_dimension_numbers<[1], [0], [0], [1], [0, 0, 1, 1], [], []>} : vector<16x8xbf16>, vector<8x1xbf16>, vector<16x1xf32> -> vector<16x1xf32>
    %cst_47 = arith.constant 1.000000e-30 : f32
    %73 = vector.broadcast %cst_47 : f32 to vector<16x1xf32>
    %74 = arith.maximumf %72, %73 : vector<16x1xf32>
    %75 = tpu.reciprocal %74 {approx = true} : vector<16x1xf32> -> vector<16x1xf32>
    %76 = vector.broadcast %75 : vector<16x1xf32> to vector<16x16xf32>
    %77 = arith.mulf %71, %76 : vector<16x16xf32>
    %78 = arith.truncf %77 : vector<16x16xf32> to vector<16x16xbf16>
    %c0_48 = arith.constant 0 : index
    %c16_49 = arith.constant 16 : index
    %79 = vector.load %arg16[%c0_48, %c16_49] : memref<16x32xbf16, #tpu.memory_space<vmem>>, vector<16x16xbf16>
    tpu.vector_store %arg16[%c0_48, %c16_49], %78 {strides = array<i32>} : memref<16x32xbf16, #tpu.memory_space<vmem>>, vector<16x16xbf16>,
    %cst_50 = arith.constant dense<0.000000e+00> : vector<8x16xf32>
    %80 = tpu.matmul %70, %54, %cst_50 {dimension_numbers = #tpu.dot_dimension_numbers<[0], [0], [1], [1], [0, 1, 1, 1], [], []>} : vector<16x8xbf16>, vector<16x16xbf16>, vector<8x16xf32> -> vector<8x16xf32>
    %cst_51 = arith.constant dense<0.000000e+00> : vector<8x1xf32>
    %81 = tpu.matmul %70, %11, %cst_51 {dimension_numbers = #tpu.dot_dimension_numbers<[0], [0], [1], [1], [0, 1, 1, 1], [], []>} : vector<16x8xbf16>, vector<16x1xbf16>, vector<8x1xf32> -> vector<8x1xf32>
    %c0_52 = arith.constant 0 : index
    %c16_53 = arith.constant 16 : index
    %82 = vector.load %arg17[%c0_52, %c16_53] : memref<8x32xf32, #tpu.memory_space<vmem>>, vector<8x16xf32>
    %83 = vector.broadcast %66 : vector<1x1xf32> to vector<8x16xf32>
    %84 = arith.mulf %82, %83 : vector<8x16xf32>
    %85 = arith.addf %84, %80 : vector<8x16xf32>
    %c0_54 = arith.constant 0 : index
    %c16_55 = arith.constant 16 : index
    %86 = vector.load %arg17[%c0_54, %c16_55] : memref<8x32xf32, #tpu.memory_space<vmem>>, vector<8x16xf32>
    tpu.vector_store %arg17[%c0_54, %c16_55], %85 {strides = array<i32>} : memref<8x32xf32, #tpu.memory_space<vmem>>, vector<8x16xf32>,
    %c0_56 = arith.constant 0 : index
    %c16_57 = arith.constant 16 : index
    %87 = vector.load %arg18[%c0_56, %c16_57] : memref<8x32xf32, #tpu.memory_space<vmem>>, vector<8x16xf32>
    %88 = vector.broadcast %66 : vector<1x1xf32> to vector<8x16xf32>
    %89 = arith.mulf %87, %88 : vector<8x16xf32>
    %90 = vector.broadcast %81 : vector<8x1xf32> to vector<8x16xf32>
    %91 = arith.addf %89, %90 : vector<8x16xf32>
    %c0_58 = arith.constant 0 : index
    %c16_59 = arith.constant 16 : index
    %92 = vector.load %arg18[%c0_58, %c16_59] : memref<8x32xf32, #tpu.memory_space<vmem>>, vector<8x16xf32>
    tpu.vector_store %arg18[%c0_58, %c16_59], %91 {strides = array<i32>} : memref<8x32xf32, #tpu.memory_space<vmem>>, vector<8x16xf32>,
    %c0_60 = arith.constant 0 : index
    %c0_61 = arith.constant 0 : index
    %93 = vector.load %arg16[%c0_60, %c0_61] : memref<16x32xbf16, #tpu.memory_space<vmem>>, vector<16x32xbf16>
    %c0_62 = arith.constant 0 : index
    %c0_63 = arith.constant 0 : index
    %94 = vector.load %arg8[%c0_62, %c0_63] : memref<32x32xbf16, #tpu.memory_space<vmem>>, vector<32x32xbf16>
    %cst_64 = arith.constant dense<0.000000e+00> : vector<16x32xf32>
    %95 = tpu.matmul %93, %94, %cst_64 {dimension_numbers = #tpu.dot_dimension_numbers<[1], [0], [0], [1], [0, 0, 1, 1], [], []>} : vector<16x32xbf16>, vector<32x32xbf16>, vector<16x32xf32> -> vector<16x32xf32>
    %c0_65 = arith.constant 0 : index
    %c0_66 = arith.constant 0 : index
    %96 = vector.load %arg9[%c0_65, %c0_66] : memref<1x32xf32, #tpu.memory_space<vmem>>, vector<1x32xf32>
    %97 = vector.broadcast %96 : vector<1x32xf32> to vector<16x32xf32>
    %98 = arith.addf %95, %97 : vector<16x32xf32>
    %c0_67 = arith.constant 0 : index
    %c0_68 = arith.constant 0 : index
    %c0_69 = arith.constant 0 : index
    %99 = vector.load %arg12[%c0_67, %c0_68, %c0_69] : memref<1x16x32xf32, #tpu.memory_space<vmem>>, vector<1x16x32xf32>
    %100 = vector.shape_cast %99 : vector<1x16x32xf32> to vector<16x32xf32>
    %101 = vector.shape_cast %98 : vector<16x32xf32> to vector<1x16x32xf32>
    tpu.vector_store %arg12[%c0_67, %c0_68, %c0_69], %101 {strides = array<i32>} : memref<1x16x32xf32, #tpu.memory_space<vmem>>, vector<1x16x32xf32>,
    %c1_i32 = arith.constant 1 : i32
    %102 = arith.cmpi eq, %arg1, %c1_i32 : i32
    %103 = arith.extui %102 : i1 to i32
    %c0_i32_70 = arith.constant 0 : i32
    %104 = arith.cmpi ne, %103, %c0_i32_70 : i32
    scf.if %104 {
      %c0_71 = arith.constant 0 : index
      %c0_72 = arith.constant 0 : index
      %105 = vector.load %arg18[%c0_71, %c0_72] : memref<8x32xf32, #tpu.memory_space<vmem>>, vector<8x32xf32>
      %cst_73 = arith.constant 1.000000e-30 : f32
      %106 = vector.broadcast %cst_73 : f32 to vector<8x32xf32>
      %107 = arith.maximumf %105, %106 : vector<8x32xf32>
      %108 = tpu.reciprocal %107 {approx = true} : vector<8x32xf32> -> vector<8x32xf32>
      %c0_74 = arith.constant 0 : index
      %c0_75 = arith.constant 0 : index
      %109 = vector.load %arg17[%c0_74, %c0_75] : memref<8x32xf32, #tpu.memory_space<vmem>>, vector<8x32xf32>
      %110 = arith.mulf %109, %108 : vector<8x32xf32>
      %111 = arith.truncf %110 : vector<8x32xf32> to vector<8x32xbf16>
      %c0_76 = arith.constant 0 : index
      %c0_77 = arith.constant 0 : index
      %112 = vector.load %arg10[%c0_76, %c0_77] : memref<32x32xbf16, #tpu.memory_space<vmem>>, vector<32x32xbf16>
      %cst_78 = arith.constant dense<0.000000e+00> : vector<8x32xf32>
      %113 = tpu.matmul %111, %112, %cst_78 {dimension_numbers = #tpu.dot_dimension_numbers<[1], [0], [0], [1], [0, 0, 1, 1], [], []>} : vector<8x32xbf16>, vector<32x32xbf16>, vector<8x32xf32> -> vector<8x32xf32>
      %c0_79 = arith.constant 0 : index
      %c0_80 = arith.constant 0 : index
      %114 = vector.load %arg11[%c0_79, %c0_80] : memref<1x32xf32, #tpu.memory_space<vmem>>, vector<1x32xf32>
      %115 = vector.broadcast %114 : vector<1x32xf32> to vector<8x32xf32>
      %116 = arith.addf %113, %115 : vector<8x32xf32>
      %c0_81 = arith.constant 0 : index
      %c0_82 = arith.constant 0 : index
      %c0_83 = arith.constant 0 : index
      %117 = vector.load %arg13[%c0_81, %c0_82, %c0_83] : memref<1x8x32xf32, #tpu.memory_space<vmem>>, vector<1x8x32xf32>
      %118 = vector.shape_cast %117 : vector<1x8x32xf32> to vector<8x32xf32>
      %119 = vector.shape_cast %116 : vector<8x32xf32> to vector<1x8x32xf32>
      tpu.vector_store %arg13[%c0_81, %c0_82, %c0_83], %119 {strides = array<i32>} : memref<1x8x32xf32, #tpu.memory_space<vmem>>, vector<1x8x32xf32>,
    } else {
    }
    return
  }
  func.func @transform_0(%arg0: i32, %arg1: i32) -> (i32, i32, i32) {
    %c0_i32 = arith.constant 0 : i32
    %c0_i32_0 = arith.constant 0 : i32
    return %arg0, %arg1, %c0_i32 : i32, i32, i32
  }
  func.func @transform_1(%arg0: i32, %arg1: i32) -> (i32, i32, i32) {
    %c0_i32 = arith.constant 0 : i32
    %c0_i32_0 = arith.constant 0 : i32
    %c0_i32_1 = arith.constant 0 : i32
    return %arg0, %c0_i32, %c0_i32_0 : i32, i32, i32
  }
  func.func @transform_2(%arg0: i32, %arg1: i32) -> (i32, i32) {
    %c0_i32 = arith.constant 0 : i32
    %c0_i32_0 = arith.constant 0 : i32
    %c0_i32_1 = arith.constant 0 : i32
    return %c0_i32, %c0_i32_0 : i32, i32
  }
  func.func @transform_3(%arg0: i32, %arg1: i32) -> (i32, i32) {
    %c0_i32 = arith.constant 0 : i32
    %c0_i32_0 = arith.constant 0 : i32
    %c0_i32_1 = arith.constant 0 : i32
    return %c0_i32, %c0_i32_0 : i32, i32
  }
  func.func @transform_4(%arg0: i32, %arg1: i32) -> (i32, i32) {
    %c0_i32 = arith.constant 0 : i32
    %c0_i32_0 = arith.constant 0 : i32
    %c0_i32_1 = arith.constant 0 : i32
    return %c0_i32, %c0_i32_0 : i32, i32
  }
  func.func @transform_5(%arg0: i32, %arg1: i32) -> (i32, i32) {
    %c0_i32 = arith.constant 0 : i32
    %c0_i32_0 = arith.constant 0 : i32
    %c0_i32_1 = arith.constant 0 : i32
    return %c0_i32, %c0_i32_0 : i32, i32
  }
  func.func @transform_6(%arg0: i32, %arg1: i32) -> (i32, i32) {
    %c0_i32 = arith.constant 0 : i32
    %c0_i32_0 = arith.constant 0 : i32
    %c0_i32_1 = arith.constant 0 : i32
    return %c0_i32, %c0_i32_0 : i32, i32
  }
  func.func @transform_7(%arg0: i32, %arg1: i32) -> (i32, i32) {
    %c0_i32 = arith.constant 0 : i32
    %c0_i32_0 = arith.constant 0 : i32
    %c0_i32_1 = arith.constant 0 : i32
    return %c0_i32, %c0_i32_0 : i32, i32
  }
  func.func @transform_8(%arg0: i32, %arg1: i32) -> (i32, i32) {
    %c0_i32 = arith.constant 0 : i32
    %c0_i32_0 = arith.constant 0 : i32
    %c0_i32_1 = arith.constant 0 : i32
    return %c0_i32, %c0_i32_0 : i32, i32
  }
  func.func @transform_9(%arg0: i32, %arg1: i32) -> (i32, i32) {
    %c0_i32 = arith.constant 0 : i32
    %c0_i32_0 = arith.constant 0 : i32
    %c0_i32_1 = arith.constant 0 : i32
    return %c0_i32, %c0_i32_0 : i32, i32
  }
  func.func @transform_10(%arg0: i32, %arg1: i32) -> (i32, i32, i32) {
    %c0_i32 = arith.constant 0 : i32
    %c0_i32_0 = arith.constant 0 : i32
    return %arg0, %arg1, %c0_i32 : i32, i32, i32
  }
  func.func @transform_11(%arg0: i32, %arg1: i32) -> (i32, i32, i32) {
    %c0_i32 = arith.constant 0 : i32
    %c0_i32_0 = arith.constant 0 : i32
    %c0_i32_1 = arith.constant 0 : i32
    return %arg0, %c0_i32, %c0_i32_0 : i32, i32, i32
  }
}

module attributes {stable_mosaic.version = 11 : i64} {
  func.func @kernel(%arg0: i32, %arg1: i32, %arg2: memref<1x16x32xbf16, #tpu.memory_space<vmem>>, %arg3: memref<1x8x32xbf16, #tpu.memory_space<vmem>>, %arg4: memref<32x32xbf16, #tpu.memory_space<vmem>>, %arg5: memref<32x32xbf16, #tpu.memory_space<vmem>>, %arg6: memref<32x32xbf16, #tpu.memory_space<vmem>>, %arg7: memref<32x32xbf16, #tpu.memory_space<vmem>>, %arg8: memref<32x32xbf16, #tpu.memory_space<vmem>>, %arg9: memref<1x32xf32, #tpu.memory_space<vmem>>, %arg10: memref<32x32xbf16, #tpu.memory_space<vmem>>, %arg11: memref<1x32xf32, #tpu.memory_space<vmem>>, %arg12: memref<1x16x32xf32, #tpu.memory_space<vmem>>, %arg13: memref<1x8x32xf32, #tpu.memory_space<vmem>>, %arg14: memref<8x32xbf16, #tpu.memory_space<vmem>>, %arg15: memref<8x32xbf16, #tpu.memory_space<vmem>>, %arg16: memref<16x32xbf16, #tpu.memory_space<vmem>>, %arg17: memref<8x32xf32, #tpu.memory_space<vmem>>, %arg18: memref<8x32xf32, #tpu.memory_space<vmem>>, %arg19: memref<1x2xf32, #tpu.memory_space<vmem>>) attributes {dimension_semantics = [#tpu.dimension_semantics<parallel>, #tpu.dimension_semantics<arbitrary>], iteration_bounds = array<i64: 2, 2>, scalar_prefetch = 0 : i64, scratch_operands = 6 : i64, tpu.core_type = #tpu.core_type<tc>, window_params = [{transform_indices = @transform_0, window_bounds = array<i64: 1, 16, 32>}, {transform_indices = @transform_1, window_bounds = array<i64: 1, 8, 32>}, {pipeline_mode = #tpu.pipeline_mode<synchronous>, transform_indices = @transform_2, window_bounds = array<i64: 32, 32>}, {pipeline_mode = #tpu.pipeline_mode<synchronous>, transform_indices = @transform_3, window_bounds = array<i64: 32, 32>}, {pipeline_mode = #tpu.pipeline_mode<synchronous>, transform_indices = @transform_4, window_bounds = array<i64: 32, 32>}, {pipeline_mode = #tpu.pipeline_mode<synchronous>, transform_indices = @transform_5, window_bounds = array<i64: 32, 32>}, {pipeline_mode = #tpu.pipeline_mode<synchronous>, transform_indices = @transform_6, window_bounds = array<i64: 32, 32>}, {pipeline_mode = #tpu.pipeline_mode<synchronous>, transform_indices = @transform_7, window_bounds = array<i64: 1, 32>}, {pipeline_mode = #tpu.pipeline_mode<synchronous>, transform_indices = @transform_8, window_bounds = array<i64: 32, 32>}, {pipeline_mode = #tpu.pipeline_mode<synchronous>, transform_indices = @transform_9, window_bounds = array<i64: 1, 32>}, {transform_indices = @transform_10, window_bounds = array<i64: 1, 16, 32>}, {transform_indices = @transform_11, window_bounds = array<i64: 1, 8, 32>}]} {
    %c0_i32 = arith.constant 0 : i32
    %0 = arith.cmpi eq, %arg1, %c0_i32 : i32
    %1 = arith.extui %0 : i1 to i32
    %c0_i32_0 = arith.constant 0 : i32
    %2 = arith.cmpi ne, %1, %c0_i32_0 : i32
    scf.if %2 {
      %c0_71 = arith.constant 0 : index
      %c0_72 = arith.constant 0 : index
      %c0_73 = arith.constant 0 : index
      %105 = vector.load %arg3[%c0_71, %c0_72, %c0_73] : memref<1x8x32xbf16, #tpu.memory_space<vmem>>, vector<1x8x32xbf16>
      %106 = vector.shape_cast %105 : vector<1x8x32xbf16> to vector<8x32xbf16>
      %c0_74 = arith.constant 0 : index
      %c0_75 = arith.constant 0 : index
      %107 = vector.load %arg6[%c0_74, %c0_75] : memref<32x32xbf16, #tpu.memory_space<vmem>>, vector<32x32xbf16>
      %cst_76 = arith.constant dense<0.000000e+00> : vector<8x32xf32>
      %108 = tpu.matmul %106, %107, %cst_76 {dimension_numbers = #tpu.dot_dimension_numbers<[1], [0], [0], [1], [0, 0, 1, 1], [], []>} : vector<8x32xbf16>, vector<32x32xbf16>, vector<8x32xf32> -> vector<8x32xf32>
      %109 = arith.truncf %108 : vector<8x32xf32> to vector<8x32xbf16>
      %c0_77 = arith.constant 0 : index
      %c0_78 = arith.constant 0 : index
      %110 = vector.load %arg14[%c0_77, %c0_78] : memref<8x32xbf16, #tpu.memory_space<vmem>>, vector<8x32xbf16>
      tpu.vector_store %arg14[%c0_77, %c0_78], %109 {strides = array<i32>} : memref<8x32xbf16, #tpu.memory_space<vmem>>, vector<8x32xbf16>,
      %c0_79 = arith.constant 0 : index
      %c0_80 = arith.constant 0 : index
      %111 = vector.load %arg7[%c0_79, %c0_80] : memref<32x32xbf16, #tpu.memory_space<vmem>>, vector<32x32xbf16>
      %cst_81 = arith.constant dense<0.000000e+00> : vector<8x32xf32>
      %112 = tpu.matmul %106, %111, %cst_81 {dimension_numbers = #tpu.dot_dimension_numbers<[1], [0], [0], [1], [0, 0, 1, 1], [], []>} : vector<8x32xbf16>, vector<32x32xbf16>, vector<8x32xf32> -> vector<8x32xf32>
      %113 = arith.truncf %112 : vector<8x32xf32> to vector<8x32xbf16>
      %c0_82 = arith.constant 0 : index
      %c0_83 = arith.constant 0 : index
      %114 = vector.load %arg15[%c0_82, %c0_83] : memref<8x32xbf16, #tpu.memory_space<vmem>>, vector<8x32xbf16>
      tpu.vector_store %arg15[%c0_82, %c0_83], %113 {strides = array<i32>} : memref<8x32xbf16, #tpu.memory_space<vmem>>, vector<8x32xbf16>,
      %cst_84 = arith.constant 0.000000e+00 : f32
      %115 = vector.broadcast %cst_84 : f32 to vector<8x32xf32>
      %c0_85 = arith.constant 0 : index
      %c0_86 = arith.constant 0 : index
      %116 = vector.load %arg17[%c0_85, %c0_86] : memref<8x32xf32, #tpu.memory_space<vmem>>, vector<8x32xf32>
      tpu.vector_store %arg17[%c0_85, %c0_86], %115 {strides = array<i32>} : memref<8x32xf32, #tpu.memory_space<vmem>>, vector<8x32xf32>,
      %cst_87 = arith.constant 0.000000e+00 : f32
      %117 = vector.broadcast %cst_87 : f32 to vector<8x32xf32>
      %c0_88 = arith.constant 0 : index
      %c0_89 = arith.constant 0 : index
      %118 = vector.load %arg18[%c0_88, %c0_89] : memref<8x32xf32, #tpu.memory_space<vmem>>, vector<8x32xf32>
      tpu.vector_store %arg18[%c0_88, %c0_89], %117 {strides = array<i32>} : memref<8x32xf32, #tpu.memory_space<vmem>>, vector<8x32xf32>,
      %cst_90 = arith.constant -1.000000e+30 : f32
      %119 = vector.broadcast %cst_90 : f32 to vector<1x2xf32>
      %c0_91 = arith.constant 0 : index
      %c0_92 = arith.constant 0 : index
      %120 = vector.load %arg19[%c0_91, %c0_92] : memref<1x2xf32, #tpu.memory_space<vmem>>, vector<1x2xf32>
      tpu.vector_store %arg19[%c0_91, %c0_92], %119 {strides = array<i32>} : memref<1x2xf32, #tpu.memory_space<vmem>>, vector<1x2xf32>,
    } else {
    }
    %c0 = arith.constant 0 : index
    %c0_1 = arith.constant 0 : index
    %c0_2 = arith.constant 0 : index
    %3 = vector.load %arg2[%c0, %c0_1, %c0_2] : memref<1x16x32xbf16, #tpu.memory_space<vmem>>, vector<1x16x32xbf16>
    %4 = vector.shape_cast %3 : vector<1x16x32xbf16> to vector<16x32xbf16>
    %c0_3 = arith.constant 0 : index
    %c0_4 = arith.constant 0 : index
    %5 = vector.load %arg4[%c0_3, %c0_4] : memref<32x32xbf16, #tpu.memory_space<vmem>>, vector<32x32xbf16>
    %cst = arith.constant dense<0.000000e+00> : vector<16x32xf32>
    %6 = tpu.matmul %4, %5, %cst {dimension_numbers = #tpu.dot_dimension_numbers<[1], [0], [0], [1], [0, 0, 1, 1], [], []>} : vector<16x32xbf16>, vector<32x32xbf16>, vector<16x32xf32> -> vector<16x32xf32>
    %7 = arith.truncf %6 : vector<16x32xf32> to vector<16x32xbf16>
    %c0_5 = arith.constant 0 : index
    %c0_6 = arith.constant 0 : index
    %8 = vector.load %arg5[%c0_5, %c0_6] : memref<32x32xbf16, #tpu.memory_space<vmem>>, vector<32x32xbf16>
    %cst_7 = arith.constant dense<0.000000e+00> : vector<16x32xf32>
    %9 = tpu.matmul %4, %8, %cst_7 {dimension_numbers = #tpu.dot_dimension_numbers<[1], [0], [0], [1], [0, 0, 1, 1], [], []>} : vector<16x32xbf16>, vector<32x32xbf16>, vector<16x32xf32> -> vector<16x32xf32>
    %10 = arith.truncf %9 : vector<16x32xf32> to vector<16x32xbf16>
    %cst_8 = arith.constant 1.000000e+00 : bf16
    %11 = vector.broadcast %cst_8 : bf16 to vector<16x1xbf16>
    %cst_9 = arith.constant 1.000000e+00 : bf16
    %12 = vector.broadcast %cst_9 : bf16 to vector<8x1xbf16>
    %13 = vector.extract_strided_slice %7 {offsets = [0, 0], sizes = [16, 16], strides = [1, 1]} : vector<16x32xbf16> to vector<16x16xbf16>
    %14 = vector.extract_strided_slice %10 {offsets = [0, 0], sizes = [16, 16], strides = [1, 1]} : vector<16x32xbf16> to vector<16x16xbf16>
    %c0_10 = arith.constant 0 : index
    %c0_11 = arith.constant 0 : index
    %15 = vector.load %arg14[%c0_10, %c0_11] : memref<8x32xbf16, #tpu.memory_space<vmem>>, vector<8x16xbf16>
    %c0_12 = arith.constant 0 : index
    %c0_13 = arith.constant 0 : index
    %16 = vector.load %arg15[%c0_12, %c0_13] : memref<8x32xbf16, #tpu.memory_space<vmem>>, vector<8x16xbf16>
    %cst_14 = arith.constant dense<0.000000e+00> : vector<16x8xf32>
    %17 = tpu.matmul %13, %15, %cst_14 {dimension_numbers = #tpu.dot_dimension_numbers<[1], [1], [0], [0], [0, 0, 1, 0], [], []>} : vector<16x16xbf16>, vector<8x16xbf16>, vector<16x8xf32> -> vector<16x8xf32>
    %cst_15 = arith.constant dense<0xFF800000> : vector<16xf32>
    %18 = vector.multi_reduction <maximumf>, %17, %cst_15 [1] : vector<16x8xf32> to vector<16xf32>
    %19 = vector.shape_cast %18 : vector<16xf32> to vector<16x1xf32>
    %cst_16 = arith.constant dense<0xFF800000> : vector<1xf32>
    %20 = vector.multi_reduction <maximumf>, %19, %cst_16 [0] : vector<16x1xf32> to vector<1xf32>
    %21 = vector.shape_cast %20 : vector<1xf32> to vector<1x1xf32>
    %c0_17 = arith.constant 0 : index
    %c0_18 = arith.constant 0 : index
    %22 = vector.load %arg19[%c0_17, %c0_18] : memref<1x2xf32, #tpu.memory_space<vmem>>, vector<1x1xf32>
    %23 = arith.maximumf %22, %21 : vector<1x1xf32>
    %c0_19 = arith.constant 0 : index
    %c0_20 = arith.constant 0 : index
    %24 = vector.load %arg19[%c0_19, %c0_20] : memref<1x2xf32, #tpu.memory_space<vmem>>, vector<1x1xf32>
    tpu.vector_store %arg19[%c0_19, %c0_20], %23 {strides = array<i32>} : memref<1x2xf32, #tpu.memory_space<vmem>>, vector<1x1xf32>,
    %25 = arith.subf %22, %23 : vector<1x1xf32>
    %26 = math.exp %25 : vector<1x1xf32>
    %27 = vector.broadcast %23 : vector<1x1xf32> to vector<16x8xf32>
    %28 = arith.subf %17, %27 : vector<16x8xf32>
    %29 = math.exp %28 : vector<16x8xf32>
    %30 = arith.truncf %29 : vector<16x8xf32> to vector<16x8xbf16>
    %cst_21 = arith.constant dense<0.000000e+00> : vector<16x16xf32>
    %31 = tpu.matmul %30, %16, %cst_21 {dimension_numbers = #tpu.dot_dimension_numbers<[1], [0], [0], [1], [0, 0, 1, 1], [], []>} : vector<16x8xbf16>, vector<8x16xbf16>, vector<16x16xf32> -> vector<16x16xf32>
    %cst_22 = arith.constant dense<0.000000e+00> : vector<16x1xf32>
    %32 = tpu.matmul %30, %12, %cst_22 {dimension_numbers = #tpu.dot_dimension_numbers<[1], [0], [0], [1], [0, 0, 1, 1], [], []>} : vector<16x8xbf16>, vector<8x1xbf16>, vector<16x1xf32> -> vector<16x1xf32>
    %cst_23 = arith.constant 1.000000e-30 : f32
    %33 = vector.broadcast %cst_23 : f32 to vector<16x1xf32>
    %34 = arith.maximumf %32, %33 : vector<16x1xf32>
    %35 = tpu.reciprocal %34 {approx = true} : vector<16x1xf32> -> vector<16x1xf32>
    %36 = vector.broadcast %35 : vector<16x1xf32> to vector<16x16xf32>
    %37 = arith.mulf %31, %36 : vector<16x16xf32>
    %38 = arith.truncf %37 : vector<16x16xf32> to vector<16x16xbf16>
    %c0_24 = arith.constant 0 : index
    %c0_25 = arith.constant 0 : index
    %39 = vector.load %arg16[%c0_24, %c0_25] : memref<16x32xbf16, #tpu.memory_space<vmem>>, vector<16x16xbf16>
    tpu.vector_store %arg16[%c0_24, %c0_25], %38 {strides = array<i32>} : memref<16x32xbf16, #tpu.memory_space<vmem>>, vector<16x16xbf16>,
    %cst_26 = arith.constant dense<0.000000e+00> : vector<8x16xf32>
    %40 = tpu.matmul %30, %14, %cst_26 {dimension_numbers = #tpu.dot_dimension_numbers<[0], [0], [1], [1], [0, 1, 1, 1], [], []>} : vector<16x8xbf16>, vector<16x16xbf16>, vector<8x16xf32> -> vector<8x16xf32>
    %cst_27 = arith.constant dense<0.000000e+00> : vector<8x1xf32>
    %41 = tpu.matmul %30, %11, %cst_27 {dimension_numbers = #tpu.dot_dimension_numbers<[0], [0], [1], [1], [0, 1, 1, 1], [], []>} : vector<16x8xbf16>, vector<16x1xbf16>, vector<8x1xf32> -> vector<8x1xf32>
    %c0_28 = arith.constant 0 : index
    %c0_29 = arith.constant 0 : index
    %42 = vector.load %arg17[%c0_28, %c0_29] : memref<8x32xf32, #tpu.memory_space<vmem>>, vector<8x16xf32>
    %43 = vector.broadcast %26 : vector<1x1xf32> to vector<8x16xf32>
    %44 = arith.mulf %42, %43 : vector<8x16xf32>
    %45 = arith.addf %44, %40 : vector<8x16xf32>
    %c0_30 = arith.constant 0 : index
    %c0_31 = arith.constant 0 : index
    %46 = vector.load %arg17[%c0_30, %c0_31] : memref<8x32xf32, #tpu.memory_space<vmem>>, vector<8x16xf32>
    tpu.vector_store %arg17[%c0_30, %c0_31], %45 {strides = array<i32>} : memref<8x32xf32, #tpu.memory_space<vmem>>, vector<8x16xf32>,
    %c0_32 = arith.constant 0 : index
    %c0_33 = arith.constant 0 : index
    %47 = vector.load %arg18[%c0_32, %c0_33] : memref<8x32xf32, #tpu.memory_space<vmem>>, vector<8x16xf32>
    %48 = vector.broadcast %26 : vector<1x1xf32> to vector<8x16xf32>
    %49 = arith.mulf %47, %48 : vector<8x16xf32>
    %50 = vector.broadcast %41 : vector<8x1xf32> to vector<8x16xf32>
    %51 = arith.addf %49, %50 : vector<8x16xf32>
    %c0_34 = arith.constant 0 : index
    %c0_35 = arith.constant 0 : index
    %52 = vector.load %arg18[%c0_34, %c0_35] : memref<8x32xf32, #tpu.memory_space<vmem>>, vector<8x16xf32>
    tpu.vector_store %arg18[%c0_34, %c0_35], %51 {strides = array<i32>} : memref<8x32xf32, #tpu.memory_space<vmem>>, vector<8x16xf32>,
    %53 = vector.extract_strided_slice %7 {offsets = [0, 16], sizes = [16, 16], strides = [1, 1]} : vector<16x32xbf16> to vector<16x16xbf16>
    %54 = vector.extract_strided_slice %10 {offsets = [0, 16], sizes = [16, 16], strides = [1, 1]} : vector<16x32xbf16> to vector<16x16xbf16>
    %c0_36 = arith.constant 0 : index
    %c16 = arith.constant 16 : index
    %55 = vector.load %arg14[%c0_36, %c16] : memref<8x32xbf16, #tpu.memory_space<vmem>>, vector<8x16xbf16>
    %c0_37 = arith.constant 0 : index
    %c16_38 = arith.constant 16 : index
    %56 = vector.load %arg15[%c0_37, %c16_38] : memref<8x32xbf16, #tpu.memory_space<vmem>>, vector<8x16xbf16>
    %cst_39 = arith.constant dense<0.000000e+00> : vector<16x8xf32>
    %57 = tpu.matmul %53, %55, %cst_39 {dimension_numbers = #tpu.dot_dimension_numbers<[1], [1], [0], [0], [0, 0, 1, 0], [], []>} : vector<16x16xbf16>, vector<8x16xbf16>, vector<16x8xf32> -> vector<16x8xf32>
    %cst_40 = arith.constant dense<0xFF800000> : vector<16xf32>
    %58 = vector.multi_reduction <maximumf>, %57, %cst_40 [1] : vector<16x8xf32> to vector<16xf32>
    %59 = vector.shape_cast %58 : vector<16xf32> to vector<16x1xf32>
    %cst_41 = arith.constant dense<0xFF800000> : vector<1xf32>
    %60 = vector.multi_reduction <maximumf>, %59, %cst_41 [0] : vector<16x1xf32> to vector<1xf32>
    %61 = vector.shape_cast %60 : vector<1xf32> to vector<1x1xf32>
    %c0_42 = arith.constant 0 : index
    %c1 = arith.constant 1 : index
    %62 = vector.load %arg19[%c0_42, %c1] : memref<1x2xf32, #tpu.memory_space<vmem>>, vector<1x1xf32>
    %63 = arith.maximumf %62, %61 : vector<1x1xf32>
    %c0_43 = arith.constant 0 : index
    %c1_44 = arith.constant 1 : index
    %64 = vector.load %arg19[%c0_43, %c1_44] : memref<1x2xf32, #tpu.memory_space<vmem>>, vector<1x1xf32>
    tpu.vector_store %arg19[%c0_43, %c1_44], %63 {strides = array<i32>} : memref<1x2xf32, #tpu.memory_space<vmem>>, vector<1x1xf32>,
    %65 = arith.subf %62, %63 : vector<1x1xf32>
    %66 = math.exp %65 : vector<1x1xf32>
    %67 = vector.broadcast %63 : vector<1x1xf32> to vector<16x8xf32>
    %68 = arith.subf %57, %67 : vector<16x8xf32>
    %69 = math.exp %68 : vector<16x8xf32>
    %70 = arith.truncf %69 : vector<16x8xf32> to vector<16x8xbf16>
    %cst_45 = arith.constant dense<0.000000e+00> : vector<16x16xf32>
    %71 = tpu.matmul %70, %56, %cst_45 {dimension_numbers = #tpu.dot_dimension_numbers<[1], [0], [0], [1], [0, 0, 1, 1], [], []>} : vector<16x8xbf16>, vector<8x16xbf16>, vector<16x16xf32> -> vector<16x16xf32>
    %cst_46 = arith.constant dense<0.000000e+00> : vector<16x1xf32>
    %72 = tpu.matmul %70, %12, %cst_46 {dimension_numbers = #tpu.dot_dimension_numbers<[1], [0], [0], [1], [0, 0, 1, 1], [], []>} : vector<16x8xbf16>, vector<8x1xbf16>, vector<16x1xf32> -> vector<16x1xf32>
    %cst_47 = arith.constant 1.000000e-30 : f32
    %73 = vector.broadcast %cst_47 : f32 to vector<16x1xf32>
    %74 = arith.maximumf %72, %73 : vector<16x1xf32>
    %75 = tpu.reciprocal %74 {approx = true} : vector<16x1xf32> -> vector<16x1xf32>
    %76 = vector.broadcast %75 : vector<16x1xf32> to vector<16x16xf32>
    %77 = arith.mulf %71, %76 : vector<16x16xf32>
    %78 = arith.truncf %77 : vector<16x16xf32> to vector<16x16xbf16>
    %c0_48 = arith.constant 0 : index
    %c16_49 = arith.constant 16 : index
    %79 = vector.load %arg16[%c0_48, %c16_49] : memref<16x32xbf16, #tpu.memory_space<vmem>>, vector<16x16xbf16>
    tpu.vector_store %arg16[%c0_48, %c16_49], %78 {strides = array<i32>} : memref<16x32xbf16, #tpu.memory_space<vmem>>, vector<16x16xbf16>,
    %cst_50 = arith.constant dense<0.000000e+00> : vector<8x16xf32>
    %80 = tpu.matmul %70, %54, %cst_50 {dimension_numbers = #tpu.dot_dimension_numbers<[0], [0], [1], [1], [0, 1, 1, 1], [], []>} : vector<16x8xbf16>, vector<16x16xbf16>, vector<8x16xf32> -> vector<8x16xf32>
    %cst_51 = arith.constant dense<0.000000e+00> : vector<8x1xf32>
    %81 = tpu.matmul %70, %11, %cst_51 {dimension_numbers = #tpu.dot_dimension_numbers<[0], [0], [1], [1], [0, 1, 1, 1], [], []>} : vector<16x8xbf16>, vector<16x1xbf16>, vector<8x1xf32> -> vector<8x1xf32>
    %c0_52 = arith.constant 0 : index
    %c16_53 = arith.constant 16 : index
    %82 = vector.load %arg17[%c0_52, %c16_53] : memref<8x32xf32, #tpu.memory_space<vmem>>, vector<8x16xf32>
    %83 = vector.broadcast %66 : vector<1x1xf32> to vector<8x16xf32>
    %84 = arith.mulf %82, %83 : vector<8x16xf32>
    %85 = arith.addf %84, %80 : vector<8x16xf32>
    %c0_54 = arith.constant 0 : index
    %c16_55 = arith.constant 16 : index
    %86 = vector.load %arg17[%c0_54, %c16_55] : memref<8x32xf32, #tpu.memory_space<vmem>>, vector<8x16xf32>
    tpu.vector_store %arg17[%c0_54, %c16_55], %85 {strides = array<i32>} : memref<8x32xf32, #tpu.memory_space<vmem>>, vector<8x16xf32>,
    %c0_56 = arith.constant 0 : index
    %c16_57 = arith.constant 16 : index
    %87 = vector.load %arg18[%c0_56, %c16_57] : memref<8x32xf32, #tpu.memory_space<vmem>>, vector<8x16xf32>
    %88 = vector.broadcast %66 : vector<1x1xf32> to vector<8x16xf32>
    %89 = arith.mulf %87, %88 : vector<8x16xf32>
    %90 = vector.broadcast %81 : vector<8x1xf32> to vector<8x16xf32>
    %91 = arith.addf %89, %90 : vector<8x16xf32>
    %c0_58 = arith.constant 0 : index
    %c16_59 = arith.constant 16 : index
    %92 = vector.load %arg18[%c0_58, %c16_59] : memref<8x32xf32, #tpu.memory_space<vmem>>, vector<8x16xf32>
    tpu.vector_store %arg18[%c0_58, %c16_59], %91 {strides = array<i32>} : memref<8x32xf32, #tpu.memory_space<vmem>>, vector<8x16xf32>,
    %c0_60 = arith.constant 0 : index
    %c0_61 = arith.constant 0 : index
    %93 = vector.load %arg16[%c0_60, %c0_61] : memref<16x32xbf16, #tpu.memory_space<vmem>>, vector<16x32xbf16>
    %c0_62 = arith.constant 0 : index
    %c0_63 = arith.constant 0 : index
    %94 = vector.load %arg8[%c0_62, %c0_63] : memref<32x32xbf16, #tpu.memory_space<vmem>>, vector<32x32xbf16>
    %cst_64 = arith.constant dense<0.000000e+00> : vector<16x32xf32>
    %95 = tpu.matmul %93, %94, %cst_64 {dimension_numbers = #tpu.dot_dimension_numbers<[1], [0], [0], [1], [0, 0, 1, 1], [], []>} : vector<16x32xbf16>, vector<32x32xbf16>, vector<16x32xf32> -> vector<16x32xf32>
    %c0_65 = arith.constant 0 : index
    %c0_66 = arith.constant 0 : index
    %96 = vector.load %arg9[%c0_65, %c0_66] : memref<1x32xf32, #tpu.memory_space<vmem>>, vector<1x32xf32>
    %97 = vector.broadcast %96 : vector<1x32xf32> to vector<16x32xf32>
    %98 = arith.addf %95, %97 : vector<16x32xf32>
    %c0_67 = arith.constant 0 : index
    %c0_68 = arith.constant 0 : index
    %c0_69 = arith.constant 0 : index
    %99 = vector.load %arg12[%c0_67, %c0_68, %c0_69] : memref<1x16x32xf32, #tpu.memory_space<vmem>>, vector<1x16x32xf32>
    %100 = vector.shape_cast %99 : vector<1x16x32xf32> to vector<16x32xf32>
    %101 = vector.shape_cast %98 : vector<16x32xf32> to vector<1x16x32xf32>
    tpu.vector_store %arg12[%c0_67, %c0_68, %c0_69], %101 {strides = array<i32>} : memref<1x16x32xf32, #tpu.memory_space<vmem>>, vector<1x16x32xf32>,
    %c1_i32 = arith.constant 1 : i32
    %102 = arith.cmpi eq, %arg1, %c1_i32 : i32
    %103 = arith.extui %102 : i1 to i32
    %c0_i32_70 = arith.constant 0 : i32
    %104 = arith.cmpi ne, %103, %c0_i32_70 : i32
    scf.if %104 {
      %c0_71 = arith.constant 0 : index
      %c0_72 = arith.constant 0 : index
      %105 = vector.load %arg18[%c0_71, %c0_72] : memref<8x32xf32, #tpu.memory_space<vmem>>, vector<8x32xf32>
      %cst_73 = arith.constant 1.000000e-30 : f32
      %106 = vector.broadcast %cst_73 : f32 to vector<8x32xf32>
      %107 = arith.maximumf %105, %106 : vector<8x32xf32>
      %108 = tpu.reciprocal %107 {approx = true} : vector<8x32xf32> -> vector<8x32xf32>
      %c0_74 = arith.constant 0 : index
      %c0_75 = arith.constant 0 : index
      %109 = vector.load %arg17[%c0_74, %c0_75] : memref<8x32xf32, #tpu.memory_space<vmem>>, vector<8x32xf32>
      %110 = arith.mulf %109, %108 : vector<8x32xf32>
      %111 = arith.truncf %110 : vector<8x32xf32> to vector<8x32xbf16>
      %c0_76 = arith.constant 0 : index
      %c0_77 = arith.constant 0 : index
      %112 = vector.load %arg10[%c0_76, %c0_77] : memref<32x32xbf16, #tpu.memory_space<vmem>>, vector<32x32xbf16>
      %cst_78 = arith.constant dense<0.000000e+00> : vector<8x32xf32>
      %113 = tpu.matmul %111, %112, %cst_78 {dimension_numbers = #tpu.dot_dimension_numbers<[1], [0], [0], [1], [0, 0, 1, 1], [], []>} : vector<8x32xbf16>, vector<32x32xbf16>, vector<8x32xf32> -> vector<8x32xf32>
      %c0_79 = arith.constant 0 : index
      %c0_80 = arith.constant 0 : index
      %114 = vector.load %arg11[%c0_79, %c0_80] : memref<1x32xf32, #tpu.memory_space<vmem>>, vector<1x32xf32>
      %115 = vector.broadcast %114 : vector<1x32xf32> to vector<8x32xf32>
      %116 = arith.addf %113, %115 : vector<8x32xf32>
      %c0_81 = arith.constant 0 : index
      %c0_82 = arith.constant 0 : index
      %c0_83 = arith.constant 0 : index
      %117 = vector.load %arg13[%c0_81, %c0_82, %c0_83] : memref<1x8x32xf32, #tpu.memory_space<vmem>>, vector<1x8x32xf32>
      %118 = vector.shape_cast %117 : vector<1x8x32xf32> to vector<8x32xf32>
      %119 = vector.shape_cast %116 : vector<8x32xf32> to vector<1x8x32xf32>
      tpu.vector_store %arg13[%c0_81, %c0_82, %c0_83], %119 {strides = array<i32>} : memref<1x8x32xf32, #tpu.memory_space<vmem>>, vector<1x8x32xf32>,
    } else {
    }
    return
  }
  func.func @transform_0(%arg0: i32, %arg1: i32) -> (i32, i32, i32) {
    %c0_i32 = arith.constant 0 : i32
    %c0_i32_0 = arith.constant 0 : i32
    return %arg0, %arg1, %c0_i32 : i32, i32, i32
  }
  func.func @transform_1(%arg0: i32, %arg1: i32) -> (i32, i32, i32) {
    %c0_i32 = arith.constant 0 : i32
    %c0_i32_0 = arith.constant 0 : i32
    %c0_i32_1 = arith.constant 0 : i32
    return %arg0, %c0_i32, %c0_i32_0 : i32, i32, i32
  }
  func.func @transform_2(%arg0: i32, %arg1: i32) -> (i32, i32) {
    %c0_i32 = arith.constant 0 : i32
    %c0_i32_0 = arith.constant 0 : i32
    %c0_i32_1 = arith.constant 0 : i32
    return %c0_i32, %c0_i32_0 : i32, i32
  }
  func.func @transform_3(%arg0: i32, %arg1: i32) -> (i32, i32) {
    %c0_i32 = arith.constant 0 : i32
    %c0_i32_0 = arith.constant 0 : i32
    %c0_i32_1 = arith.constant 0 : i32
    return %c0_i32, %c0_i32_0 : i32, i32
  }
  func.func @transform_4(%arg0: i32, %arg1: i32) -> (i32, i32) {
    %c0_i32 = arith.constant 0 : i32
    %c0_i32_0 = arith.constant 0 : i32
    %c0_i32_1 = arith.constant 0 : i32
    return %c0_i32, %c0_i32_0 : i32, i32
  }
  func.func @transform_5(%arg0: i32, %arg1: i32) -> (i32, i32) {
    %c0_i32 = arith.constant 0 : i32
    %c0_i32_0 = arith.constant 0 : i32
    %c0_i32_1 = arith.constant 0 : i32
    return %c0_i32, %c0_i32_0 : i32, i32
  }
  func.func @transform_6(%arg0: i32, %arg1: i32) -> (i32, i32) {
    %c0_i32 = arith.constant 0 : i32
    %c0_i32_0 = arith.constant 0 : i32
    %c0_i32_1 = arith.constant 0 : i32
    return %c0_i32, %c0_i32_0 : i32, i32
  }
  func.func @transform_7(%arg0: i32, %arg1: i32) -> (i32, i32) {
    %c0_i32 = arith.constant 0 : i32
    %c0_i32_0 = arith.constant 0 : i32
    %c0_i32_1 = arith.constant 0 : i32
    return %c0_i32, %c0_i32_0 : i32, i32
  }
  func.func @transform_8(%arg0: i32, %arg1: i32) -> (i32, i32) {
    %c0_i32 = arith.constant 0 : i32
    %c0_i32_0 = arith.constant 0 : i32
    %c0_i32_1 = arith.constant 0 : i32
    return %c0_i32, %c0_i32_0 : i32, i32
  }
  func.func @transform_9(%arg0: i32, %arg1: i32) -> (i32, i32) {
    %c0_i32 = arith.constant 0 : i32
    %c0_i32_0 = arith.constant 0 : i32
    %c0_i32_1 = arith.constant 0 : i32
    return %c0_i32, %c0_i32_0 : i32, i32
  }
  func.func @transform_10(%arg0: i32, %arg1: i32) -> (i32, i32, i32) {
    %c0_i32 = arith.constant 0 : i32
    %c0_i32_0 = arith.constant 0 : i32
    return %arg0, %arg1, %c0_i32 : i32, i32, i32
  }
  func.func @transform_11(%arg0: i32, %arg1: i32) -> (i32, i32, i32) {
    %c0_i32 = arith.constant 0 : i32
    %c0_i32_0 = arith.constant 0 : i32
    %c0_i32_1 = arith.constant 0 : i32
    return %arg0, %c0_i32, %c0_i32_0 : i32, i32, i32
  }
}

</mosaic_0001>

<llo_original>
// kernel: tpu_custom_call.1
$region0: #{tpu_custom_call.1}
  #allocation0 [shape = 'u32[]', space=smem, size = 0x4, offset = 0x4, fixed_abs, tag = 'smem constant byte address 0x4 - core index']
  #allocation1 [shape = 'u32[144,128]{1,0:T(1,128)}', space=vmem, size = 0x12000, scoped, tag = 'internal scratch']
  #allocation2 [shape = 'bf16[8,32]{1,0:T(8,128)(2,1)}', space=vmem, size = 0x800, scoped, tag = 'scratch operand']
  #allocation3 [shape = 'bf16[8,32]{1,0:T(8,128)(2,1)}', space=vmem, size = 0x800, scoped, tag = 'scratch operand']
  #allocation4 [shape = 'bf16[16,32]{1,0:T(16,128)(2,1)}', space=vmem, size = 0x1000, scoped, tag = 'scratch operand']
  #allocation5 [shape = 'f32[8,32]{1,0:T(8,128)}', space=vmem, size = 0x1000, scoped, tag = 'scratch operand']
  #allocation6 [shape = 'f32[8,32]{1,0:T(8,128)}', space=vmem, size = 0x1000, scoped, tag = 'scratch operand']
  #allocation7 [shape = 'f32[1,2]{1,0:T(1,128)}', space=vmem, size = 0x200, scoped, tag = 'scratch operand']
  %s0 = inlined_call_operand.hbm [shape: bf16[2,32,32], index: 0, kind: input, shape index: {}]
  %s1 = inlined_call_operand.hbm [shape: bf16[2,8,32], index: 1, kind: input, shape index: {}]
  %s2 = inlined_call_operand.hbm [shape: bf16[32,32], index: 2, kind: input, shape index: {}]
  %s3 = inlined_call_operand.hbm [shape: bf16[32,32], index: 3, kind: input, shape index: {}]
  %s4 = inlined_call_operand.hbm [shape: bf16[32,32], index: 4, kind: input, shape index: {}]
  %s5 = inlined_call_operand.vmem [shape: bf16[32,32], index: 5, kind: input, shape index: {}]
  %s6 = inlined_call_operand.hbm [shape: bf16[32,32], index: 6, kind: input, shape index: {}]
  %s7 = inlined_call_operand.vmem [shape: f32[1,32], index: 7, kind: input, shape index: {}]
  %s8 = inlined_call_operand.hbm [shape: bf16[32,32], index: 8, kind: input, shape index: {}]
  %s9 = inlined_call_operand.vmem [shape: f32[1,32], index: 9, kind: input, shape index: {}]
  %s10 = inlined_call_operand.hbm [shape: f32[2,32,32], index: 10, kind: output, shape index: {0}]
  %s11 = inlined_call_operand.hbm [shape: f32[2,8,32], index: 11, kind: output, shape index: {1}]
  %12 = xla_tuple %s10, %s11
  %s13 = sld [smem:[#allocation0]]
  $region117: #{tpu_custom_call.1} parent=0
    _
  %s15 = ssub.s32 1, %s13
  %s16 = scalar_select 0, %s15, %s13
  $region1: #{tpu_custom_call.1} parent=0
    #allocation8 [shape = 'u8[8192]{0}', space=vmem, size = 0x2000, scoped, tag = 'input window, operand 0']
    #allocation9 [shape = 's32[2]{0}', space=sflag, size = 0x8, scoped, tag = 'scoped memory for tpu_custom_call.1']
    #allocation10 [shape = 's32[2]{0}', space=sflag, size = 0x8, scoped, tag = 'scoped memory for tpu_custom_call.1']
    #allocation11 [shape = 'u8[4096]{0}', space=vmem, size = 0x1000, scoped, tag = 'input window, operand 1']
    #allocation12 [shape = 's32[2]{0}', space=sflag, size = 0x8, scoped, tag = 'scoped memory for tpu_custom_call.1']
    #allocation13 [shape = 'u8[8192]{0}', space=vmem, size = 0x2000, scoped, tag = 'input window, operand 2, single buffered']
    #allocation14 [shape = 'u8[8192]{0}', space=vmem, size = 0x2000, scoped, tag = 'input window, operand 3, single buffered']
    #allocation15 [shape = 's32[1]{0}', space=sflag, size = 0x4, scoped, tag = 'scoped memory for tpu_custom_call.1']
    #allocation16 [shape = 'u8[8192]{0}', space=vmem, size = 0x2000, scoped, tag = 'input window, operand 4, single buffered']
    #allocation17 [shape = 'u8[8192]{0}', space=vmem, size = 0x2000, scoped, tag = 'input window, operand 6, single buffered']
    #allocation18 [shape = 's32[1]{0}', space=sflag, size = 0x4, scoped, tag = 'scoped memory for tpu_custom_call.1']
    #allocation19 [shape = 'u8[8192]{0}', space=vmem, size = 0x2000, scoped, tag = 'input window, operand 8, single buffered']
    #allocation20 [shape = 'u8[16384]{0}', space=vmem, size = 0x4000, scoped, tag = 'output window, operand 0']
    #allocation21 [shape = 'u8[8192]{0}', space=vmem, size = 0x2000, scoped, tag = 'output window, operand 1']
    #allocation22 [shape = 's32[2]{0}', space=sflag, size = 0x8, scoped, tag = 'scoped memory for tpu_custom_call.1']
    %17 = vsyncpa [#allocation9], 0
    %s18 = scalar_lea.sflag [#allocation9], 1
    %19 = vsyncpa %s18, 0
    %20 = vsyncpa [#allocation12], 0
    %s21 = scalar_lea.sflag [#allocation12], 1
    %22 = vsyncpa %s21, 0
    %23 = vsyncpa [#allocation15], 0
    %24 = vsyncpa [#allocation18], 0
    %25 = vsyncpa [#allocation10], 0
    %s26 = scalar_lea.sflag [#allocation10], 1
    %27 = vsyncpa %s26, 0
    %28 = vsyncpa [#allocation22], 0
    %s29 = scalar_lea.sflag [#allocation22], 1
    %30 = vsyncpa %s29, 0
    loop: start=0, step=1, limit=6
    $region2: #{tpu_custom_call.1} parent=1 // loop_pre_header
      _
    $region3: #{tpu_custom_call.1} parent=1 // loop_header
      %s32 = sphi 0, %s36
      %p33 = scmp.ge.s32.totalorder %s32, 6
      %s39 = sphi 0, %s51
      %s40 = sphi 0, %s47
      %s41 = sphi 0, %s39
      %s42 = sphi 0, %s40
      %s43 = sphi 0, %s41
      %s44 = sphi 0, %s42
      %s56 = sphi 0, %s58
      %s59 = sphi 0, %s56
      %s60 = sphi 0, %s59
      %s76 = sphi 0, %s60
      %s82 = sphi 0, %s84
      %s85 = sphi 0, %s82
      %s86 = sphi 0, %s85
      %s102 = sphi 0, %s86
      %s106 = sphi 0, %s106
      %s108 = sphi 0, %s106
      %s109 = sphi 0, %s108
      %s123 = sphi 0, %s109
      %s127 = sphi 0, %s127
      %s129 = sphi 0, %s127
      %s130 = sphi 0, %s129
      %s144 = sphi 0, %s130
      %s148 = sphi 0, %s148
      %s150 = sphi 0, %s148
      %s151 = sphi 0, %s150
      %s165 = sphi 0, %s151
      %s169 = sphi 0, %s169
      %s171 = sphi 0, %s169
      %s172 = sphi 0, %s171
      %s186 = sphi 0, %s172
      %s190 = sphi 0, %s190
      %s192 = sphi 0, %s190
      %s193 = sphi 0, %s192
      %s207 = sphi 0, %s193
      %s211 = sphi 0, %s211
      %s213 = sphi 0, %s211
      %s214 = sphi 0, %s213
      %s228 = sphi 0, %s214
      %s232 = sphi 0, %s232
      %s234 = sphi 0, %s232
      %s235 = sphi 0, %s234
      %s249 = sphi 0, %s235
      %s253 = sphi 0, %s253
      %s255 = sphi 0, %s253
      %s256 = sphi 0, %s255
      %s270 = sphi 0, %s256
      %s278 = sphi 0, %s280
      %s281 = sphi 0, %s278
      %s282 = sphi 0, %s281
      %s298 = sphi 0, %s282
      %s304 = sphi 0, %s306
      %s307 = sphi 0, %s304
      %s308 = sphi 0, %s307
      %s324 = sphi 0, %s308
    $region4: #{tpu_custom_call.1} parent=1 // loop_header_branch
      %35 = sbr.rel (%p33) target = $region8
    $region5: #{tpu_custom_call.1} parent=1 // loop_body
      %s37 = ssub.s32 %s32, 1
      %s38 = ssub.s32 %s32, 2
      %s45 = sadd.s32 1, %s40
      %p46 = scmp.ge.s32.totalorder %s45, 2
      %s47 = scalar_select %p46, 0, %s45
      %s48 = sadd.s32 1, %s39
      %s49 = scalar_select %p46, %s48, %s39
      %p50 = scmp.ge.s32.totalorder %s49, 2
      %s51 = scalar_select %p50, 0, %s49
      %s52 = ssub.s32 %s39, %s51
      %s53 = ssub.s32 %s40, %s47
      %s54 = sor.u32 %s52, %s53
      %p55 = scmp.eq.s32.totalorder %s54, 0
      %s57 = sadd.s32 %s56, 1
      %s58 = scalar_select %p55, %s56, %s57
      %p61 = pneg %p55
      %p62 = scmp.eq.s32.totalorder %s32, 3
      %p63 = por %p61, %p62
      %p64 = scmp.ne.s32.totalorder %s56, %s59
      %p65 = scmp.eq.s32.totalorder %s32, 0
      %p66 = por %p64, %p65
      %p67 = scmp.ne.s32.totalorder %s56, %s59
      %p68 = scmp.eq.s32.totalorder %s37, 3
      %p69 = por %p67, %p68
      %p70 = scmp.ne.s32.totalorder %s59, %s60
      %p71 = scmp.eq.s32.totalorder %s37, 0
      %p72 = por %p70, %p71
      %p73 = scmp.ne.s32.totalorder %s59, %s60
      %p74 = scmp.eq.s32.totalorder %s38, 3
      %p75 = por %p73, %p74
      %p77 = scmp.ne.s32.totalorder %s60, %s76
      %p78 = scmp.eq.s32.totalorder %s38, 0
      %p79 = por %p77, %p78
      %s80 = ssub.s32 %s39, %s51
      %p81 = scmp.eq.s32.totalorder %s80, 0
      %s83 = sadd.s32 %s82, 1
      %s84 = scalar_select %p81, %s82, %s83
      %p87 = pneg %p81
      %p88 = scmp.eq.s32.totalorder %s32, 3
      %p89 = por %p87, %p88
      %p90 = scmp.ne.s32.totalorder %s82, %s85
      %p91 = scmp.eq.s32.totalorder %s32, 0
      %p92 = por %p90, %p91
      %p93 = scmp.ne.s32.totalorder %s82, %s85
      %p94 = scmp.eq.s32.totalorder %s37, 3
      %p95 = por %p93, %p94
      %p96 = scmp.ne.s32.totalorder %s85, %s86
      %p97 = scmp.eq.s32.totalorder %s37, 0
      %p98 = por %p96, %p97
      %p99 = scmp.ne.s32.totalorder %s85, %s86
      %p100 = scmp.eq.s32.totalorder %s38, 3
      %p101 = por %p99, %p100
      %p103 = scmp.ne.s32.totalorder %s86, %s102
      %p104 = scmp.eq.s32.totalorder %s38, 0
      %p105 = por %p103, %p104
      %s107 = sadd.s32 %s106, 1
      %p110 = scmp.eq.s32.totalorder %s32, 3
      %p111 = scmp.ne.s32.totalorder %s106, %s108
      %p112 = scmp.eq.s32.totalorder %s32, 0
      %p113 = por %p111, %p112
      %p114 = scmp.ne.s32.totalorder %s106, %s108
      %p115 = scmp.eq.s32.totalorder %s37, 3
      %p116 = por %p114, %p115
      %p117 = scmp.ne.s32.totalorder %s108, %s109
      %p118 = scmp.eq.s32.totalorder %s37, 0
      %p119 = por %p117, %p118
      %p120 = scmp.ne.s32.totalorder %s108, %s109
      %p121 = scmp.eq.s32.totalorder %s38, 3
      %p122 = por %p120, %p121
      %p124 = scmp.ne.s32.totalorder %s109, %s123
      %p125 = scmp.eq.s32.totalorder %s38, 0
      %p126 = por %p124, %p125
      %s128 = sadd.s32 %s127, 1
      %p131 = scmp.eq.s32.totalorder %s32, 3
      %p132 = scmp.ne.s32.totalorder %s127, %s129
      %p133 = scmp.eq.s32.totalorder %s32, 0
      %p134 = por %p132, %p133
      %p135 = scmp.ne.s32.totalorder %s127, %s129
      %p136 = scmp.eq.s32.totalorder %s37, 3
      %p137 = por %p135, %p136
      %p138 = scmp.ne.s32.totalorder %s129, %s130
      %p139 = scmp.eq.s32.totalorder %s37, 0
      %p140 = por %p138, %p139
      %p141 = scmp.ne.s32.totalorder %s129, %s130
      %p142 = scmp.eq.s32.totalorder %s38, 3
      %p143 = por %p141, %p142
      %p145 = scmp.ne.s32.totalorder %s130, %s144
      %p146 = scmp.eq.s32.totalorder %s38, 0
      %p147 = por %p145, %p146
      %s149 = sadd.s32 %s148, 1
      %p152 = scmp.eq.s32.totalorder %s32, 3
      %p153 = scmp.ne.s32.totalorder %s148, %s150
      %p154 = scmp.eq.s32.totalorder %s32, 0
      %p155 = por %p153, %p154
      %p156 = scmp.ne.s32.totalorder %s148, %s150
      %p157 = scmp.eq.s32.totalorder %s37, 3
      %p158 = por %p156, %p157
      %p159 = scmp.ne.s32.totalorder %s150, %s151
      %p160 = scmp.eq.s32.totalorder %s37, 0
      %p161 = por %p159, %p160
      %p162 = scmp.ne.s32.totalorder %s150, %s151
      %p163 = scmp.eq.s32.totalorder %s38, 3
      %p164 = por %p162, %p163
      %p166 = scmp.ne.s32.totalorder %s151, %s165
      %p167 = scmp.eq.s32.totalorder %s38, 0
      %p168 = por %p166, %p167
      %s170 = sadd.s32 %s169, 1
      %p173 = scmp.eq.s32.totalorder %s32, 3
      %p174 = scmp.ne.s32.totalorder %s169, %s171
      %p175 = scmp.eq.s32.totalorder %s32, 0
      %p176 = por %p174, %p175
      %p177 = scmp.ne.s32.totalorder %s169, %s171
      %p178 = scmp.eq.s32.totalorder %s37, 3
      %p179 = por %p177, %p178
      %p180 = scmp.ne.s32.totalorder %s171, %s172
      %p181 = scmp.eq.s32.totalorder %s37, 0
      %p182 = por %p180, %p181
      %p183 = scmp.ne.s32.totalorder %s171, %s172
      %p184 = scmp.eq.s32.totalorder %s38, 3
      %p185 = por %p183, %p184
      %p187 = scmp.ne.s32.totalorder %s172, %s186
      %p188 = scmp.eq.s32.totalorder %s38, 0
      %p189 = por %p187, %p188
      %s191 = sadd.s32 %s190, 1
      %p194 = scmp.eq.s32.totalorder %s32, 3
      %p195 = scmp.ne.s32.totalorder %s190, %s192
      %p196 = scmp.eq.s32.totalorder %s32, 0
      %p197 = por %p195, %p196
      %p198 = scmp.ne.s32.totalorder %s190, %s192
      %p199 = scmp.eq.s32.totalorder %s37, 3
      %p200 = por %p198, %p199
      %p201 = scmp.ne.s32.totalorder %s192, %s193
      %p202 = scmp.eq.s32.totalorder %s37, 0
      %p203 = por %p201, %p202
      %p204 = scmp.ne.s32.totalorder %s192, %s193
      %p205 = scmp.eq.s32.totalorder %s38, 3
      %p206 = por %p204, %p205
      %p208 = scmp.ne.s32.totalorder %s193, %s207
      %p209 = scmp.eq.s32.totalorder %s38, 0
      %p210 = por %p208, %p209
      %s212 = sadd.s32 %s211, 1
      %p215 = scmp.eq.s32.totalorder %s32, 3
      %p216 = scmp.ne.s32.totalorder %s211, %s213
      %p217 = scmp.eq.s32.totalorder %s32, 0
      %p218 = por %p216, %p217
      %p219 = scmp.ne.s32.totalorder %s211, %s213
      %p220 = scmp.eq.s32.totalorder %s37, 3
      %p221 = por %p219, %p220
      %p222 = scmp.ne.s32.totalorder %s213, %s214
      %p223 = scmp.eq.s32.totalorder %s37, 0
      %p224 = por %p222, %p223
      %p225 = scmp.ne.s32.totalorder %s213, %s214
      %p226 = scmp.eq.s32.totalorder %s38, 3
      %p227 = por %p225, %p226
      %p229 = scmp.ne.s32.totalorder %s214, %s228
      %p230 = scmp.eq.s32.totalorder %s38, 0
      %p231 = por %p229, %p230
      %s233 = sadd.s32 %s232, 1
      %p236 = scmp.eq.s32.totalorder %s32, 3
      %p237 = scmp.ne.s32.totalorder %s232, %s234
      %p238 = scmp.eq.s32.totalorder %s32, 0
      %p239 = por %p237, %p238
      %p240 = scmp.ne.s32.totalorder %s232, %s234
      %p241 = scmp.eq.s32.totalorder %s37, 3
      %p242 = por %p240, %p241
      %p243 = scmp.ne.s32.totalorder %s234, %s235
      %p244 = scmp.eq.s32.totalorder %s37, 0
      %p245 = por %p243, %p244
      %p246 = scmp.ne.s32.totalorder %s234, %s235
      %p247 = scmp.eq.s32.totalorder %s38, 3
      %p248 = por %p246, %p247
      %p250 = scmp.ne.s32.totalorder %s235, %s249
      %p251 = scmp.eq.s32.totalorder %s38, 0
      %p252 = por %p250, %p251
      %s254 = sadd.s32 %s253, 1
      %p257 = scmp.eq.s32.totalorder %s32, 3
      %p258 = scmp.ne.s32.totalorder %s253, %s255
      %p259 = scmp.eq.s32.totalorder %s32, 0
      %p260 = por %p258, %p259
      %p261 = scmp.ne.s32.totalorder %s253, %s255
      %p262 = scmp.eq.s32.totalorder %s37, 3
      %p263 = por %p261, %p262
      %p264 = scmp.ne.s32.totalorder %s255, %s256
      %p265 = scmp.eq.s32.totalorder %s37, 0
      %p266 = por %p264, %p265
      %p267 = scmp.ne.s32.totalorder %s255, %s256
      %p268 = scmp.eq.s32.totalorder %s38, 3
      %p269 = por %p267, %p268
      %p271 = scmp.ne.s32.totalorder %s256, %s270
      %p272 = scmp.eq.s32.totalorder %s38, 0
      %p273 = por %p271, %p272
      %s274 = ssub.s32 %s39, %s51
      %s275 = ssub.s32 %s40, %s47
      %s276 = sor.u32 %s274, %s275
      %p277 = scmp.eq.s32.totalorder %s276, 0
      %s279 = sadd.s32 %s278, 1
      %s280 = scalar_select %p277, %s278, %s279
      %p283 = pneg %p277
      %p284 = scmp.eq.s32.totalorder %s32, 3
      %p285 = por %p283, %p284
      %p286 = scmp.ne.s32.totalorder %s278, %s281
      %p287 = scmp.eq.s32.totalorder %s32, 0
      %p288 = por %p286, %p287
      %p289 = scmp.ne.s32.totalorder %s278, %s281
      %p290 = scmp.eq.s32.totalorder %s37, 3
      %p291 = por %p289, %p290
      %p292 = scmp.ne.s32.totalorder %s281, %s282
      %p293 = scmp.eq.s32.totalorder %s37, 0
      %p294 = por %p292, %p293
      %p295 = scmp.ne.s32.totalorder %s281, %s282
      %p296 = scmp.eq.s32.totalorder %s38, 3
      %p297 = por %p295, %p296
      %p299 = scmp.ne.s32.totalorder %s282, %s298
      %p300 = scmp.eq.s32.totalorder %s38, 0
      %p301 = por %p299, %p300
      %s302 = ssub.s32 %s39, %s51
      %p303 = scmp.eq.s32.totalorder %s302, 0
      %s305 = sadd.s32 %s304, 1
      %s306 = scalar_select %p303, %s304, %s305
      %p309 = pneg %p303
      %p310 = scmp.eq.s32.totalorder %s32, 3
      %p311 = por %p309, %p310
      %p312 = scmp.ne.s32.totalorder %s304, %s307
      %p313 = scmp.eq.s32.totalorder %s32, 0
      %p314 = por %p312, %p313
      %p315 = scmp.ne.s32.totalorder %s304, %s307
      %p316 = scmp.eq.s32.totalorder %s37, 3
      %p317 = por %p315, %p316
      %p318 = scmp.ne.s32.totalorder %s307, %s308
      %p319 = scmp.eq.s32.totalorder %s37, 0
      %p320 = por %p318, %p319
      %p321 = scmp.ne.s32.totalorder %s307, %s308
      %p322 = scmp.eq.s32.totalorder %s38, 3
      %p323 = por %p321, %p322
      %p325 = scmp.ne.s32.totalorder %s308, %s324
      %p326 = scmp.eq.s32.totalorder %s38, 0
      %p327 = por %p325, %p326
      %p328 = scmp.le.s32.totalorder 1, %s32
      %p329 = scmp.lt.s32.totalorder %s32, 5
      %p330 = pnand %p328, %p329
      %p331 = pneg %p330
      // Predicated region
      $region9: #{tpu_custom_call.1} parent=5 // pred_check
        _
      $region10: #{tpu_custom_call.1} parent=5 // pred_check_branch
        %333 = sbr.rel (%p330) target = $region12
      $region11: #{tpu_custom_call.1} parent=5 // pred_region
        %s334 = ssub.s32 %s32, 1
        // Predicated region
        $region13: #{tpu_custom_call.1} parent=11 // pred_check
          %p335 = pneg %p119
        $region14: #{tpu_custom_call.1} parent=11 // pred_check_branch
          %337 = sbr.rel (%p335) target = $region16
        $region15: #{tpu_custom_call.1} parent=11 // pred_region
          %s339 = ssub.s32 256, 256
          %340 = vsyncadd [#allocation12], %s339
          %s341 = sshll.u32 [#allocation13], 4
          %s342 = int_to_ptr.vmem [resolvable:$true] %s341
          %347 = dma.hbm_to_vmem [thread:$0]  %s2, 256, %s342, [#allocation12], 64, 64, 4
        $region16: #{tpu_custom_call.1} parent=11 // pred_fallthru
          _
        // Predicated region
        $region17: #{tpu_custom_call.1} parent=11 // pred_check
          %p348 = pneg %p140
        $region18: #{tpu_custom_call.1} parent=11 // pred_check_branch
          %350 = sbr.rel (%p348) target = $region20
        $region19: #{tpu_custom_call.1} parent=11 // pred_region
          %s352 = ssub.s32 256, 256
          %353 = vsyncadd [#allocation15], %s352
          %s354 = sshll.u32 [#allocation14], 4
          %s355 = int_to_ptr.vmem [resolvable:$true] %s354
          %360 = dma.hbm_to_vmem [thread:$0]  %s3, 256, %s355, [#allocation15], 64, 64, 4
        $region20: #{tpu_custom_call.1} parent=11 // pred_fallthru
          _
        // Predicated region
        $region21: #{tpu_custom_call.1} parent=11 // pred_check
          %p361 = pneg %p161
        $region22: #{tpu_custom_call.1} parent=11 // pred_check_branch
          %363 = sbr.rel (%p361) target = $region24
        $region23: #{tpu_custom_call.1} parent=11 // pred_region
          %s365 = ssub.s32 256, 256
          %366 = vsyncadd [#allocation15], %s365
          %s367 = sshll.u32 [#allocation16], 4
          %s368 = int_to_ptr.vmem [resolvable:$true] %s367
          %373 = dma.hbm_to_vmem [thread:$0]  %s4, 256, %s368, [#allocation15], 64, 64, 4
        $region24: #{tpu_custom_call.1} parent=11 // pred_fallthru
          _
        // Predicated region
        $region25: #{tpu_custom_call.1} parent=11 // pred_check
          %p374 = pneg %p182
        $region26: #{tpu_custom_call.1} parent=11 // pred_check_branch
          %376 = sbr.rel (%p374) target = $region28
        $region27: #{tpu_custom_call.1} parent=11 // pred_region
          _
        $region28: #{tpu_custom_call.1} parent=11 // pred_fallthru
          _
        // Predicated region
        $region29: #{tpu_custom_call.1} parent=11 // pred_check
          %p377 = pneg %p203
        $region30: #{tpu_custom_call.1} parent=11 // pred_check_branch
          %379 = sbr.rel (%p377) target = $region32
        $region31: #{tpu_custom_call.1} parent=11 // pred_region
          %s381 = ssub.s32 256, 256
          %382 = vsyncadd [#allocation18], %s381
          %s383 = sshll.u32 [#allocation17], 4
          %s384 = int_to_ptr.vmem [resolvable:$true] %s383
          %389 = dma.hbm_to_vmem [thread:$0]  %s6, 256, %s384, [#allocation18], 64, 64, 4
        $region32: #{tpu_custom_call.1} parent=11 // pred_fallthru
          _
        // Predicated region
        $region33: #{tpu_custom_call.1} parent=11 // pred_check
          %p390 = pneg %p224
        $region34: #{tpu_custom_call.1} parent=11 // pred_check_branch
          %392 = sbr.rel (%p390) target = $region36
        $region35: #{tpu_custom_call.1} parent=11 // pred_region
          _
        $region36: #{tpu_custom_call.1} parent=11 // pred_fallthru
          _
        // Predicated region
        $region37: #{tpu_custom_call.1} parent=11 // pred_check
          %p393 = pneg %p245
        $region38: #{tpu_custom_call.1} parent=11 // pred_check_branch
          %395 = sbr.rel (%p393) target = $region40
        $region39: #{tpu_custom_call.1} parent=11 // pred_region
          %s397 = ssub.s32 256, 256
          %398 = vsyncadd [#allocation18], %s397
          %s399 = sshll.u32 [#allocation19], 4
          %s400 = int_to_ptr.vmem [resolvable:$true] %s399
          %405 = dma.hbm_to_vmem [thread:$0]  %s8, 256, %s400, [#allocation18], 64, 64, 4
        $region40: #{tpu_custom_call.1} parent=11 // pred_fallthru
          _
        // Predicated region
        $region41: #{tpu_custom_call.1} parent=11 // pred_check
          %p406 = pneg %p266
        $region42: #{tpu_custom_call.1} parent=11 // pred_check_branch
          %408 = sbr.rel (%p406) target = $region44
        $region43: #{tpu_custom_call.1} parent=11 // pred_region
          _
        $region44: #{tpu_custom_call.1} parent=11 // pred_fallthru
          _
      $region12: #{tpu_custom_call.1} parent=5 // pred_fallthru
        _
      %p409 = scmp.lt.s32.totalorder %s32, 4
      // Predicated region
      $region45: #{tpu_custom_call.1} parent=5 // pred_check
        %p410 = pneg %p409
      $region46: #{tpu_custom_call.1} parent=5 // pred_check_branch
        %412 = sbr.rel (%p410) target = $region48
      $region47: #{tpu_custom_call.1} parent=5 // pred_region
        // Predicated region
        $region49: #{tpu_custom_call.1} parent=47 // pred_check
          %p413 = pneg %p66
        $region50: #{tpu_custom_call.1} parent=47 // pred_check_branch
          %415 = sbr.rel (%p413) target = $region52
        $region51: #{tpu_custom_call.1} parent=47 // pred_region
          %s416 = sand.u32 %s56, 1
          %s417 = scalar_lea.sflag [#allocation9], %s416
          %s418 = sand.u32 %s56, 1
          %s419 = smul.addr %s418, 8
          %s420 = scalar_lea.vmem [#allocation8], %s419
          %s421 = smul.u32 2, %s40
          %s423 = ssub.s32 128, 128
          %424 = vsyncadd %s417, %s423
          %s425 = smul.addr %s39, 4
          %s426 = sadd.s32 %s421, %s425
          %s427 = smul.addr %s426, 64
          %s428 = scalar_lea.hbm %s0, %s427
          %s429 = sshll.u32 %s420, 4
          %s430 = int_to_ptr.vmem [resolvable:$true] %s429
          %435 = dma.hbm_to_vmem [thread:$0]  %s428, 128, %s430, %s417, 64, 64, 4
        $region52: #{tpu_custom_call.1} parent=47 // pred_fallthru
          _
        // Predicated region
        $region53: #{tpu_custom_call.1} parent=47 // pred_check
          %p436 = pneg %p92
        $region54: #{tpu_custom_call.1} parent=47 // pred_check_branch
          %438 = sbr.rel (%p436) target = $region56
        $region55: #{tpu_custom_call.1} parent=47 // pred_region
          %s439 = sand.u32 %s32, 1
          %s440 = scalar_lea.sflag [#allocation12], %s439
          %s441 = sand.u32 %s82, 1
          %s442 = smul.addr %s441, 4
          %s443 = scalar_lea.vmem [#allocation11], %s442
          %s445 = ssub.s32 64, 64
          %446 = vsyncadd %s440, %s445
          %s447 = smul.addr %s39, 64
          %s448 = scalar_lea.hbm %s1, %s447
          %s450 = sshll.u32 %s443, 4
          %s451 = int_to_ptr.vmem [resolvable:$true] %s450
          %453 = dma.hbm_to_vmem [thread:$0]  %s448, 64, %s451, %s440
        $region56: #{tpu_custom_call.1} parent=47 // pred_fallthru
          _
      $region48: #{tpu_custom_call.1} parent=5 // pred_fallthru
        _
      %p454 = scmp.le.s32.totalorder 1, %s32
      %p455 = scmp.lt.s32.totalorder %s32, 5
      %p456 = pnand %p454, %p455
      %p457 = pneg %p456
      // Predicated region
      $region57: #{tpu_custom_call.1} parent=5 // pred_check
        _
      $region58: #{tpu_custom_call.1} parent=5 // pred_check_branch
        %459 = sbr.rel (%p456) target = $region60
      $region59: #{tpu_custom_call.1} parent=5 // pred_region
        %s460 = ssub.s32 %s32, 1
        %s461 = sand.u32 %s59, 1
        %s462 = scalar_lea.sflag [#allocation9], %s461
        %s463 = sand.u32 %s59, 1
        %s464 = smul.addr %s463, 8
        %s465 = scalar_lea.vmem [#allocation8], %s464
        // Predicated region
        $region61: #{tpu_custom_call.1} parent=59 // pred_check
          %p466 = pneg %p72
        $region62: #{tpu_custom_call.1} parent=59 // pred_check_branch
          %468 = sbr.rel (%p466) target = $region64
        $region63: #{tpu_custom_call.1} parent=59 // pred_region
          %469 = dma.done %s462, 128
        $region64: #{tpu_custom_call.1} parent=59 // pred_fallthru
          _
        %s470 = sand.u32 %s37, 1
        %s471 = scalar_lea.sflag [#allocation12], %s470
        %s472 = sand.u32 %s85, 1
        %s473 = smul.addr %s472, 4
        %s474 = scalar_lea.vmem [#allocation11], %s473
        // Predicated region
        $region65: #{tpu_custom_call.1} parent=59 // pred_check
          %p475 = pneg %p98
        $region66: #{tpu_custom_call.1} parent=59 // pred_check_branch
          %477 = sbr.rel (%p475) target = $region68
        $region67: #{tpu_custom_call.1} parent=59 // pred_region
          %478 = dma.done %s471, 64
        $region68: #{tpu_custom_call.1} parent=59 // pred_fallthru
          _
        // Predicated region
        $region69: #{tpu_custom_call.1} parent=59 // pred_check
          %p479 = pneg %p119
        $region70: #{tpu_custom_call.1} parent=59 // pred_check_branch
          %481 = sbr.rel (%p479) target = $region72
        $region71: #{tpu_custom_call.1} parent=59 // pred_region
          %482 = dma.done [#allocation12], 256
        $region72: #{tpu_custom_call.1} parent=59 // pred_fallthru
          _
        // Predicated region
        $region73: #{tpu_custom_call.1} parent=59 // pred_check
          %p483 = pneg %p140
        $region74: #{tpu_custom_call.1} parent=59 // pred_check_branch
          %485 = sbr.rel (%p483) target = $region76
        $region75: #{tpu_custom_call.1} parent=59 // pred_region
          %486 = dma.done [#allocation15], 256
        $region76: #{tpu_custom_call.1} parent=59 // pred_fallthru
          _
        // Predicated region
        $region77: #{tpu_custom_call.1} parent=59 // pred_check
          %p487 = pneg %p161
        $region78: #{tpu_custom_call.1} parent=59 // pred_check_branch
          %489 = sbr.rel (%p487) target = $region80
        $region79: #{tpu_custom_call.1} parent=59 // pred_region
          %490 = dma.done [#allocation15], 256
        $region80: #{tpu_custom_call.1} parent=59 // pred_fallthru
          _
        // Predicated region
        $region81: #{tpu_custom_call.1} parent=59 // pred_check
          %p491 = pneg %p203
        $region82: #{tpu_custom_call.1} parent=59 // pred_check_branch
          %493 = sbr.rel (%p491) target = $region84
        $region83: #{tpu_custom_call.1} parent=59 // pred_region
          %494 = dma.done [#allocation18], 256
        $region84: #{tpu_custom_call.1} parent=59 // pred_fallthru
          _
        // Predicated region
        $region85: #{tpu_custom_call.1} parent=59 // pred_check
          %p495 = pneg %p245
        $region86: #{tpu_custom_call.1} parent=59 // pred_check_branch
          %497 = sbr.rel (%p495) target = $region88
        $region87: #{tpu_custom_call.1} parent=59 // pred_region
          %498 = dma.done [#allocation18], 256
        $region88: #{tpu_custom_call.1} parent=59 // pred_fallthru
          _
        %s499 = sand.u32 %s59, 1
        %s500 = scalar_lea.sflag [#allocation9], %s499
        %s501 = sand.u32 %s59, 1
        %s502 = smul.addr %s501, 8
        %s503 = scalar_lea.vmem [#allocation8], %s502
        %p504 = pneg %p72
        %p505 = pneg %p69
        %s506 = sand.u32 %s37, 1
        %s507 = scalar_lea.sflag [#allocation12], %s506
        %s508 = sand.u32 %s85, 1
        %s509 = smul.addr %s508, 4
        %s510 = scalar_lea.vmem [#allocation11], %s509
        %p511 = pneg %p98
        %p512 = pneg %p95
        %p513 = pneg %p119
        %p514 = pneg %p116
        %p515 = pneg %p140
        %p516 = pneg %p137
        %p517 = pneg %p161
        %p518 = pneg %p158
        %p519 = pneg %p182
        %p520 = pneg %p179
        %p521 = pneg %p203
        %p522 = pneg %p200
        %p523 = pneg %p224
        %p524 = pneg %p221
        %p525 = pneg %p245
        %p526 = pneg %p242
        %p527 = pneg %p266
        %p528 = pneg %p263
        %p529 = pneg %p294
        %p530 = pneg %p291
        %s531 = sand.u32 %s281, 1
        %s532 = scalar_lea.sflag [#allocation10], %s531
        %s533 = sand.u32 %s281, 1
        %s534 = smul.addr %s533, 16
        %s535 = scalar_lea.vmem [#allocation20], %s534
        %p536 = pneg %p320
        %p537 = pneg %p317
        %s538 = sand.u32 %s307, 1
        %s539 = scalar_lea.sflag [#allocation22], %s538
        %s540 = sand.u32 %s307, 1
        %s541 = smul.addr %s540, 8
        %s542 = scalar_lea.vmem [#allocation21], %s541
        %s543 = smul.u32 2, %s42
        %s544 = smul.u32 2, %s42
        %p547 = scmp.eq.s32.totalorder %s42, 0
        // Predicated region
        $region89: #{tpu_custom_call.1} parent=59 // pred_check
          %p548 = pneg %p547
        $region90: #{tpu_custom_call.1} parent=59 // pred_check_branch
          %550 = sbr.rel (%p548) target = $region92
        $region91: #{tpu_custom_call.1} parent=59 // pred_region
          %v551 = vld [vmem:[%s474] sm:$0xf]
          %v552 = vld [vmem:[#allocation16] sm:$0xf]
          %v553 = vld [vmem:[#allocation16 + $0x4] sm:$0xf]
          %v554 = vld [vmem:[#allocation16 + $0x8] sm:$0xf]
          %v555 = vld [vmem:[#allocation16 + $0xc] sm:$0xf]
          %v560 = vunpack.c.l.b16 %v552
          %v561 = vunpack.c.l.b16 %v553
          %v562 = vunpack.c.l.b16 %v554
          %v563 = vunpack.c.l.b16 %v555
          %v564 = vpack.c.b16 %v561, %v560
          %v565 = vpack.c.b16 %v563, %v562
          %vm568 = vcmask 261120
          %v570 = vsel %vm568, %v551, 0
          %572 = vmatprep.subr.bf16.mxu0 0
          %573 = vmatpush1.bf16.msra.mxu0 %v564
          %574 = vmatprep.subr.bf16.mxu0 0
          %575 = vmatpush1.bf16.msra.mxu0 %v565
          %576 = vmatprep.subr.bf16.mxu0 0
          %577 = vmatpush1.bf16.msra.mxu0 0
          %578 = vmatprep.subr.bf16.mxu0 0
          %579 = vmatpush1.bf16.msra.mxu0 0
          %580 = vmatprep.subr.bf16.mxu0 0
          %581 = vmatpush1.bf16.msra.mxu0 0
          %582 = vmatprep.subr.bf16.mxu0 0
          %583 = vmatpush1.bf16.msra.mxu0 0
          %584 = vmatprep.subr.bf16.mxu0 0
          %585 = vmatpush1.bf16.msra.mxu0 0
          %586 = vmatprep.subr.bf16.mxu0 0
          %587 = vmatpush1.bf16.msra.mxu0 0
          %588 = vmatprep.subr.bf16.mxu0 0
          %589 = vmatpush1.bf16.msra.mxu0 0
          %590 = vmatprep.subr.bf16.mxu0 0
          %591 = vmatpush1.bf16.msra.mxu0 0
          %592 = vmatprep.subr.bf16.mxu0 0
          %593 = vmatpush1.bf16.msra.mxu0 0
          %594 = vmatprep.subr.bf16.mxu0 0
          %595 = vmatpush1.bf16.msra.mxu0 0
          %596 = vmatprep.subr.bf16.mxu0 0
          %597 = vmatpush1.bf16.msra.mxu0 0
          %598 = vmatprep.subr.bf16.mxu0 0
          %599 = vmatpush1.bf16.msra.mxu0 0
          %600 = vmatprep.subr.bf16.mxu0 0
          %601 = vmatpush1.bf16.msra.mxu0 0
          %602 = vmatprep.subr.bf16.mxu0 0
          %603 = vmatpush1.bf16.msra.mxu0 0
          %604 = vmatprep.mubr.bf16.mxu0 0
          %605 = vmatmul.mubr.bf16.gmra.mrb[0].mxu0 %v570
          %v606 = vpop.f32.mrb[0].mxu0
          %v607 = vadd.f32 0.0, %v606
          %v608 = vpop.f32.mrb[0].mxu0
          %v609 = vpop.f32.mrb[0].mxu0
          %v610 = vpop.f32.mrb[0].mxu0
          %611 = vdwg.mxu0
          %v612 = vpack.c.bf16 %v607, %v607
          %vm613 = vcmask 257024
          %614 = vst.msk [vmem:[#allocation2] sm:$0xf] %vm613, %v612
          %v615 = vld [vmem:[%s5] sm:$0xf]
          %v616 = vld [vmem:[%s5 + $0x4] sm:$0xf]
          %v617 = vld [vmem:[%s5 + $0x8] sm:$0xf]
          %v618 = vld [vmem:[%s5 + $0xc] sm:$0xf]
          %v623 = vunpack.c.l.b16 %v615
          %v624 = vunpack.c.l.b16 %v616
          %v625 = vunpack.c.l.b16 %v617
          %v626 = vunpack.c.l.b16 %v618
          %v627 = vpack.c.b16 %v624, %v623
          %v628 = vpack.c.b16 %v626, %v625
          %631 = vmatprep.subr.bf16.mxu0 0
          %632 = vmatpush1.bf16.msra.mxu0 %v627
          %633 = vmatprep.subr.bf16.mxu0 0
          %634 = vmatpush1.bf16.msra.mxu0 %v628
          %635 = vmatprep.subr.bf16.mxu0 0
          %636 = vmatpush1.bf16.msra.mxu0 0
          %637 = vmatprep.subr.bf16.mxu0 0
          %638 = vmatpush1.bf16.msra.mxu0 0
          %639 = vmatprep.subr.bf16.mxu0 0
          %640 = vmatpush1.bf16.msra.mxu0 0
          %641 = vmatprep.subr.bf16.mxu0 0
          %642 = vmatpush1.bf16.msra.mxu0 0
          %643 = vmatprep.subr.bf16.mxu0 0
          %644 = vmatpush1.bf16.msra.mxu0 0
          %645 = vmatprep.subr.bf16.mxu0 0
          %646 = vmatpush1.bf16.msra.mxu0 0
          %647 = vmatprep.subr.bf16.mxu0 0
          %648 = vmatpush1.bf16.msra.mxu0 0
          %649 = vmatprep.subr.bf16.mxu0 0
          %650 = vmatpush1.bf16.msra.mxu0 0
          %651 = vmatprep.subr.bf16.mxu0 0
          %652 = vmatpush1.bf16.msra.mxu0 0
          %653 = vmatprep.subr.bf16.mxu0 0
          %654 = vmatpush1.bf16.msra.mxu0 0
          %655 = vmatprep.subr.bf16.mxu0 0
          %656 = vmatpush1.bf16.msra.mxu0 0
          %657 = vmatprep.subr.bf16.mxu0 0
          %658 = vmatpush1.bf16.msra.mxu0 0
          %659 = vmatprep.subr.bf16.mxu0 0
          %660 = vmatpush1.bf16.msra.mxu0 0
          %661 = vmatprep.subr.bf16.mxu0 0
          %662 = vmatpush1.bf16.msra.mxu0 0
          %663 = vmatprep.mubr.bf16.mxu0 0
          %664 = vmatmul.mubr.bf16.gmra.mrb[0].mxu0 %v570
          %v665 = vpop.f32.mrb[0].mxu0
          %v666 = vadd.f32 0.0, %v665
          %v667 = vpop.f32.mrb[0].mxu0
          %v668 = vpop.f32.mrb[0].mxu0
          %v669 = vpop.f32.mrb[0].mxu0
          %670 = vdwg.mxu0
          %v671 = vpack.c.bf16 %v666, %v666
          %672 = vst.msk [vmem:[#allocation3] sm:$0xf] %vm613, %v671
          %673 = vst.msk [vmem:[#allocation5] sm:$0xff] %vm568, 0.0
          %674 = vst.msk [vmem:[#allocation6] sm:$0xff] %vm568, 0.0
          %vm675 = vcmask 8192
          %676 = vst.msk [vmem:[#allocation7] sm:$0x1] %vm675, -1e+30
        $region92: #{tpu_custom_call.1} parent=59 // pred_fallthru
          _
        %v677 = vld [vmem:[%s465] sm:$0xf]
        %v678 = vld [vmem:[%s465 + $0x4] sm:$0xf]
        %v679 = vld [vmem:[#allocation13] sm:$0xf]
        %v680 = vld [vmem:[#allocation13 + $0x4] sm:$0xf]
        %v681 = vld [vmem:[#allocation13 + $0x8] sm:$0xf]
        %v682 = vld [vmem:[#allocation13 + $0xc] sm:$0xf]
        %v685 = vunpack.c.l.b16 %v677
        %v686 = vunpack.c.l.b16 %v678
        %v687 = vpack.c.b16 %v686, %v685
        %v692 = vunpack.c.l.b16 %v679
        %v693 = vunpack.c.l.b16 %v680
        %v694 = vunpack.c.l.b16 %v681
        %v695 = vunpack.c.l.b16 %v682
        %v696 = vpack.c.b16 %v693, %v692
        %v697 = vpack.c.b16 %v695, %v694
        %vm700 = vcmask 261120
        %v702 = vsel %vm700, %v687, 0
        %704 = vmatprep.subr.bf16.mxu0 0
        %705 = vmatpush1.bf16.msra.mxu0 %v696
        %706 = vmatprep.subr.bf16.mxu0 0
        %707 = vmatpush1.bf16.msra.mxu0 %v697
        %708 = vmatprep.subr.bf16.mxu0 0
        %709 = vmatpush1.bf16.msra.mxu0 0
        %710 = vmatprep.subr.bf16.mxu0 0
        %711 = vmatpush1.bf16.msra.mxu0 0
        %712 = vmatprep.subr.bf16.mxu0 0
        %713 = vmatpush1.bf16.msra.mxu0 0
        %714 = vmatprep.subr.bf16.mxu0 0
        %715 = vmatpush1.bf16.msra.mxu0 0
        %716 = vmatprep.subr.bf16.mxu0 0
        %717 = vmatpush1.bf16.msra.mxu0 0
        %718 = vmatprep.subr.bf16.mxu0 0
        %719 = vmatpush1.bf16.msra.mxu0 0
        %720 = vmatprep.subr.bf16.mxu0 0
        %721 = vmatpush1.bf16.msra.mxu0 0
        %722 = vmatprep.subr.bf16.mxu0 0
        %723 = vmatpush1.bf16.msra.mxu0 0
        %724 = vmatprep.subr.bf16.mxu0 0
        %725 = vmatpush1.bf16.msra.mxu0 0
        %726 = vmatprep.subr.bf16.mxu0 0
        %727 = vmatpush1.bf16.msra.mxu0 0
        %728 = vmatprep.subr.bf16.mxu0 0
        %729 = vmatpush1.bf16.msra.mxu0 0
        %730 = vmatprep.subr.bf16.mxu0 0
        %731 = vmatpush1.bf16.msra.mxu0 0
        %732 = vmatprep.subr.bf16.mxu0 0
        %733 = vmatpush1.bf16.msra.mxu0 0
        %734 = vmatprep.subr.bf16.mxu0 0
        %735 = vmatpush1.bf16.msra.mxu0 0
        %736 = vmatprep.mubr.bf16.mxu0 0
        %737 = vmatmul.mubr.bf16.gmra.mrb[0].mxu0 %v702
        %v738 = vpop.f32.mrb[0].mxu0
        %v739 = vadd.f32 0.0, %v738
        %v740 = vpop.f32.mrb[0].mxu0
        %v741 = vpop.f32.mrb[0].mxu0
        %v742 = vadd.f32 0.0, %v741
        %v743 = vpop.f32.mrb[0].mxu0
        %744 = vdwg.mxu0
        %v745 = vpack.c.bf16 %v742, %v739
        %v746 = vld [vmem:[#allocation14] sm:$0xf]
        %v747 = vld [vmem:[#allocation14 + $0x4] sm:$0xf]
        %v748 = vld [vmem:[#allocation14 + $0x8] sm:$0xf]
        %v749 = vld [vmem:[#allocation14 + $0xc] sm:$0xf]
        %v754 = vunpack.c.l.b16 %v746
        %v755 = vunpack.c.l.b16 %v747
        %v756 = vunpack.c.l.b16 %v748
        %v757 = vunpack.c.l.b16 %v749
        %v758 = vpack.c.b16 %v755, %v754
        %v759 = vpack.c.b16 %v757, %v756
        %762 = vmatprep.subr.bf16.mxu0 0
        %763 = vmatpush1.bf16.msra.mxu0 %v758
        %764 = vmatprep.subr.bf16.mxu0 0
        %765 = vmatpush1.bf16.msra.mxu0 %v759
        %766 = vmatprep.subr.bf16.mxu0 0
        %767 = vmatpush1.bf16.msra.mxu0 0
        %768 = vmatprep.subr.bf16.mxu0 0
        %769 = vmatpush1.bf16.msra.mxu0 0
        %770 = vmatprep.subr.bf16.mxu0 0
        %771 = vmatpush1.bf16.msra.mxu0 0
        %772 = vmatprep.subr.bf16.mxu0 0
        %773 = vmatpush1.bf16.msra.mxu0 0
        %774 = vmatprep.subr.bf16.mxu0 0
        %775 = vmatpush1.bf16.msra.mxu0 0
        %776 = vmatprep.subr.bf16.mxu0 0
        %777 = vmatpush1.bf16.msra.mxu0 0
        %778 = vmatprep.subr.bf16.mxu0 0
        %779 = vmatpush1.bf16.msra.mxu0 0
        %780 = vmatprep.subr.bf16.mxu0 0
        %781 = vmatpush1.bf16.msra.mxu0 0
        %782 = vmatprep.subr.bf16.mxu0 0
        %783 = vmatpush1.bf16.msra.mxu0 0
        %784 = vmatprep.subr.bf16.mxu0 0
        %785 = vmatpush1.bf16.msra.mxu0 0
        %786 = vmatprep.subr.bf16.mxu0 0
        %787 = vmatpush1.bf16.msra.mxu0 0
        %788 = vmatprep.subr.bf16.mxu0 0
        %789 = vmatpush1.bf16.msra.mxu0 0
        %790 = vmatprep.subr.bf16.mxu0 0
        %791 = vmatpush1.bf16.msra.mxu0 0
        %792 = vmatprep.subr.bf16.mxu0 0
        %793 = vmatpush1.bf16.msra.mxu0 0
        %794 = vmatprep.mubr.bf16.mxu0 0
        %795 = vmatmul.mubr.bf16.gmra.mrb[0].mxu0 %v702
        %v796 = vpop.f32.mrb[0].mxu0
        %v797 = vadd.f32 0.0, %v796
        %v798 = vpop.f32.mrb[0].mxu0
        %v799 = vpop.f32.mrb[0].mxu0
        %v800 = vadd.f32 0.0, %v799
        %v801 = vpop.f32.mrb[0].mxu0
        %802 = vdwg.mxu0
        %v803 = vpack.c.bf16 %v800, %v797
        %v804 = vld [vmem:[#allocation2] sm:$0xf]
        %v805 = vld [vmem:[#allocation3] sm:$0xf]
        %vm806 = vcmask 130048
        %v808 = vsel %vm806, %v745, 0
        %v811 = vsel %vm806, %v804, 0
        %813 = vmatprep.subr.bf16.mxu0 0
        %814 = vmatpush1.bf16.xpose.msra.mxu0 %v811
        %815 = vmatprep.subr.bf16.mxu0 0
        %816 = vmatpush1.bf16.xpose.msra.mxu0 0
        %817 = vmatprep.subr.bf16.mxu0 0
        %818 = vmatpush1.bf16.xpose.msra.mxu0 0
        %819 = vmatprep.subr.bf16.mxu0 0
        %820 = vmatpush1.bf16.xpose.msra.mxu0 0
        %821 = vmatprep.subr.bf16.mxu0 0
        %822 = vmatpush1.bf16.xpose.msra.mxu0 0
        %823 = vmatprep.subr.bf16.mxu0 0
        %824 = vmatpush1.bf16.xpose.msra.mxu0 0
        %825 = vmatprep.subr.bf16.mxu0 0
        %826 = vmatpush1.bf16.xpose.msra.mxu0 0
        %827 = vmatprep.subr.bf16.mxu0 0
        %828 = vmatpush1.bf16.xpose.msra.mxu0 0
        %829 = vmatprep.subr.bf16.mxu0 0
        %830 = vmatpush1.bf16.xpose.msra.mxu0 0
        %831 = vmatprep.subr.bf16.mxu0 0
        %832 = vmatpush1.bf16.xpose.msra.mxu0 0
        %833 = vmatprep.subr.bf16.mxu0 0
        %834 = vmatpush1.bf16.xpose.msra.mxu0 0
        %835 = vmatprep.subr.bf16.mxu0 0
        %836 = vmatpush1.bf16.xpose.msra.mxu0 0
        %837 = vmatprep.subr.bf16.mxu0 0
        %838 = vmatpush1.bf16.xpose.msra.mxu0 0
        %839 = vmatprep.subr.bf16.mxu0 0
        %840 = vmatpush1.bf16.xpose.msra.mxu0 0
        %841 = vmatprep.subr.bf16.mxu0 0
        %842 = vmatpush1.bf16.xpose.msra.mxu0 0
        %843 = vmatprep.subr.bf16.mxu0 0
        %844 = vmatpush1.bf16.xpose.msra.mxu0 0
        %845 = vmatprep.mubr.bf16.mxu0 0
        %846 = vmatmul.mubr.bf16.gmra.mrb[0].mxu0 %v808
        %v847 = vpop.f32.mrb[0].mxu0
        %v848 = vadd.f32 0.0, %v847
        %v849 = vpop.f32.mrb[0].mxu0
        %v850 = vpop.f32.mrb[0].mxu0
        %v851 = vadd.f32 0.0, %v850
        %v852 = vpop.f32.mrb[0].mxu0
        %853 = vdwg.mxu0
        %vm854 = vcmask 64512
        %v855 = vsel %vm854, %v848, -inf
        %856 = vmax.xlane.f32.xlu0 %v855
        %v857 = vpop.xlane.xlu0 %856
        %v858 = vsel %vm854, %v851, -inf
        %859 = vmax.xlane.f32.xlu0 %v858
        %v860 = vpop.xlane.xlu0 %859
        %v861 = vmax.f32 %v857, %v860
        %v862 = vrot.slane %v861, 4
        %v863 = vmax.f32 %v861, %v862
        %v864 = vrot.slane %v863, 2
        %v865 = vmax.f32 %v863, %v864
        %v866 = vrot.slane %v865, 1
        %v867 = vmax.f32 %v865, %v866
        %v868 = vld [vmem:[#allocation7] sm:$0x1]
        %v869 = vmax.f32 %v868, %v867
        %vm870 = vcmask 0
        %871 = vst.msk [vmem:[#allocation7] sm:$0x1] %vm870, %v869
        %v872 = vsub.f32 %v868, %v869
        %v873 = vmul.f32 %v872, 1.442695
        %v874 = vpow.pop %v873
        %v876 = vlaneseq
        %v877 = vshrl.u32 %v876, 7
        %v878 = vsub.s32 0, %v877
        %v879 = vrot.slane %v869, %v878
        %880 = vset.pattern.permute.xlu0 0
        %881 = vperm.xlu0 %880, %v879
        %v882 = vpop.permute.xlu0 %881
        %v884 = vsub.f32 %v848, %v882
        %v885 = vsub.f32 %v851, %v882
        %v886 = vmul.f32 %v884, 1.442695
        %v887 = vpow.pop %v886
        %v888 = vmul.f32 %v885, 1.442695
        %v889 = vpow.pop %v888
        %v890 = vpack.c.bf16 %v889, %v887
        %v892 = vsel %vm854, %v890, 0
        %vm894 = vcmask 1043456
        %v896 = vsel %vm894, %v805, 0
        %898 = vmatprep.subr.bf16.mxu0 0
        %899 = vmatpush1.bf16.msra.mxu0 %v896
        %900 = vmatprep.subr.bf16.mxu0 0
        %901 = vmatpush1.bf16.msra.mxu0 0
        %902 = vmatprep.subr.bf16.mxu0 0
        %903 = vmatpush1.bf16.msra.mxu0 0
        %904 = vmatprep.subr.bf16.mxu0 0
        %905 = vmatpush1.bf16.msra.mxu0 0
        %906 = vmatprep.subr.bf16.mxu0 0
        %907 = vmatpush1.bf16.msra.mxu0 0
        %908 = vmatprep.subr.bf16.mxu0 0
        %909 = vmatpush1.bf16.msra.mxu0 0
        %910 = vmatprep.subr.bf16.mxu0 0
        %911 = vmatpush1.bf16.msra.mxu0 0
        %912 = vmatprep.subr.bf16.mxu0 0
        %913 = vmatpush1.bf16.msra.mxu0 0
        %914 = vmatprep.subr.bf16.mxu0 0
        %915 = vmatpush1.bf16.msra.mxu0 0
        %916 = vmatprep.subr.bf16.mxu0 0
        %917 = vmatpush1.bf16.msra.mxu0 0
        %918 = vmatprep.subr.bf16.mxu0 0
        %919 = vmatpush1.bf16.msra.mxu0 0
        %920 = vmatprep.subr.bf16.mxu0 0
        %921 = vmatpush1.bf16.msra.mxu0 0
        %922 = vmatprep.subr.bf16.mxu0 0
        %923 = vmatpush1.bf16.msra.mxu0 0
        %924 = vmatprep.subr.bf16.mxu0 0
        %925 = vmatpush1.bf16.msra.mxu0 0
        %926 = vmatprep.subr.bf16.mxu0 0
        %927 = vmatpush1.bf16.msra.mxu0 0
        %928 = vmatprep.subr.bf16.mxu0 0
        %929 = vmatpush1.bf16.msra.mxu0 0
        %930 = vmatprep.mubr.bf16.mxu0 0
        %931 = vmatmul.mubr.bf16.gmra.mrb[0].mxu0 %v892
        %v932 = vpop.f32.mrb[0].mxu0
        %v933 = vadd.f32 0.0, %v932
        %v934 = vpop.f32.mrb[0].mxu0
        %v935 = vpop.f32.mrb[0].mxu0
        %v936 = vadd.f32 0.0, %v935
        %v937 = vpop.f32.mrb[0].mxu0
        %938 = vdwg.mxu0
        %v940 = vsel %vm894, 1065369472, 0
        %942 = vmatprep.subr.bf16.mxu0 0
        %943 = vmatpush1.bf16.msra.mxu0 %v940
        %944 = vmatprep.subr.bf16.mxu0 0
        %945 = vmatpush1.bf16.msra.mxu0 0
        %946 = vmatprep.subr.bf16.mxu0 0
        %947 = vmatpush1.bf16.msra.mxu0 0
        %948 = vmatprep.subr.bf16.mxu0 0
        %949 = vmatpush1.bf16.msra.mxu0 0
        %950 = vmatprep.subr.bf16.mxu0 0
        %951 = vmatpush1.bf16.msra.mxu0 0
        %952 = vmatprep.subr.bf16.mxu0 0
        %953 = vmatpush1.bf16.msra.mxu0 0
        %954 = vmatprep.subr.bf16.mxu0 0
        %955 = vmatpush1.bf16.msra.mxu0 0
        %956 = vmatprep.subr.bf16.mxu0 0
        %957 = vmatpush1.bf16.msra.mxu0 0
        %958 = vmatprep.subr.bf16.mxu0 0
        %959 = vmatpush1.bf16.msra.mxu0 0
        %960 = vmatprep.subr.bf16.mxu0 0
        %961 = vmatpush1.bf16.msra.mxu0 0
        %962 = vmatprep.subr.bf16.mxu0 0
        %963 = vmatpush1.bf16.msra.mxu0 0
        %964 = vmatprep.subr.bf16.mxu0 0
        %965 = vmatpush1.bf16.msra.mxu0 0
        %966 = vmatprep.subr.bf16.mxu0 0
        %967 = vmatpush1.bf16.msra.mxu0 0
        %968 = vmatprep.subr.bf16.mxu0 0
        %969 = vmatpush1.bf16.msra.mxu0 0
        %970 = vmatprep.subr.bf16.mxu0 0
        %971 = vmatpush1.bf16.msra.mxu0 0
        %972 = vmatprep.subr.bf16.mxu0 0
        %973 = vmatpush1.bf16.msra.mxu0 0
        %974 = vmatprep.mubr.bf16.mxu0 0
        %975 = vmatmul.mubr.bf16.gmra.mrb[0].mxu0 %v892
        %v976 = vpop.f32.mrb[0].mxu0
        %v977 = vadd.f32 0.0, %v976
        %v978 = vpop.f32.mrb[0].mxu0
        %v979 = vpop.f32.mrb[0].mxu0
        %v980 = vadd.f32 0.0, %v979
        %v981 = vpop.f32.mrb[0].mxu0
        %982 = vdwg.mxu0
        %v983 = vmax.f32 %v977, 1e-30
        %v984 = vmax.f32 %v980, 1e-30
        %v985 = vrcp.pop %v983
        %v986 = vrcp.pop %v984
        %988 = vset.pattern.permute.xlu0 0
        %989 = vperm.xlu0 %988, %v985
        %v990 = vpop.permute.xlu0 %989
        %993 = vset.pattern.permute.xlu0 0
        %994 = vperm.xlu0 %993, %v986
        %v995 = vpop.permute.xlu0 %994
        %v997 = vmul.f32 %v933, %v990
        %v998 = vmul.f32 %v936, %v995
        %v999 = vpack.c.bf16 %v998, %v997
        %1000 = vst.msk [vmem:[#allocation4] sm:$0xff] %vm806, %v999
        %1001 = vxpose.xlu0.c.b16.start [1/8] %v890, 128
        %1002 = vxpose.xlu0.c.b16.cont [2/8] 0, 128
        %1003 = vxpose.xlu0.c.b16.cont [3/8] 0, 128
        %1004 = vxpose.xlu0.c.b16.cont [4/8] 0, 128
        %1005 = vxpose.xlu0.c.b16.cont [5/8] 0, 128
        %1006 = vxpose.xlu0.c.b16.cont [6/8] 0, 128
        %1007 = vxpose.xlu0.c.b16.cont [7/8] 0, 128
        %1008 = vxpose.xlu0.c.b16.end [8/8] 0, 128
        %v1009 = vpop.trf.xlu0
        %v1010 = vpop.trf.xlu0
        %v1011 = vpop.trf.xlu0
        %v1012 = vpop.trf.xlu0
        %v1013 = vpop.trf.xlu0
        %v1014 = vpop.trf.xlu0
        %v1015 = vpop.trf.xlu0
        %v1016 = vpop.trf.xlu0
        %v1018 = vsel %vm806, %v1009, 0
        %1020 = vmatprep.subr.bf16.mxu0 0
        %1021 = vmatpush1.bf16.msra.mxu0 %v803
        %1022 = vmatprep.subr.bf16.mxu0 0
        %1023 = vmatpush1.bf16.msra.mxu0 0
        %1024 = vmatprep.subr.bf16.mxu0 0
        %1025 = vmatpush1.bf16.msra.mxu0 0
        %1026 = vmatprep.subr.bf16.mxu0 0
        %1027 = vmatpush1.bf16.msra.mxu0 0
        %1028 = vmatprep.subr.bf16.mxu0 0
        %1029 = vmatpush1.bf16.msra.mxu0 0
        %1030 = vmatprep.subr.bf16.mxu0 0
        %1031 = vmatpush1.bf16.msra.mxu0 0
        %1032 = vmatprep.subr.bf16.mxu0 0
        %1033 = vmatpush1.bf16.msra.mxu0 0
        %1034 = vmatprep.subr.bf16.mxu0 0
        %1035 = vmatpush1.bf16.msra.mxu0 0
        %1036 = vmatprep.subr.bf16.mxu0 0
        %1037 = vmatpush1.bf16.msra.mxu0 0
        %1038 = vmatprep.subr.bf16.mxu0 0
        %1039 = vmatpush1.bf16.msra.mxu0 0
        %1040 = vmatprep.subr.bf16.mxu0 0
        %1041 = vmatpush1.bf16.msra.mxu0 0
        %1042 = vmatprep.subr.bf16.mxu0 0
        %1043 = vmatpush1.bf16.msra.mxu0 0
        %1044 = vmatprep.subr.bf16.mxu0 0
        %1045 = vmatpush1.bf16.msra.mxu0 0
        %1046 = vmatprep.subr.bf16.mxu0 0
        %1047 = vmatpush1.bf16.msra.mxu0 0
        %1048 = vmatprep.subr.bf16.mxu0 0
        %1049 = vmatpush1.bf16.msra.mxu0 0
        %1050 = vmatprep.subr.bf16.mxu0 0
        %1051 = vmatpush1.bf16.msra.mxu0 0
        %1052 = vmatprep.mubr.bf16.mxu0 0
        %1053 = vmatmul.mubr.bf16.gmra.mrb[0].mxu0 %v1018
        %v1054 = vpop.f32.mrb[0].mxu0
        %v1055 = vadd.f32 0.0, %v1054
        %v1056 = vpop.f32.mrb[0].mxu0
        %v1057 = vpop.f32.mrb[0].mxu0
        %v1058 = vpop.f32.mrb[0].mxu0
        %1059 = vdwg.mxu0
        %1060 = vmatprep.subr.bf16.mxu0 0
        %1061 = vmatpush1.bf16.msra.mxu0 1065369472
        %1062 = vmatprep.subr.bf16.mxu0 0
        %1063 = vmatpush1.bf16.msra.mxu0 0
        %1064 = vmatprep.subr.bf16.mxu0 0
        %1065 = vmatpush1.bf16.msra.mxu0 0
        %1066 = vmatprep.subr.bf16.mxu0 0
        %1067 = vmatpush1.bf16.msra.mxu0 0
        %1068 = vmatprep.subr.bf16.mxu0 0
        %1069 = vmatpush1.bf16.msra.mxu0 0
        %1070 = vmatprep.subr.bf16.mxu0 0
        %1071 = vmatpush1.bf16.msra.mxu0 0
        %1072 = vmatprep.subr.bf16.mxu0 0
        %1073 = vmatpush1.bf16.msra.mxu0 0
        %1074 = vmatprep.subr.bf16.mxu0 0
        %1075 = vmatpush1.bf16.msra.mxu0 0
        %1076 = vmatprep.subr.bf16.mxu0 0
        %1077 = vmatpush1.bf16.msra.mxu0 0
        %1078 = vmatprep.subr.bf16.mxu0 0
        %1079 = vmatpush1.bf16.msra.mxu0 0
        %1080 = vmatprep.subr.bf16.mxu0 0
        %1081 = vmatpush1.bf16.msra.mxu0 0
        %1082 = vmatprep.subr.bf16.mxu0 0
        %1083 = vmatpush1.bf16.msra.mxu0 0
        %1084 = vmatprep.subr.bf16.mxu0 0
        %1085 = vmatpush1.bf16.msra.mxu0 0
        %1086 = vmatprep.subr.bf16.mxu0 0
        %1087 = vmatpush1.bf16.msra.mxu0 0
        %1088 = vmatprep.subr.bf16.mxu0 0
        %1089 = vmatpush1.bf16.msra.mxu0 0
        %1090 = vmatprep.subr.bf16.mxu0 0
        %1091 = vmatpush1.bf16.msra.mxu0 0
        %1092 = vmatprep.mubr.bf16.mxu0 0
        %1093 = vmatmul.mubr.bf16.gmra.mrb[0].mxu0 %v1018
        %v1094 = vpop.f32.mrb[0].mxu0
        %v1095 = vadd.f32 0.0, %v1094
        %v1096 = vpop.f32.mrb[0].mxu0
        %v1097 = vpop.f32.mrb[0].mxu0
        %v1098 = vpop.f32.mrb[0].mxu0
        %1099 = vdwg.mxu0
        %v1100 = vld [vmem:[#allocation5] sm:$0xff]
        %v1102 = vlaneseq
        %v1103 = vshrl.u32 %v1102, 7
        %v1104 = vsub.s32 0, %v1103
        %v1105 = vrot.slane %v874, %v1104
        %1106 = vset.pattern.permute.xlu0 0
        %1107 = vperm.xlu0 %1106, %v1105
        %v1108 = vpop.permute.xlu0 %1107
        %v1110 = vmul.f32 %v1100, %v1108
        %v1111 = vadd.f32 %v1110, %v1055
        %1112 = vst.msk [vmem:[#allocation5] sm:$0xff] %vm806, %v1111
        %v1113 = vld [vmem:[#allocation6] sm:$0xff]
        %v1114 = vmul.f32 %v1113, %v1108
        %1116 = vset.pattern.permute.xlu0 0
        %1117 = vperm.xlu0 %1116, %v1095
        %v1118 = vpop.permute.xlu0 %1117
        %v1120 = vadd.f32 %v1114, %v1118
        %1121 = vst.msk [vmem:[#allocation6] sm:$0xff] %vm806, %v1120
        %v1122 = vld [vmem:[#allocation2] sm:$0xf]
        %v1123 = vld [vmem:[#allocation3] sm:$0xf]
        %1125 = vrot.lane.b32.xlu0 %v745, 112
        %v1126 = vpop.permute.xlu0 %1125
        %v1128 = vunpack.c.l.b16 %v1122
        %v1129 = vpack.c.b16 %v1128, %v1128
        %1130 = vrot.lane.b32.xlu0 %v1129, 112
        %v1131 = vpop.permute.xlu0 %1130
        %v1133 = vsel %vm806, %v1126, 0
        %v1136 = vsel %vm806, %v1131, 0
        %1138 = vmatprep.subr.bf16.mxu0 0
        %1139 = vmatpush1.bf16.xpose.msra.mxu0 %v1136
        %1140 = vmatprep.subr.bf16.mxu0 0
        %1141 = vmatpush1.bf16.xpose.msra.mxu0 0
        %1142 = vmatprep.subr.bf16.mxu0 0
        %1143 = vmatpush1.bf16.xpose.msra.mxu0 0
        %1144 = vmatprep.subr.bf16.mxu0 0
        %1145 = vmatpush1.bf16.xpose.msra.mxu0 0
        %1146 = vmatprep.subr.bf16.mxu0 0
        %1147 = vmatpush1.bf16.xpose.msra.mxu0 0
        %1148 = vmatprep.subr.bf16.mxu0 0
        %1149 = vmatpush1.bf16.xpose.msra.mxu0 0
        %1150 = vmatprep.subr.bf16.mxu0 0
        %1151 = vmatpush1.bf16.xpose.msra.mxu0 0
        %1152 = vmatprep.subr.bf16.mxu0 0
        %1153 = vmatpush1.bf16.xpose.msra.mxu0 0
        %1154 = vmatprep.subr.bf16.mxu0 0
        %1155 = vmatpush1.bf16.xpose.msra.mxu0 0
        %1156 = vmatprep.subr.bf16.mxu0 0
        %1157 = vmatpush1.bf16.xpose.msra.mxu0 0
        %1158 = vmatprep.subr.bf16.mxu0 0
        %1159 = vmatpush1.bf16.xpose.msra.mxu0 0
        %1160 = vmatprep.subr.bf16.mxu0 0
        %1161 = vmatpush1.bf16.xpose.msra.mxu0 0
        %1162 = vmatprep.subr.bf16.mxu0 0
        %1163 = vmatpush1.bf16.xpose.msra.mxu0 0
        %1164 = vmatprep.subr.bf16.mxu0 0
        %1165 = vmatpush1.bf16.xpose.msra.mxu0 0
        %1166 = vmatprep.subr.bf16.mxu0 0
        %1167 = vmatpush1.bf16.xpose.msra.mxu0 0
        %1168 = vmatprep.subr.bf16.mxu0 0
        %1169 = vmatpush1.bf16.xpose.msra.mxu0 0
        %1170 = vmatprep.mubr.bf16.mxu0 0
        %1171 = vmatmul.mubr.bf16.gmra.mrb[0].mxu0 %v1133
        %v1172 = vpop.f32.mrb[0].mxu0
        %v1173 = vadd.f32 0.0, %v1172
        %v1174 = vpop.f32.mrb[0].mxu0
        %v1175 = vpop.f32.mrb[0].mxu0
        %v1176 = vadd.f32 0.0, %v1175
        %v1177 = vpop.f32.mrb[0].mxu0
        %1178 = vdwg.mxu0
        %v1179 = vsel %vm854, %v1173, -inf
        %1180 = vmax.xlane.f32.xlu0 %v1179
        %v1181 = vpop.xlane.xlu0 %1180
        %v1182 = vsel %vm854, %v1176, -inf
        %1183 = vmax.xlane.f32.xlu0 %v1182
        %v1184 = vpop.xlane.xlu0 %1183
        %v1185 = vmax.f32 %v1181, %v1184
        %v1186 = vrot.slane %v1185, 4
        %v1187 = vmax.f32 %v1185, %v1186
        %v1188 = vrot.slane %v1187, 2
        %v1189 = vmax.f32 %v1187, %v1188
        %v1190 = vrot.slane %v1189, 1
        %v1191 = vmax.f32 %v1189, %v1190
        %v1192 = vld [vmem:[#allocation7] sm:$0x1]
        %v1193 = vmax.f32 %v1192, %v1191
        %vm1194 = vcmask 8200
        %1195 = vst.msk [vmem:[#allocation7] sm:$0x1] %vm1194, %v1193
        %v1196 = vsub.f32 %v1192, %v1193
        %v1197 = vmul.f32 %v1196, 1.442695
        %v1198 = vpow.pop %v1197
        %v1200 = vlaneseq
        %v1201 = vshrl.u32 %v1200, 7
        %v1202 = vsub.s32 0, %v1201
        %v1203 = vrot.slane %v1193, %v1202
        %1204 = vset.pattern.permute.xlu0 1
        %1205 = vperm.xlu0 %1204, %v1203
        %v1206 = vpop.permute.xlu0 %1205
        %v1208 = vsub.f32 %v1173, %v1206
        %v1209 = vsub.f32 %v1176, %v1206
        %v1210 = vmul.f32 %v1208, 1.442695
        %v1211 = vpow.pop %v1210
        %v1212 = vmul.f32 %v1209, 1.442695
        %v1213 = vpow.pop %v1212
        %v1214 = vpack.c.bf16 %v1213, %v1211
        %v1216 = vunpack.c.l.b16 %v1123
        %v1217 = vpack.c.b16 %v1216, %v1216
        %1218 = vrot.lane.b32.xlu0 %v1217, 112
        %v1219 = vpop.permute.xlu0 %1218
        %v1221 = vsel %vm854, %v1214, 0
        %v1224 = vsel %vm894, %v1219, 0
        %1226 = vmatprep.subr.bf16.mxu0 0
        %1227 = vmatpush1.bf16.msra.mxu0 %v1224
        %1228 = vmatprep.subr.bf16.mxu0 0
        %1229 = vmatpush1.bf16.msra.mxu0 0
        %1230 = vmatprep.subr.bf16.mxu0 0
        %1231 = vmatpush1.bf16.msra.mxu0 0
        %1232 = vmatprep.subr.bf16.mxu0 0
        %1233 = vmatpush1.bf16.msra.mxu0 0
        %1234 = vmatprep.subr.bf16.mxu0 0
        %1235 = vmatpush1.bf16.msra.mxu0 0
        %1236 = vmatprep.subr.bf16.mxu0 0
        %1237 = vmatpush1.bf16.msra.mxu0 0
        %1238 = vmatprep.subr.bf16.mxu0 0
        %1239 = vmatpush1.bf16.msra.mxu0 0
        %1240 = vmatprep.subr.bf16.mxu0 0
        %1241 = vmatpush1.bf16.msra.mxu0 0
        %1242 = vmatprep.subr.bf16.mxu0 0
        %1243 = vmatpush1.bf16.msra.mxu0 0
        %1244 = vmatprep.subr.bf16.mxu0 0
        %1245 = vmatpush1.bf16.msra.mxu0 0
        %1246 = vmatprep.subr.bf16.mxu0 0
        %1247 = vmatpush1.bf16.msra.mxu0 0
        %1248 = vmatprep.subr.bf16.mxu0 0
        %1249 = vmatpush1.bf16.msra.mxu0 0
        %1250 = vmatprep.subr.bf16.mxu0 0
        %1251 = vmatpush1.bf16.msra.mxu0 0
        %1252 = vmatprep.subr.bf16.mxu0 0
        %1253 = vmatpush1.bf16.msra.mxu0 0
        %1254 = vmatprep.subr.bf16.mxu0 0
        %1255 = vmatpush1.bf16.msra.mxu0 0
        %1256 = vmatprep.subr.bf16.mxu0 0
        %1257 = vmatpush1.bf16.msra.mxu0 0
        %1258 = vmatprep.mubr.bf16.mxu0 0
        %1259 = vmatmul.mubr.bf16.gmra.mrb[0].mxu0 %v1221
        %v1260 = vpop.f32.mrb[0].mxu0
        %v1261 = vadd.f32 0.0, %v1260
        %v1262 = vpop.f32.mrb[0].mxu0
        %v1263 = vpop.f32.mrb[0].mxu0
        %v1264 = vadd.f32 0.0, %v1263
        %v1265 = vpop.f32.mrb[0].mxu0
        %1266 = vdwg.mxu0
        %1267 = vmatprep.subr.bf16.mxu0 0
        %1268 = vmatpush1.bf16.msra.mxu0 %v940
        %1269 = vmatprep.subr.bf16.mxu0 0
        %1270 = vmatpush1.bf16.msra.mxu0 0
        %1271 = vmatprep.subr.bf16.mxu0 0
        %1272 = vmatpush1.bf16.msra.mxu0 0
        %1273 = vmatprep.subr.bf16.mxu0 0
        %1274 = vmatpush1.bf16.msra.mxu0 0
        %1275 = vmatprep.subr.bf16.mxu0 0
        %1276 = vmatpush1.bf16.msra.mxu0 0
        %1277 = vmatprep.subr.bf16.mxu0 0
        %1278 = vmatpush1.bf16.msra.mxu0 0
        %1279 = vmatprep.subr.bf16.mxu0 0
        %1280 = vmatpush1.bf16.msra.mxu0 0
        %1281 = vmatprep.subr.bf16.mxu0 0
        %1282 = vmatpush1.bf16.msra.mxu0 0
        %1283 = vmatprep.subr.bf16.mxu0 0
        %1284 = vmatpush1.bf16.msra.mxu0 0
        %1285 = vmatprep.subr.bf16.mxu0 0
        %1286 = vmatpush1.bf16.msra.mxu0 0
        %1287 = vmatprep.subr.bf16.mxu0 0
        %1288 = vmatpush1.bf16.msra.mxu0 0
        %1289 = vmatprep.subr.bf16.mxu0 0
        %1290 = vmatpush1.bf16.msra.mxu0 0
        %1291 = vmatprep.subr.bf16.mxu0 0
        %1292 = vmatpush1.bf16.msra.mxu0 0
        %1293 = vmatprep.subr.bf16.mxu0 0
        %1294 = vmatpush1.bf16.msra.mxu0 0
        %1295 = vmatprep.subr.bf16.mxu0 0
        %1296 = vmatpush1.bf16.msra.mxu0 0
        %1297 = vmatprep.subr.bf16.mxu0 0
        %1298 = vmatpush1.bf16.msra.mxu0 0
        %1299 = vmatprep.mubr.bf16.mxu0 0
        %1300 = vmatmul.mubr.bf16.gmra.mrb[0].mxu0 %v1221
        %v1301 = vpop.f32.mrb[0].mxu0
        %v1302 = vadd.f32 0.0, %v1301
        %v1303 = vpop.f32.mrb[0].mxu0
        %v1304 = vpop.f32.mrb[0].mxu0
        %v1305 = vadd.f32 0.0, %v1304
        %v1306 = vpop.f32.mrb[0].mxu0
        %1307 = vdwg.mxu0
        %v1308 = vmax.f32 %v1302, 1e-30
        %v1309 = vmax.f32 %v1305, 1e-30
        %v1310 = vrcp.pop %v1308
        %v1311 = vrcp.pop %v1309
        %1313 = vset.pattern.permute.xlu0 0
        %1314 = vperm.xlu0 %1313, %v1310
        %v1315 = vpop.permute.xlu0 %1314
        %1318 = vset.pattern.permute.xlu0 0
        %1319 = vperm.xlu0 %1318, %v1311
        %v1320 = vpop.permute.xlu0 %1319
        %v1322 = vmul.f32 %v1261, %v1315
        %v1323 = vmul.f32 %v1264, %v1320
        %v1324 = vpack.c.bf16 %v1323, %v1322
        %1326 = vrot.lane.b32.xlu0 %v1324, 16
        %v1327 = vpop.permute.xlu0 %1326
        %vm1329 = vcmask 261248
        %1330 = vst.msk [vmem:[#allocation4] sm:$0xff] %vm1329, %v1327
        %1331 = vxpose.xlu0.c.b16.start [1/8] %v1214, 128
        %1332 = vxpose.xlu0.c.b16.cont [2/8] 0, 128
        %1333 = vxpose.xlu0.c.b16.cont [3/8] 0, 128
        %1334 = vxpose.xlu0.c.b16.cont [4/8] 0, 128
        %1335 = vxpose.xlu0.c.b16.cont [5/8] 0, 128
        %1336 = vxpose.xlu0.c.b16.cont [6/8] 0, 128
        %1337 = vxpose.xlu0.c.b16.cont [7/8] 0, 128
        %1338 = vxpose.xlu0.c.b16.end [8/8] 0, 128
        %v1339 = vpop.trf.xlu0
        %v1340 = vpop.trf.xlu0
        %v1341 = vpop.trf.xlu0
        %v1342 = vpop.trf.xlu0
        %v1343 = vpop.trf.xlu0
        %v1344 = vpop.trf.xlu0
        %v1345 = vpop.trf.xlu0
        %v1346 = vpop.trf.xlu0
        %1348 = vrot.lane.b32.xlu0 %v803, 112
        %v1349 = vpop.permute.xlu0 %1348
        %v1352 = vsel %vm806, %v1339, 0
        %1354 = vmatprep.subr.bf16.mxu0 0
        %1355 = vmatpush1.bf16.msra.mxu0 %v1349
        %1356 = vmatprep.subr.bf16.mxu0 0
        %1357 = vmatpush1.bf16.msra.mxu0 0
        %1358 = vmatprep.subr.bf16.mxu0 0
        %1359 = vmatpush1.bf16.msra.mxu0 0
        %1360 = vmatprep.subr.bf16.mxu0 0
        %1361 = vmatpush1.bf16.msra.mxu0 0
        %1362 = vmatprep.subr.bf16.mxu0 0
        %1363 = vmatpush1.bf16.msra.mxu0 0
        %1364 = vmatprep.subr.bf16.mxu0 0
        %1365 = vmatpush1.bf16.msra.mxu0 0
        %1366 = vmatprep.subr.bf16.mxu0 0
        %1367 = vmatpush1.bf16.msra.mxu0 0
        %1368 = vmatprep.subr.bf16.mxu0 0
        %1369 = vmatpush1.bf16.msra.mxu0 0
        %1370 = vmatprep.subr.bf16.mxu0 0
        %1371 = vmatpush1.bf16.msra.mxu0 0
        %1372 = vmatprep.subr.bf16.mxu0 0
        %1373 = vmatpush1.bf16.msra.mxu0 0
        %1374 = vmatprep.subr.bf16.mxu0 0
        %1375 = vmatpush1.bf16.msra.mxu0 0
        %1376 = vmatprep.subr.bf16.mxu0 0
        %1377 = vmatpush1.bf16.msra.mxu0 0
        %1378 = vmatprep.subr.bf16.mxu0 0
        %1379 = vmatpush1.bf16.msra.mxu0 0
        %1380 = vmatprep.subr.bf16.mxu0 0
        %1381 = vmatpush1.bf16.msra.mxu0 0
        %1382 = vmatprep.subr.bf16.mxu0 0
        %1383 = vmatpush1.bf16.msra.mxu0 0
        %1384 = vmatprep.subr.bf16.mxu0 0
        %1385 = vmatpush1.bf16.msra.mxu0 0
        %1386 = vmatprep.mubr.bf16.mxu0 0
        %1387 = vmatmul.mubr.bf16.gmra.mrb[0].mxu0 %v1352
        %v1388 = vpop.f32.mrb[0].mxu0
        %v1389 = vadd.f32 0.0, %v1388
        %v1390 = vpop.f32.mrb[0].mxu0
        %v1391 = vpop.f32.mrb[0].mxu0
        %v1392 = vpop.f32.mrb[0].mxu0
        %1393 = vdwg.mxu0
        %1394 = vmatprep.subr.bf16.mxu0 0
        %1395 = vmatpush1.bf16.msra.mxu0 1065369472
        %1396 = vmatprep.subr.bf16.mxu0 0
        %1397 = vmatpush1.bf16.msra.mxu0 0
        %1398 = vmatprep.subr.bf16.mxu0 0
        %1399 = vmatpush1.bf16.msra.mxu0 0
        %1400 = vmatprep.subr.bf16.mxu0 0
        %1401 = vmatpush1.bf16.msra.mxu0 0
        %1402 = vmatprep.subr.bf16.mxu0 0
        %1403 = vmatpush1.bf16.msra.mxu0 0
        %1404 = vmatprep.subr.bf16.mxu0 0
        %1405 = vmatpush1.bf16.msra.mxu0 0
        %1406 = vmatprep.subr.bf16.mxu0 0
        %1407 = vmatpush1.bf16.msra.mxu0 0
        %1408 = vmatprep.subr.bf16.mxu0 0
        %1409 = vmatpush1.bf16.msra.mxu0 0
        %1410 = vmatprep.subr.bf16.mxu0 0
        %1411 = vmatpush1.bf16.msra.mxu0 0
        %1412 = vmatprep.subr.bf16.mxu0 0
        %1413 = vmatpush1.bf16.msra.mxu0 0
        %1414 = vmatprep.subr.bf16.mxu0 0
        %1415 = vmatpush1.bf16.msra.mxu0 0
        %1416 = vmatprep.subr.bf16.mxu0 0
        %1417 = vmatpush1.bf16.msra.mxu0 0
        %1418 = vmatprep.subr.bf16.mxu0 0
        %1419 = vmatpush1.bf16.msra.mxu0 0
        %1420 = vmatprep.subr.bf16.mxu0 0
        %1421 = vmatpush1.bf16.msra.mxu0 0
        %1422 = vmatprep.subr.bf16.mxu0 0
        %1423 = vmatpush1.bf16.msra.mxu0 0
        %1424 = vmatprep.subr.bf16.mxu0 0
        %1425 = vmatpush1.bf16.msra.mxu0 0
        %1426 = vmatprep.mubr.bf16.mxu0 0
        %1427 = vmatmul.mubr.bf16.gmra.mrb[0].mxu0 %v1352
        %v1428 = vpop.f32.mrb[0].mxu0
        %v1429 = vadd.f32 0.0, %v1428
        %v1430 = vpop.f32.mrb[0].mxu0
        %v1431 = vpop.f32.mrb[0].mxu0
        %v1432 = vpop.f32.mrb[0].mxu0
        %1433 = vdwg.mxu0
        %v1434 = vld [vmem:[#allocation5] sm:$0xff]
        %v1436 = vlaneseq
        %v1437 = vshrl.u32 %v1436, 7
        %v1438 = vsub.s32 0, %v1437
        %v1439 = vrot.slane %v1198, %v1438
        %1440 = vset.pattern.permute.xlu0 1
        %1441 = vperm.xlu0 %1440, %v1439
        %v1442 = vpop.permute.xlu0 %1441
        %v1444 = vmul.f32 %v1434, %v1442
        %1446 = vrot.lane.b32.xlu0 %v1389, 16
        %v1447 = vpop.permute.xlu0 %1446
        %v1449 = vadd.f32 %v1444, %v1447
        %1450 = vst.msk [vmem:[#allocation5] sm:$0xff] %vm1329, %v1449
        %v1451 = vld [vmem:[#allocation6] sm:$0xff]
        %v1452 = vmul.f32 %v1451, %v1442
        %1454 = vset.pattern.permute.xlu0 0
        %1455 = vperm.xlu0 %1454, %v1429
        %v1456 = vpop.permute.xlu0 %1455
        %v1458 = vadd.f32 %v1452, %v1456
        %1459 = vst.msk [vmem:[#allocation6] sm:$0xff] %vm1329, %v1458
        %v1460 = vld [vmem:[#allocation4] sm:$0xff]
        %v1461 = vld [vmem:[#allocation17] sm:$0xf]
        %v1462 = vld [vmem:[#allocation17 + $0x4] sm:$0xf]
        %v1463 = vld [vmem:[#allocation17 + $0x8] sm:$0xf]
        %v1464 = vld [vmem:[#allocation17 + $0xc] sm:$0xf]
        %v1465 = vld [vmem:[%s7] sm:$0x1]
        %v1467 = vlaneseq
        %v1468 = vshrl.u32 %v1467, 7
        %v1469 = vsub.s32 0, %v1468
        %v1470 = vrot.slane %v1465, %v1469
        %v1476 = vunpack.c.l.b16 %v1461
        %v1477 = vunpack.c.l.b16 %v1462
        %v1478 = vunpack.c.l.b16 %v1463
        %v1479 = vunpack.c.l.b16 %v1464
        %v1480 = vpack.c.b16 %v1477, %v1476
        %v1481 = vpack.c.b16 %v1479, %v1478
        %v1485 = vsel %vm700, %v1460, 0
        %1487 = vmatprep.subr.bf16.mxu0 0
        %1488 = vmatpush1.bf16.msra.mxu0 %v1480
        %1489 = vmatprep.subr.bf16.mxu0 0
        %1490 = vmatpush1.bf16.msra.mxu0 %v1481
        %1491 = vmatprep.subr.bf16.mxu0 0
        %1492 = vmatpush1.bf16.msra.mxu0 0
        %1493 = vmatprep.subr.bf16.mxu0 0
        %1494 = vmatpush1.bf16.msra.mxu0 0
        %1495 = vmatprep.subr.bf16.mxu0 0
        %1496 = vmatpush1.bf16.msra.mxu0 0
        %1497 = vmatprep.subr.bf16.mxu0 0
        %1498 = vmatpush1.bf16.msra.mxu0 0
        %1499 = vmatprep.subr.bf16.mxu0 0
        %1500 = vmatpush1.bf16.msra.mxu0 0
        %1501 = vmatprep.subr.bf16.mxu0 0
        %1502 = vmatpush1.bf16.msra.mxu0 0
        %1503 = vmatprep.subr.bf16.mxu0 0
        %1504 = vmatpush1.bf16.msra.mxu0 0
        %1505 = vmatprep.subr.bf16.mxu0 0
        %1506 = vmatpush1.bf16.msra.mxu0 0
        %1507 = vmatprep.subr.bf16.mxu0 0
        %1508 = vmatpush1.bf16.msra.mxu0 0
        %1509 = vmatprep.subr.bf16.mxu0 0
        %1510 = vmatpush1.bf16.msra.mxu0 0
        %1511 = vmatprep.subr.bf16.mxu0 0
        %1512 = vmatpush1.bf16.msra.mxu0 0
        %1513 = vmatprep.subr.bf16.mxu0 0
        %1514 = vmatpush1.bf16.msra.mxu0 0
        %1515 = vmatprep.subr.bf16.mxu0 0
        %1516 = vmatpush1.bf16.msra.mxu0 0
        %1517 = vmatprep.subr.bf16.mxu0 0
        %1518 = vmatpush1.bf16.msra.mxu0 0
        %1519 = vmatprep.mubr.bf16.mxu0 0
        %1520 = vmatmul.mubr.bf16.gmra.mrb[0].mxu0 %v1485
        %v1521 = vpop.f32.mrb[0].mxu0
        %v1522 = vadd.f32 %v1470, %v1521
        %v1523 = vpop.f32.mrb[0].mxu0
        %v1524 = vpop.f32.mrb[0].mxu0
        %v1525 = vadd.f32 %v1470, %v1524
        %v1526 = vpop.f32.mrb[0].mxu0
        %1527 = vdwg.mxu0
        %1528 = vst.msk [vmem:[%s535] sm:$0xff] %vm700, %v1522
        %1529 = vst.msk [vmem:[%s535 + $0x8] sm:$0xff] %vm700, %v1525
        %p1530 = scmp.eq.s32.totalorder %s42, 1
        // Predicated region
        $region93: #{tpu_custom_call.1} parent=59 // pred_check
          %p1531 = pneg %p1530
        $region94: #{tpu_custom_call.1} parent=59 // pred_check_branch
          %1533 = sbr.rel (%p1531) target = $region96
        $region95: #{tpu_custom_call.1} parent=59 // pred_region
          %v1534 = vld [vmem:[#allocation6] sm:$0xff]
          %v1535 = vmax.f32 %v1534, 1e-30
          %v1536 = vrcp.pop %v1535
          %v1537 = vld [vmem:[#allocation5] sm:$0xff]
          %v1538 = vmul.f32 %v1537, %v1536
          %v1539 = vpack.c.bf16 %v1538, %v1538
          %v1540 = vld [vmem:[#allocation19] sm:$0xf]
          %v1541 = vld [vmem:[#allocation19 + $0x4] sm:$0xf]
          %v1542 = vld [vmem:[#allocation19 + $0x8] sm:$0xf]
          %v1543 = vld [vmem:[#allocation19 + $0xc] sm:$0xf]
          %v1544 = vld [vmem:[%s9] sm:$0x1]
          %v1546 = vlaneseq
          %v1547 = vshrl.u32 %v1546, 7
          %v1548 = vsub.s32 0, %v1547
          %v1549 = vrot.slane %v1544, %v1548
          %v1555 = vunpack.c.l.b16 %v1540
          %v1556 = vunpack.c.l.b16 %v1541
          %v1557 = vunpack.c.l.b16 %v1542
          %v1558 = vunpack.c.l.b16 %v1543
          %v1559 = vpack.c.b16 %v1556, %v1555
          %v1560 = vpack.c.b16 %v1558, %v1557
          %v1564 = vsel %vm700, %v1539, 0
          %1566 = vmatprep.subr.bf16.mxu0 0
          %1567 = vmatpush1.bf16.msra.mxu0 %v1559
          %1568 = vmatprep.subr.bf16.mxu0 0
          %1569 = vmatpush1.bf16.msra.mxu0 %v1560
          %1570 = vmatprep.subr.bf16.mxu0 0
          %1571 = vmatpush1.bf16.msra.mxu0 0
          %1572 = vmatprep.subr.bf16.mxu0 0
          %1573 = vmatpush1.bf16.msra.mxu0 0
          %1574 = vmatprep.subr.bf16.mxu0 0
          %1575 = vmatpush1.bf16.msra.mxu0 0
          %1576 = vmatprep.subr.bf16.mxu0 0
          %1577 = vmatpush1.bf16.msra.mxu0 0
          %1578 = vmatprep.subr.bf16.mxu0 0
          %1579 = vmatpush1.bf16.msra.mxu0 0
          %1580 = vmatprep.subr.bf16.mxu0 0
          %1581 = vmatpush1.bf16.msra.mxu0 0
          %1582 = vmatprep.subr.bf16.mxu0 0
          %1583 = vmatpush1.bf16.msra.mxu0 0
          %1584 = vmatprep.subr.bf16.mxu0 0
          %1585 = vmatpush1.bf16.msra.mxu0 0
          %1586 = vmatprep.subr.bf16.mxu0 0
          %1587 = vmatpush1.bf16.msra.mxu0 0
          %1588 = vmatprep.subr.bf16.mxu0 0
          %1589 = vmatpush1.bf16.msra.mxu0 0
          %1590 = vmatprep.subr.bf16.mxu0 0
          %1591 = vmatpush1.bf16.msra.mxu0 0
          %1592 = vmatprep.subr.bf16.mxu0 0
          %1593 = vmatpush1.bf16.msra.mxu0 0
          %1594 = vmatprep.subr.bf16.mxu0 0
          %1595 = vmatpush1.bf16.msra.mxu0 0
          %1596 = vmatprep.subr.bf16.mxu0 0
          %1597 = vmatpush1.bf16.msra.mxu0 0
          %1598 = vmatprep.mubr.bf16.mxu0 0
          %1599 = vmatmul.mubr.bf16.gmra.mrb[0].mxu0 %v1564
          %v1600 = vpop.f32.mrb[0].mxu0
          %v1601 = vadd.f32 %v1549, %v1600
          %v1602 = vpop.f32.mrb[0].mxu0
          %v1603 = vpop.f32.mrb[0].mxu0
          %v1604 = vpop.f32.mrb[0].mxu0
          %1605 = vdwg.mxu0
          %1606 = vst.msk [vmem:[%s542] sm:$0xff] %vm700, %v1601
        $region96: #{tpu_custom_call.1} parent=59 // pred_fallthru
          _
        %s1607 = sand.u32 %s281, 1
        %s1608 = scalar_lea.sflag [#allocation10], %s1607
        %s1609 = sand.u32 %s281, 1
        %s1610 = smul.addr %s1609, 16
        %s1611 = scalar_lea.vmem [#allocation20], %s1610
        %s1612 = sand.u32 %s307, 1
        %s1613 = scalar_lea.sflag [#allocation22], %s1612
        %s1614 = sand.u32 %s307, 1
        %s1615 = smul.addr %s1614, 8
        %s1616 = scalar_lea.vmem [#allocation21], %s1615
        // Predicated region
        $region97: #{tpu_custom_call.1} parent=59 // pred_check
          %p1617 = pneg %p291
        $region98: #{tpu_custom_call.1} parent=59 // pred_check_branch
          %1619 = sbr.rel (%p1617) target = $region100
        $region99: #{tpu_custom_call.1} parent=59 // pred_region
          %s1620 = smul.u32 2, %s42
          %s1622 = ssub.s32 256, 256
          %1623 = vsyncadd %s1608, %s1622
          %s1624 = smul.addr %s41, 4
          %s1625 = sadd.s32 %s1620, %s1624
          %s1626 = smul.addr %s1625, 128
          %s1627 = scalar_lea.hbm %s10, %s1626
          %s1628 = sshll.u32 %s1611, 4
          %s1629 = int_to_ptr.vmem [resolvable:$true] %s1628
          %1634 = dma.vmem_to_hbm [thread:$0]  %s1629, 256, %s1627, %s1608, 128, 128, 8
        $region100: #{tpu_custom_call.1} parent=59 // pred_fallthru
          _
        // Predicated region
        $region101: #{tpu_custom_call.1} parent=59 // pred_check
          %p1635 = pneg %p317
        $region102: #{tpu_custom_call.1} parent=59 // pred_check_branch
          %1637 = sbr.rel (%p1635) target = $region104
        $region103: #{tpu_custom_call.1} parent=59 // pred_region
          %s1639 = ssub.s32 128, 128
          %1640 = vsyncadd %s1613, %s1639
          %s1641 = smul.addr %s41, 128
          %s1642 = scalar_lea.hbm %s11, %s1641
          %s1644 = sshll.u32 %s1616, 4
          %s1645 = int_to_ptr.vmem [resolvable:$true] %s1644
          %1647 = dma.vmem_to_hbm [thread:$0]  %s1645, 128, %s1642, %s1613
        $region104: #{tpu_custom_call.1} parent=59 // pred_fallthru
          _
      $region60: #{tpu_custom_call.1} parent=5 // pred_fallthru
        _
      %p1648 = scmp.le.s32.totalorder 2, %s32
      // Predicated region
      $region105: #{tpu_custom_call.1} parent=5 // pred_check
        %p1649 = pneg %p1648
      $region106: #{tpu_custom_call.1} parent=5 // pred_check_branch
        %1651 = sbr.rel (%p1649) target = $region108
      $region107: #{tpu_custom_call.1} parent=5 // pred_region
        %s1652 = ssub.s32 %s32, 2
        // Predicated region
        $region109: #{tpu_custom_call.1} parent=107 // pred_check
          %p1653 = pneg %p297
        $region110: #{tpu_custom_call.1} parent=107 // pred_check_branch
          %1655 = sbr.rel (%p1653) target = $region112
        $region111: #{tpu_custom_call.1} parent=107 // pred_region
          %s1656 = sand.u32 %s282, 1
          %s1657 = scalar_lea.sflag [#allocation10], %s1656
          %s1658 = sand.u32 %s282, 1
          %s1659 = smul.addr %s1658, 16
          %s1660 = scalar_lea.vmem [#allocation20], %s1659
          %1661 = dma.done %s1657, 256
        $region112: #{tpu_custom_call.1} parent=107 // pred_fallthru
          _
        // Predicated region
        $region113: #{tpu_custom_call.1} parent=107 // pred_check
          %p1662 = pneg %p323
        $region114: #{tpu_custom_call.1} parent=107 // pred_check_branch
          %1664 = sbr.rel (%p1662) target = $region116
        $region115: #{tpu_custom_call.1} parent=107 // pred_region
          %s1665 = sand.u32 %s308, 1
          %s1666 = scalar_lea.sflag [#allocation22], %s1665
          %s1667 = sand.u32 %s308, 1
          %s1668 = smul.addr %s1667, 8
          %s1669 = scalar_lea.vmem [#allocation21], %s1668
          %1670 = dma.done %s1666, 128
        $region116: #{tpu_custom_call.1} parent=107 // pred_fallthru
          _
      $region108: #{tpu_custom_call.1} parent=5 // pred_fallthru
        _
    $region6: #{tpu_custom_call.1} parent=1 // loop_footer
      %s36 = sadd.s32 1, %s32
    $region7: #{tpu_custom_call.1} parent=1 // loop_footer_branch
      %31 = sbr.rel target = $region3
    $region8: #{tpu_custom_call.1} parent=1 // loop_exit
      _
    %1671 = vsyncpa [#allocation9], 1
    %s1672 = scalar_lea.sflag [#allocation9], 1
    %1673 = vsyncpa %s1672, 1
    %1674 = vsyncpa [#allocation12], 1
    %s1675 = scalar_lea.sflag [#allocation12], 1
    %1676 = vsyncpa %s1675, 1
    %1677 = vsyncpa [#allocation15], 1
    %1678 = vsyncpa [#allocation18], 1
    %1679 = vsyncpa [#allocation10], 1
    %s1680 = scalar_lea.sflag [#allocation10], 1
    %1681 = vsyncpa %s1680, 1
    %1682 = vsyncpa [#allocation22], 1
    %s1683 = scalar_lea.sflag [#allocation22], 1
    %1684 = vsyncpa %s1683, 1

// kernel: tpu_custom_call.1
$region0: #{tpu_custom_call.1}
  #allocation0 [shape = 'u32[]', space=smem, size = 0x4, offset = 0x4, fixed_abs, tag = 'smem constant byte address 0x4 - core index']
  #allocation1 [shape = 'u32[144,128]{1,0:T(1,128)}', space=vmem, size = 0x12000, scoped, tag = 'internal scratch']
  #allocation2 [shape = 'bf16[8,32]{1,0:T(8,128)(2,1)}', space=vmem, size = 0x800, scoped, tag = 'scratch operand']
  #allocation3 [shape = 'bf16[8,32]{1,0:T(8,128)(2,1)}', space=vmem, size = 0x800, scoped, tag = 'scratch operand']
  #allocation4 [shape = 'bf16[16,32]{1,0:T(16,128)(2,1)}', space=vmem, size = 0x1000, scoped, tag = 'scratch operand']
  #allocation5 [shape = 'f32[8,32]{1,0:T(8,128)}', space=vmem, size = 0x1000, scoped, tag = 'scratch operand']
  #allocation6 [shape = 'f32[8,32]{1,0:T(8,128)}', space=vmem, size = 0x1000, scoped, tag = 'scratch operand']
  #allocation7 [shape = 'f32[1,2]{1,0:T(1,128)}', space=vmem, size = 0x200, scoped, tag = 'scratch operand']
  %s0 = inlined_call_operand.hbm [shape: bf16[2,32,32], index: 0, kind: input, shape index: {}]
  %s1 = inlined_call_operand.hbm [shape: bf16[2,8,32], index: 1, kind: input, shape index: {}]
  %s2 = inlined_call_operand.hbm [shape: bf16[32,32], index: 2, kind: input, shape index: {}]
  %s3 = inlined_call_operand.hbm [shape: bf16[32,32], index: 3, kind: input, shape index: {}]
  %s4 = inlined_call_operand.hbm [shape: bf16[32,32], index: 4, kind: input, shape index: {}]
  %s5 = inlined_call_operand.vmem [shape: bf16[32,32], index: 5, kind: input, shape index: {}]
  %s6 = inlined_call_operand.hbm [shape: bf16[32,32], index: 6, kind: input, shape index: {}]
  %s7 = inlined_call_operand.vmem [shape: f32[1,32], index: 7, kind: input, shape index: {}]
  %s8 = inlined_call_operand.hbm [shape: bf16[32,32], index: 8, kind: input, shape index: {}]
  %s9 = inlined_call_operand.vmem [shape: f32[1,32], index: 9, kind: input, shape index: {}]
  %s10 = inlined_call_operand.hbm [shape: f32[2,32,32], index: 10, kind: output, shape index: {0}]
  %s11 = inlined_call_operand.hbm [shape: f32[2,8,32], index: 11, kind: output, shape index: {1}]
  %12 = xla_tuple %s10, %s11
  %s13 = sld [smem:[#allocation0]]
  $region117: #{tpu_custom_call.1} parent=0
    _
  %s15 = ssub.s32 1, %s13
  %s16 = scalar_select 0, %s15, %s13
  $region1: #{tpu_custom_call.1} parent=0
    #allocation8 [shape = 'u8[8192]{0}', space=vmem, size = 0x2000, scoped, tag = 'input window, operand 0']
    #allocation9 [shape = 's32[2]{0}', space=sflag, size = 0x8, scoped, tag = 'scoped memory for tpu_custom_call.1']
    #allocation10 [shape = 's32[2]{0}', space=sflag, size = 0x8, scoped, tag = 'scoped memory for tpu_custom_call.1']
    #allocation11 [shape = 'u8[4096]{0}', space=vmem, size = 0x1000, scoped, tag = 'input window, operand 1']
    #allocation12 [shape = 's32[2]{0}', space=sflag, size = 0x8, scoped, tag = 'scoped memory for tpu_custom_call.1']
    #allocation13 [shape = 'u8[8192]{0}', space=vmem, size = 0x2000, scoped, tag = 'input window, operand 2, single buffered']
    #allocation14 [shape = 'u8[8192]{0}', space=vmem, size = 0x2000, scoped, tag = 'input window, operand 3, single buffered']
    #allocation15 [shape = 's32[1]{0}', space=sflag, size = 0x4, scoped, tag = 'scoped memory for tpu_custom_call.1']
    #allocation16 [shape = 'u8[8192]{0}', space=vmem, size = 0x2000, scoped, tag = 'input window, operand 4, single buffered']
    #allocation17 [shape = 'u8[8192]{0}', space=vmem, size = 0x2000, scoped, tag = 'input window, operand 6, single buffered']
    #allocation18 [shape = 's32[1]{0}', space=sflag, size = 0x4, scoped, tag = 'scoped memory for tpu_custom_call.1']
    #allocation19 [shape = 'u8[8192]{0}', space=vmem, size = 0x2000, scoped, tag = 'input window, operand 8, single buffered']
    #allocation20 [shape = 'u8[16384]{0}', space=vmem, size = 0x4000, scoped, tag = 'output window, operand 0']
    #allocation21 [shape = 'u8[8192]{0}', space=vmem, size = 0x2000, scoped, tag = 'output window, operand 1']
    #allocation22 [shape = 's32[2]{0}', space=sflag, size = 0x8, scoped, tag = 'scoped memory for tpu_custom_call.1']
    %17 = vsyncpa [#allocation9], 0
    %s18 = scalar_lea.sflag [#allocation9], 1
    %19 = vsyncpa %s18, 0
    %20 = vsyncpa [#allocation12], 0
    %s21 = scalar_lea.sflag [#allocation12], 1
    %22 = vsyncpa %s21, 0
    %23 = vsyncpa [#allocation15], 0
    %24 = vsyncpa [#allocation18], 0
    %25 = vsyncpa [#allocation10], 0
    %s26 = scalar_lea.sflag [#allocation10], 1
    %27 = vsyncpa %s26, 0
    %28 = vsyncpa [#allocation22], 0
    %s29 = scalar_lea.sflag [#allocation22], 1
    %30 = vsyncpa %s29, 0
    loop: start=0, step=1, limit=6
    $region2: #{tpu_custom_call.1} parent=1 // loop_pre_header
      _
    $region3: #{tpu_custom_call.1} parent=1 // loop_header
      %s32 = sphi 0, %s36
      %p33 = scmp.ge.s32.totalorder %s32, 6
      %s39 = sphi 0, %s51
      %s40 = sphi 0, %s47
      %s41 = sphi 0, %s39
      %s42 = sphi 0, %s40
      %s43 = sphi 0, %s41
      %s44 = sphi 0, %s42
      %s56 = sphi 0, %s58
      %s59 = sphi 0, %s56
      %s60 = sphi 0, %s59
      %s76 = sphi 0, %s60
      %s82 = sphi 0, %s84
      %s85 = sphi 0, %s82
      %s86 = sphi 0, %s85
      %s102 = sphi 0, %s86
      %s106 = sphi 0, %s106
      %s108 = sphi 0, %s106
      %s109 = sphi 0, %s108
      %s123 = sphi 0, %s109
      %s127 = sphi 0, %s127
      %s129 = sphi 0, %s127
      %s130 = sphi 0, %s129
      %s144 = sphi 0, %s130
      %s148 = sphi 0, %s148
      %s150 = sphi 0, %s148
      %s151 = sphi 0, %s150
      %s165 = sphi 0, %s151
      %s169 = sphi 0, %s169
      %s171 = sphi 0, %s169
      %s172 = sphi 0, %s171
      %s186 = sphi 0, %s172
      %s190 = sphi 0, %s190
      %s192 = sphi 0, %s190
      %s193 = sphi 0, %s192
      %s207 = sphi 0, %s193
      %s211 = sphi 0, %s211
      %s213 = sphi 0, %s211
      %s214 = sphi 0, %s213
      %s228 = sphi 0, %s214
      %s232 = sphi 0, %s232
      %s234 = sphi 0, %s232
      %s235 = sphi 0, %s234
      %s249 = sphi 0, %s235
      %s253 = sphi 0, %s253
      %s255 = sphi 0, %s253
      %s256 = sphi 0, %s255
      %s270 = sphi 0, %s256
      %s278 = sphi 0, %s280
      %s281 = sphi 0, %s278
      %s282 = sphi 0, %s281
      %s298 = sphi 0, %s282
      %s304 = sphi 0, %s306
      %s307 = sphi 0, %s304
      %s308 = sphi 0, %s307
      %s324 = sphi 0, %s308
    $region4: #{tpu_custom_call.1} parent=1 // loop_header_branch
      %35 = sbr.rel (%p33) target = $region8
    $region5: #{tpu_custom_call.1} parent=1 // loop_body
      %s37 = ssub.s32 %s32, 1
      %s38 = ssub.s32 %s32, 2
      %s45 = sadd.s32 1, %s40
      %p46 = scmp.ge.s32.totalorder %s45, 2
      %s47 = scalar_select %p46, 0, %s45
      %s48 = sadd.s32 1, %s39
      %s49 = scalar_select %p46, %s48, %s39
      %p50 = scmp.ge.s32.totalorder %s49, 2
      %s51 = scalar_select %p50, 0, %s49
      %s52 = ssub.s32 %s39, %s51
      %s53 = ssub.s32 %s40, %s47
      %s54 = sor.u32 %s52, %s53
      %p55 = scmp.eq.s32.totalorder %s54, 0
      %s57 = sadd.s32 %s56, 1
      %s58 = scalar_select %p55, %s56, %s57
      %p61 = pneg %p55
      %p62 = scmp.eq.s32.totalorder %s32, 3
      %p63 = por %p61, %p62
      %p64 = scmp.ne.s32.totalorder %s56, %s59
      %p65 = scmp.eq.s32.totalorder %s32, 0
      %p66 = por %p64, %p65
      %p67 = scmp.ne.s32.totalorder %s56, %s59
      %p68 = scmp.eq.s32.totalorder %s37, 3
      %p69 = por %p67, %p68
      %p70 = scmp.ne.s32.totalorder %s59, %s60
      %p71 = scmp.eq.s32.totalorder %s37, 0
      %p72 = por %p70, %p71
      %p73 = scmp.ne.s32.totalorder %s59, %s60
      %p74 = scmp.eq.s32.totalorder %s38, 3
      %p75 = por %p73, %p74
      %p77 = scmp.ne.s32.totalorder %s60, %s76
      %p78 = scmp.eq.s32.totalorder %s38, 0
      %p79 = por %p77, %p78
      %s80 = ssub.s32 %s39, %s51
      %p81 = scmp.eq.s32.totalorder %s80, 0
      %s83 = sadd.s32 %s82, 1
      %s84 = scalar_select %p81, %s82, %s83
      %p87 = pneg %p81
      %p88 = scmp.eq.s32.totalorder %s32, 3
      %p89 = por %p87, %p88
      %p90 = scmp.ne.s32.totalorder %s82, %s85
      %p91 = scmp.eq.s32.totalorder %s32, 0
      %p92 = por %p90, %p91
      %p93 = scmp.ne.s32.totalorder %s82, %s85
      %p94 = scmp.eq.s32.totalorder %s37, 3
      %p95 = por %p93, %p94
      %p96 = scmp.ne.s32.totalorder %s85, %s86
      %p97 = scmp.eq.s32.totalorder %s37, 0
      %p98 = por %p96, %p97
      %p99 = scmp.ne.s32.totalorder %s85, %s86
      %p100 = scmp.eq.s32.totalorder %s38, 3
      %p101 = por %p99, %p100
      %p103 = scmp.ne.s32.totalorder %s86, %s102
      %p104 = scmp.eq.s32.totalorder %s38, 0
      %p105 = por %p103, %p104
      %s107 = sadd.s32 %s106, 1
      %p110 = scmp.eq.s32.totalorder %s32, 3
      %p111 = scmp.ne.s32.totalorder %s106, %s108
      %p112 = scmp.eq.s32.totalorder %s32, 0
      %p113 = por %p111, %p112
      %p114 = scmp.ne.s32.totalorder %s106, %s108
      %p115 = scmp.eq.s32.totalorder %s37, 3
      %p116 = por %p114, %p115
      %p117 = scmp.ne.s32.totalorder %s108, %s109
      %p118 = scmp.eq.s32.totalorder %s37, 0
      %p119 = por %p117, %p118
      %p120 = scmp.ne.s32.totalorder %s108, %s109
      %p121 = scmp.eq.s32.totalorder %s38, 3
      %p122 = por %p120, %p121
      %p124 = scmp.ne.s32.totalorder %s109, %s123
      %p125 = scmp.eq.s32.totalorder %s38, 0
      %p126 = por %p124, %p125
      %s128 = sadd.s32 %s127, 1
      %p131 = scmp.eq.s32.totalorder %s32, 3
      %p132 = scmp.ne.s32.totalorder %s127, %s129
      %p133 = scmp.eq.s32.totalorder %s32, 0
      %p134 = por %p132, %p133
      %p135 = scmp.ne.s32.totalorder %s127, %s129
      %p136 = scmp.eq.s32.totalorder %s37, 3
      %p137 = por %p135, %p136
      %p138 = scmp.ne.s32.totalorder %s129, %s130
      %p139 = scmp.eq.s32.totalorder %s37, 0
      %p140 = por %p138, %p139
      %p141 = scmp.ne.s32.totalorder %s129, %s130
      %p142 = scmp.eq.s32.totalorder %s38, 3
      %p143 = por %p141, %p142
      %p145 = scmp.ne.s32.totalorder %s130, %s144
      %p146 = scmp.eq.s32.totalorder %s38, 0
      %p147 = por %p145, %p146
      %s149 = sadd.s32 %s148, 1
      %p152 = scmp.eq.s32.totalorder %s32, 3
      %p153 = scmp.ne.s32.totalorder %s148, %s150
      %p154 = scmp.eq.s32.totalorder %s32, 0
      %p155 = por %p153, %p154
      %p156 = scmp.ne.s32.totalorder %s148, %s150
      %p157 = scmp.eq.s32.totalorder %s37, 3
      %p158 = por %p156, %p157
      %p159 = scmp.ne.s32.totalorder %s150, %s151
      %p160 = scmp.eq.s32.totalorder %s37, 0
      %p161 = por %p159, %p160
      %p162 = scmp.ne.s32.totalorder %s150, %s151
      %p163 = scmp.eq.s32.totalorder %s38, 3
      %p164 = por %p162, %p163
      %p166 = scmp.ne.s32.totalorder %s151, %s165
      %p167 = scmp.eq.s32.totalorder %s38, 0
      %p168 = por %p166, %p167
      %s170 = sadd.s32 %s169, 1
      %p173 = scmp.eq.s32.totalorder %s32, 3
      %p174 = scmp.ne.s32.totalorder %s169, %s171
      %p175 = scmp.eq.s32.totalorder %s32, 0
      %p176 = por %p174, %p175
      %p177 = scmp.ne.s32.totalorder %s169, %s171
      %p178 = scmp.eq.s32.totalorder %s37, 3
      %p179 = por %p177, %p178
      %p180 = scmp.ne.s32.totalorder %s171, %s172
      %p181 = scmp.eq.s32.totalorder %s37, 0
      %p182 = por %p180, %p181
      %p183 = scmp.ne.s32.totalorder %s171, %s172
      %p184 = scmp.eq.s32.totalorder %s38, 3
      %p185 = por %p183, %p184
      %p187 = scmp.ne.s32.totalorder %s172, %s186
      %p188 = scmp.eq.s32.totalorder %s38, 0
      %p189 = por %p187, %p188
      %s191 = sadd.s32 %s190, 1
      %p194 = scmp.eq.s32.totalorder %s32, 3
      %p195 = scmp.ne.s32.totalorder %s190, %s192
      %p196 = scmp.eq.s32.totalorder %s32, 0
      %p197 = por %p195, %p196
      %p198 = scmp.ne.s32.totalorder %s190, %s192
      %p199 = scmp.eq.s32.totalorder %s37, 3
      %p200 = por %p198, %p199
      %p201 = scmp.ne.s32.totalorder %s192, %s193
      %p202 = scmp.eq.s32.totalorder %s37, 0
      %p203 = por %p201, %p202
      %p204 = scmp.ne.s32.totalorder %s192, %s193
      %p205 = scmp.eq.s32.totalorder %s38, 3
      %p206 = por %p204, %p205
      %p208 = scmp.ne.s32.totalorder %s193, %s207
      %p209 = scmp.eq.s32.totalorder %s38, 0
      %p210 = por %p208, %p209
      %s212 = sadd.s32 %s211, 1
      %p215 = scmp.eq.s32.totalorder %s32, 3
      %p216 = scmp.ne.s32.totalorder %s211, %s213
      %p217 = scmp.eq.s32.totalorder %s32, 0
      %p218 = por %p216, %p217
      %p219 = scmp.ne.s32.totalorder %s211, %s213
      %p220 = scmp.eq.s32.totalorder %s37, 3
      %p221 = por %p219, %p220
      %p222 = scmp.ne.s32.totalorder %s213, %s214
      %p223 = scmp.eq.s32.totalorder %s37, 0
      %p224 = por %p222, %p223
      %p225 = scmp.ne.s32.totalorder %s213, %s214
      %p226 = scmp.eq.s32.totalorder %s38, 3
      %p227 = por %p225, %p226
      %p229 = scmp.ne.s32.totalorder %s214, %s228
      %p230 = scmp.eq.s32.totalorder %s38, 0
      %p231 = por %p229, %p230
      %s233 = sadd.s32 %s232, 1
      %p236 = scmp.eq.s32.totalorder %s32, 3
      %p237 = scmp.ne.s32.totalorder %s232, %s234
      %p238 = scmp.eq.s32.totalorder %s32, 0
      %p239 = por %p237, %p238
      %p240 = scmp.ne.s32.totalorder %s232, %s234
      %p241 = scmp.eq.s32.totalorder %s37, 3
      %p242 = por %p240, %p241
      %p243 = scmp.ne.s32.totalorder %s234, %s235
      %p244 = scmp.eq.s32.totalorder %s37, 0
      %p245 = por %p243, %p244
      %p246 = scmp.ne.s32.totalorder %s234, %s235
      %p247 = scmp.eq.s32.totalorder %s38, 3
      %p248 = por %p246, %p247
      %p250 = scmp.ne.s32.totalorder %s235, %s249
      %p251 = scmp.eq.s32.totalorder %s38, 0
      %p252 = por %p250, %p251
      %s254 = sadd.s32 %s253, 1
      %p257 = scmp.eq.s32.totalorder %s32, 3
      %p258 = scmp.ne.s32.totalorder %s253, %s255
      %p259 = scmp.eq.s32.totalorder %s32, 0
      %p260 = por %p258, %p259
      %p261 = scmp.ne.s32.totalorder %s253, %s255
      %p262 = scmp.eq.s32.totalorder %s37, 3
      %p263 = por %p261, %p262
      %p264 = scmp.ne.s32.totalorder %s255, %s256
      %p265 = scmp.eq.s32.totalorder %s37, 0
      %p266 = por %p264, %p265
      %p267 = scmp.ne.s32.totalorder %s255, %s256
      %p268 = scmp.eq.s32.totalorder %s38, 3
      %p269 = por %p267, %p268
      %p271 = scmp.ne.s32.totalorder %s256, %s270
      %p272 = scmp.eq.s32.totalorder %s38, 0
      %p273 = por %p271, %p272
      %s274 = ssub.s32 %s39, %s51
      %s275 = ssub.s32 %s40, %s47
      %s276 = sor.u32 %s274, %s275
      %p277 = scmp.eq.s32.totalorder %s276, 0
      %s279 = sadd.s32 %s278, 1
      %s280 = scalar_select %p277, %s278, %s279
      %p283 = pneg %p277
      %p284 = scmp.eq.s32.totalorder %s32, 3
      %p285 = por %p283, %p284
      %p286 = scmp.ne.s32.totalorder %s278, %s281
      %p287 = scmp.eq.s32.totalorder %s32, 0
      %p288 = por %p286, %p287
      %p289 = scmp.ne.s32.totalorder %s278, %s281
      %p290 = scmp.eq.s32.totalorder %s37, 3
      %p291 = por %p289, %p290
      %p292 = scmp.ne.s32.totalorder %s281, %s282
      %p293 = scmp.eq.s32.totalorder %s37, 0
      %p294 = por %p292, %p293
      %p295 = scmp.ne.s32.totalorder %s281, %s282
      %p296 = scmp.eq.s32.totalorder %s38, 3
      %p297 = por %p295, %p296
      %p299 = scmp.ne.s32.totalorder %s282, %s298
      %p300 = scmp.eq.s32.totalorder %s38, 0
      %p301 = por %p299, %p300
      %s302 = ssub.s32 %s39, %s51
      %p303 = scmp.eq.s32.totalorder %s302, 0
      %s305 = sadd.s32 %s304, 1
      %s306 = scalar_select %p303, %s304, %s305
      %p309 = pneg %p303
      %p310 = scmp.eq.s32.totalorder %s32, 3
      %p311 = por %p309, %p310
      %p312 = scmp.ne.s32.totalorder %s304, %s307
      %p313 = scmp.eq.s32.totalorder %s32, 0
      %p314 = por %p312, %p313
      %p315 = scmp.ne.s32.totalorder %s304, %s307
      %p316 = scmp.eq.s32.totalorder %s37, 3
      %p317 = por %p315, %p316
      %p318 = scmp.ne.s32.totalorder %s307, %s308
      %p319 = scmp.eq.s32.totalorder %s37, 0
      %p320 = por %p318, %p319
      %p321 = scmp.ne.s32.totalorder %s307, %s308
      %p322 = scmp.eq.s32.totalorder %s38, 3
      %p323 = por %p321, %p322
      %p325 = scmp.ne.s32.totalorder %s308, %s324
      %p326 = scmp.eq.s32.totalorder %s38, 0
      %p327 = por %p325, %p326
      %p328 = scmp.le.s32.totalorder 1, %s32
      %p329 = scmp.lt.s32.totalorder %s32, 5
      %p330 = pnand %p328, %p329
      %p331 = pneg %p330
      // Predicated region
      $region9: #{tpu_custom_call.1} parent=5 // pred_check
        _
      $region10: #{tpu_custom_call.1} parent=5 // pred_check_branch
        %333 = sbr.rel (%p330) target = $region12
      $region11: #{tpu_custom_call.1} parent=5 // pred_region
        %s334 = ssub.s32 %s32, 1
        // Predicated region
        $region13: #{tpu_custom_call.1} parent=11 // pred_check
          %p335 = pneg %p119
        $region14: #{tpu_custom_call.1} parent=11 // pred_check_branch
          %337 = sbr.rel (%p335) target = $region16
        $region15: #{tpu_custom_call.1} parent=11 // pred_region
          %s339 = ssub.s32 256, 256
          %340 = vsyncadd [#allocation12], %s339
          %s341 = sshll.u32 [#allocation13], 4
          %s342 = int_to_ptr.vmem [resolvable:$true] %s341
          %347 = dma.hbm_to_vmem [thread:$0]  %s2, 256, %s342, [#allocation12], 64, 64, 4
        $region16: #{tpu_custom_call.1} parent=11 // pred_fallthru
          _
        // Predicated region
        $region17: #{tpu_custom_call.1} parent=11 // pred_check
          %p348 = pneg %p140
        $region18: #{tpu_custom_call.1} parent=11 // pred_check_branch
          %350 = sbr.rel (%p348) target = $region20
        $region19: #{tpu_custom_call.1} parent=11 // pred_region
          %s352 = ssub.s32 256, 256
          %353 = vsyncadd [#allocation15], %s352
          %s354 = sshll.u32 [#allocation14], 4
          %s355 = int_to_ptr.vmem [resolvable:$true] %s354
          %360 = dma.hbm_to_vmem [thread:$0]  %s3, 256, %s355, [#allocation15], 64, 64, 4
        $region20: #{tpu_custom_call.1} parent=11 // pred_fallthru
          _
        // Predicated region
        $region21: #{tpu_custom_call.1} parent=11 // pred_check
          %p361 = pneg %p161
        $region22: #{tpu_custom_call.1} parent=11 // pred_check_branch
          %363 = sbr.rel (%p361) target = $region24
        $region23: #{tpu_custom_call.1} parent=11 // pred_region
          %s365 = ssub.s32 256, 256
          %366 = vsyncadd [#allocation15], %s365
          %s367 = sshll.u32 [#allocation16], 4
          %s368 = int_to_ptr.vmem [resolvable:$true] %s367
          %373 = dma.hbm_to_vmem [thread:$0]  %s4, 256, %s368, [#allocation15], 64, 64, 4
        $region24: #{tpu_custom_call.1} parent=11 // pred_fallthru
          _
        // Predicated region
        $region25: #{tpu_custom_call.1} parent=11 // pred_check
          %p374 = pneg %p182
        $region26: #{tpu_custom_call.1} parent=11 // pred_check_branch
          %376 = sbr.rel (%p374) target = $region28
        $region27: #{tpu_custom_call.1} parent=11 // pred_region
          _
        $region28: #{tpu_custom_call.1} parent=11 // pred_fallthru
          _
        // Predicated region
        $region29: #{tpu_custom_call.1} parent=11 // pred_check
          %p377 = pneg %p203
        $region30: #{tpu_custom_call.1} parent=11 // pred_check_branch
          %379 = sbr.rel (%p377) target = $region32
        $region31: #{tpu_custom_call.1} parent=11 // pred_region
          %s381 = ssub.s32 256, 256
          %382 = vsyncadd [#allocation18], %s381
          %s383 = sshll.u32 [#allocation17], 4
          %s384 = int_to_ptr.vmem [resolvable:$true] %s383
          %389 = dma.hbm_to_vmem [thread:$0]  %s6, 256, %s384, [#allocation18], 64, 64, 4
        $region32: #{tpu_custom_call.1} parent=11 // pred_fallthru
          _
        // Predicated region
        $region33: #{tpu_custom_call.1} parent=11 // pred_check
          %p390 = pneg %p224
        $region34: #{tpu_custom_call.1} parent=11 // pred_check_branch
          %392 = sbr.rel (%p390) target = $region36
        $region35: #{tpu_custom_call.1} parent=11 // pred_region
          _
        $region36: #{tpu_custom_call.1} parent=11 // pred_fallthru
          _
        // Predicated region
        $region37: #{tpu_custom_call.1} parent=11 // pred_check
          %p393 = pneg %p245
        $region38: #{tpu_custom_call.1} parent=11 // pred_check_branch
          %395 = sbr.rel (%p393) target = $region40
        $region39: #{tpu_custom_call.1} parent=11 // pred_region
          %s397 = ssub.s32 256, 256
          %398 = vsyncadd [#allocation18], %s397
          %s399 = sshll.u32 [#allocation19], 4
          %s400 = int_to_ptr.vmem [resolvable:$true] %s399
          %405 = dma.hbm_to_vmem [thread:$0]  %s8, 256, %s400, [#allocation18], 64, 64, 4
        $region40: #{tpu_custom_call.1} parent=11 // pred_fallthru
          _
        // Predicated region
        $region41: #{tpu_custom_call.1} parent=11 // pred_check
          %p406 = pneg %p266
        $region42: #{tpu_custom_call.1} parent=11 // pred_check_branch
          %408 = sbr.rel (%p406) target = $region44
        $region43: #{tpu_custom_call.1} parent=11 // pred_region
          _
        $region44: #{tpu_custom_call.1} parent=11 // pred_fallthru
          _
      $region12: #{tpu_custom_call.1} parent=5 // pred_fallthru
        _
      %p409 = scmp.lt.s32.totalorder %s32, 4
      // Predicated region
      $region45: #{tpu_custom_call.1} parent=5 // pred_check
        %p410 = pneg %p409
      $region46: #{tpu_custom_call.1} parent=5 // pred_check_branch
        %412 = sbr.rel (%p410) target = $region48
      $region47: #{tpu_custom_call.1} parent=5 // pred_region
        // Predicated region
        $region49: #{tpu_custom_call.1} parent=47 // pred_check
          %p413 = pneg %p66
        $region50: #{tpu_custom_call.1} parent=47 // pred_check_branch
          %415 = sbr.rel (%p413) target = $region52
        $region51: #{tpu_custom_call.1} parent=47 // pred_region
          %s416 = sand.u32 %s56, 1
          %s417 = scalar_lea.sflag [#allocation9], %s416
          %s418 = sand.u32 %s56, 1
          %s419 = smul.addr %s418, 8
          %s420 = scalar_lea.vmem [#allocation8], %s419
          %s421 = smul.u32 2, %s40
          %s423 = ssub.s32 128, 128
          %424 = vsyncadd %s417, %s423
          %s425 = smul.addr %s39, 4
          %s426 = sadd.s32 %s421, %s425
          %s427 = smul.addr %s426, 64
          %s428 = scalar_lea.hbm %s0, %s427
          %s429 = sshll.u32 %s420, 4
          %s430 = int_to_ptr.vmem [resolvable:$true] %s429
          %435 = dma.hbm_to_vmem [thread:$0]  %s428, 128, %s430, %s417, 64, 64, 4
        $region52: #{tpu_custom_call.1} parent=47 // pred_fallthru
          _
        // Predicated region
        $region53: #{tpu_custom_call.1} parent=47 // pred_check
          %p436 = pneg %p92
        $region54: #{tpu_custom_call.1} parent=47 // pred_check_branch
          %438 = sbr.rel (%p436) target = $region56
        $region55: #{tpu_custom_call.1} parent=47 // pred_region
          %s439 = sand.u32 %s32, 1
          %s440 = scalar_lea.sflag [#allocation12], %s439
          %s441 = sand.u32 %s82, 1
          %s442 = smul.addr %s441, 4
          %s443 = scalar_lea.vmem [#allocation11], %s442
          %s445 = ssub.s32 64, 64
          %446 = vsyncadd %s440, %s445
          %s447 = smul.addr %s39, 64
          %s448 = scalar_lea.hbm %s1, %s447
          %s450 = sshll.u32 %s443, 4
          %s451 = int_to_ptr.vmem [resolvable:$true] %s450
          %453 = dma.hbm_to_vmem [thread:$0]  %s448, 64, %s451, %s440
        $region56: #{tpu_custom_call.1} parent=47 // pred_fallthru
          _
      $region48: #{tpu_custom_call.1} parent=5 // pred_fallthru
        _
      %p454 = scmp.le.s32.totalorder 1, %s32
      %p455 = scmp.lt.s32.totalorder %s32, 5
      %p456 = pnand %p454, %p455
      %p457 = pneg %p456
      // Predicated region
      $region57: #{tpu_custom_call.1} parent=5 // pred_check
        _
      $region58: #{tpu_custom_call.1} parent=5 // pred_check_branch
        %459 = sbr.rel (%p456) target = $region60
      $region59: #{tpu_custom_call.1} parent=5 // pred_region
        %s460 = ssub.s32 %s32, 1
        %s461 = sand.u32 %s59, 1
        %s462 = scalar_lea.sflag [#allocation9], %s461
        %s463 = sand.u32 %s59, 1
        %s464 = smul.addr %s463, 8
        %s465 = scalar_lea.vmem [#allocation8], %s464
        // Predicated region
        $region61: #{tpu_custom_call.1} parent=59 // pred_check
          %p466 = pneg %p72
        $region62: #{tpu_custom_call.1} parent=59 // pred_check_branch
          %468 = sbr.rel (%p466) target = $region64
        $region63: #{tpu_custom_call.1} parent=59 // pred_region
          %469 = dma.done %s462, 128
        $region64: #{tpu_custom_call.1} parent=59 // pred_fallthru
          _
        %s470 = sand.u32 %s37, 1
        %s471 = scalar_lea.sflag [#allocation12], %s470
        %s472 = sand.u32 %s85, 1
        %s473 = smul.addr %s472, 4
        %s474 = scalar_lea.vmem [#allocation11], %s473
        // Predicated region
        $region65: #{tpu_custom_call.1} parent=59 // pred_check
          %p475 = pneg %p98
        $region66: #{tpu_custom_call.1} parent=59 // pred_check_branch
          %477 = sbr.rel (%p475) target = $region68
        $region67: #{tpu_custom_call.1} parent=59 // pred_region
          %478 = dma.done %s471, 64
        $region68: #{tpu_custom_call.1} parent=59 // pred_fallthru
          _
        // Predicated region
        $region69: #{tpu_custom_call.1} parent=59 // pred_check
          %p479 = pneg %p119
        $region70: #{tpu_custom_call.1} parent=59 // pred_check_branch
          %481 = sbr.rel (%p479) target = $region72
        $region71: #{tpu_custom_call.1} parent=59 // pred_region
          %482 = dma.done [#allocation12], 256
        $region72: #{tpu_custom_call.1} parent=59 // pred_fallthru
          _
        // Predicated region
        $region73: #{tpu_custom_call.1} parent=59 // pred_check
          %p483 = pneg %p140
        $region74: #{tpu_custom_call.1} parent=59 // pred_check_branch
          %485 = sbr.rel (%p483) target = $region76
        $region75: #{tpu_custom_call.1} parent=59 // pred_region
          %486 = dma.done [#allocation15], 256
        $region76: #{tpu_custom_call.1} parent=59 // pred_fallthru
          _
        // Predicated region
        $region77: #{tpu_custom_call.1} parent=59 // pred_check
          %p487 = pneg %p161
        $region78: #{tpu_custom_call.1} parent=59 // pred_check_branch
          %489 = sbr.rel (%p487) target = $region80
        $region79: #{tpu_custom_call.1} parent=59 // pred_region
          %490 = dma.done [#allocation15], 256
        $region80: #{tpu_custom_call.1} parent=59 // pred_fallthru
          _
        // Predicated region
        $region81: #{tpu_custom_call.1} parent=59 // pred_check
          %p491 = pneg %p203
        $region82: #{tpu_custom_call.1} parent=59 // pred_check_branch
          %493 = sbr.rel (%p491) target = $region84
        $region83: #{tpu_custom_call.1} parent=59 // pred_region
          %494 = dma.done [#allocation18], 256
        $region84: #{tpu_custom_call.1} parent=59 // pred_fallthru
          _
        // Predicated region
        $region85: #{tpu_custom_call.1} parent=59 // pred_check
          %p495 = pneg %p245
        $region86: #{tpu_custom_call.1} parent=59 // pred_check_branch
          %497 = sbr.rel (%p495) target = $region88
        $region87: #{tpu_custom_call.1} parent=59 // pred_region
          %498 = dma.done [#allocation18], 256
        $region88: #{tpu_custom_call.1} parent=59 // pred_fallthru
          _
        %s499 = sand.u32 %s59, 1
        %s500 = scalar_lea.sflag [#allocation9], %s499
        %s501 = sand.u32 %s59, 1
        %s502 = smul.addr %s501, 8
        %s503 = scalar_lea.vmem [#allocation8], %s502
        %p504 = pneg %p72
        %p505 = pneg %p69
        %s506 = sand.u32 %s37, 1
        %s507 = scalar_lea.sflag [#allocation12], %s506
        %s508 = sand.u32 %s85, 1
        %s509 = smul.addr %s508, 4
        %s510 = scalar_lea.vmem [#allocation11], %s509
        %p511 = pneg %p98
        %p512 = pneg %p95
        %p513 = pneg %p119
        %p514 = pneg %p116
        %p515 = pneg %p140
        %p516 = pneg %p137
        %p517 = pneg %p161
        %p518 = pneg %p158
        %p519 = pneg %p182
        %p520 = pneg %p179
        %p521 = pneg %p203
        %p522 = pneg %p200
        %p523 = pneg %p224
        %p524 = pneg %p221
        %p525 = pneg %p245
        %p526 = pneg %p242
        %p527 = pneg %p266
        %p528 = pneg %p263
        %p529 = pneg %p294
        %p530 = pneg %p291
        %s531 = sand.u32 %s281, 1
        %s532 = scalar_lea.sflag [#allocation10], %s531
        %s533 = sand.u32 %s281, 1
        %s534 = smul.addr %s533, 16
        %s535 = scalar_lea.vmem [#allocation20], %s534
        %p536 = pneg %p320
        %p537 = pneg %p317
        %s538 = sand.u32 %s307, 1
        %s539 = scalar_lea.sflag [#allocation22], %s538
        %s540 = sand.u32 %s307, 1
        %s541 = smul.addr %s540, 8
        %s542 = scalar_lea.vmem [#allocation21], %s541
        %s543 = smul.u32 2, %s42
        %s544 = smul.u32 2, %s42
        %p547 = scmp.eq.s32.totalorder %s42, 0
        // Predicated region
        $region89: #{tpu_custom_call.1} parent=59 // pred_check
          %p548 = pneg %p547
        $region90: #{tpu_custom_call.1} parent=59 // pred_check_branch
          %550 = sbr.rel (%p548) target = $region92
        $region91: #{tpu_custom_call.1} parent=59 // pred_region
          %v551 = vld [vmem:[%s474] sm:$0xf]
          %v552 = vld [vmem:[#allocation16] sm:$0xf]
          %v553 = vld [vmem:[#allocation16 + $0x4] sm:$0xf]
          %v554 = vld [vmem:[#allocation16 + $0x8] sm:$0xf]
          %v555 = vld [vmem:[#allocation16 + $0xc] sm:$0xf]
          %v560 = vunpack.c.l.b16 %v552
          %v561 = vunpack.c.l.b16 %v553
          %v562 = vunpack.c.l.b16 %v554
          %v563 = vunpack.c.l.b16 %v555
          %v564 = vpack.c.b16 %v561, %v560
          %v565 = vpack.c.b16 %v563, %v562
          %vm568 = vcmask 261120
          %v570 = vsel %vm568, %v551, 0
          %572 = vmatprep.subr.bf16.mxu0 0
          %573 = vmatpush1.bf16.msra.mxu0 %v564
          %574 = vmatprep.subr.bf16.mxu0 0
          %575 = vmatpush1.bf16.msra.mxu0 %v565
          %576 = vmatprep.subr.bf16.mxu0 0
          %577 = vmatpush1.bf16.msra.mxu0 0
          %578 = vmatprep.subr.bf16.mxu0 0
          %579 = vmatpush1.bf16.msra.mxu0 0
          %580 = vmatprep.subr.bf16.mxu0 0
          %581 = vmatpush1.bf16.msra.mxu0 0
          %582 = vmatprep.subr.bf16.mxu0 0
          %583 = vmatpush1.bf16.msra.mxu0 0
          %584 = vmatprep.subr.bf16.mxu0 0
          %585 = vmatpush1.bf16.msra.mxu0 0
          %586 = vmatprep.subr.bf16.mxu0 0
          %587 = vmatpush1.bf16.msra.mxu0 0
          %588 = vmatprep.subr.bf16.mxu0 0
          %589 = vmatpush1.bf16.msra.mxu0 0
          %590 = vmatprep.subr.bf16.mxu0 0
          %591 = vmatpush1.bf16.msra.mxu0 0
          %592 = vmatprep.subr.bf16.mxu0 0
          %593 = vmatpush1.bf16.msra.mxu0 0
          %594 = vmatprep.subr.bf16.mxu0 0
          %595 = vmatpush1.bf16.msra.mxu0 0
          %596 = vmatprep.subr.bf16.mxu0 0
          %597 = vmatpush1.bf16.msra.mxu0 0
          %598 = vmatprep.subr.bf16.mxu0 0
          %599 = vmatpush1.bf16.msra.mxu0 0
          %600 = vmatprep.subr.bf16.mxu0 0
          %601 = vmatpush1.bf16.msra.mxu0 0
          %602 = vmatprep.subr.bf16.mxu0 0
          %603 = vmatpush1.bf16.msra.mxu0 0
          %604 = vmatprep.mubr.bf16.mxu0 0
          %605 = vmatmul.mubr.bf16.gmra.mrb[0].mxu0 %v570
          %v606 = vpop.f32.mrb[0].mxu0
          %v607 = vadd.f32 0.0, %v606
          %v608 = vpop.f32.mrb[0].mxu0
          %v609 = vpop.f32.mrb[0].mxu0
          %v610 = vpop.f32.mrb[0].mxu0
          %611 = vdwg.mxu0
          %v612 = vpack.c.bf16 %v607, %v607
          %vm613 = vcmask 257024
          %614 = vst.msk [vmem:[#allocation2] sm:$0xf] %vm613, %v612
          %v615 = vld [vmem:[%s5] sm:$0xf]
          %v616 = vld [vmem:[%s5 + $0x4] sm:$0xf]
          %v617 = vld [vmem:[%s5 + $0x8] sm:$0xf]
          %v618 = vld [vmem:[%s5 + $0xc] sm:$0xf]
          %v623 = vunpack.c.l.b16 %v615
          %v624 = vunpack.c.l.b16 %v616
          %v625 = vunpack.c.l.b16 %v617
          %v626 = vunpack.c.l.b16 %v618
          %v627 = vpack.c.b16 %v624, %v623
          %v628 = vpack.c.b16 %v626, %v625
          %631 = vmatprep.subr.bf16.mxu0 0
          %632 = vmatpush1.bf16.msra.mxu0 %v627
          %633 = vmatprep.subr.bf16.mxu0 0
          %634 = vmatpush1.bf16.msra.mxu0 %v628
          %635 = vmatprep.subr.bf16.mxu0 0
          %636 = vmatpush1.bf16.msra.mxu0 0
          %637 = vmatprep.subr.bf16.mxu0 0
          %638 = vmatpush1.bf16.msra.mxu0 0
          %639 = vmatprep.subr.bf16.mxu0 0
          %640 = vmatpush1.bf16.msra.mxu0 0
          %641 = vmatprep.subr.bf16.mxu0 0
          %642 = vmatpush1.bf16.msra.mxu0 0
          %643 = vmatprep.subr.bf16.mxu0 0
          %644 = vmatpush1.bf16.msra.mxu0 0
          %645 = vmatprep.subr.bf16.mxu0 0
          %646 = vmatpush1.bf16.msra.mxu0 0
          %647 = vmatprep.subr.bf16.mxu0 0
          %648 = vmatpush1.bf16.msra.mxu0 0
          %649 = vmatprep.subr.bf16.mxu0 0
          %650 = vmatpush1.bf16.msra.mxu0 0
          %651 = vmatprep.subr.bf16.mxu0 0
          %652 = vmatpush1.bf16.msra.mxu0 0
          %653 = vmatprep.subr.bf16.mxu0 0
          %654 = vmatpush1.bf16.msra.mxu0 0
          %655 = vmatprep.subr.bf16.mxu0 0
          %656 = vmatpush1.bf16.msra.mxu0 0
          %657 = vmatprep.subr.bf16.mxu0 0
          %658 = vmatpush1.bf16.msra.mxu0 0
          %659 = vmatprep.subr.bf16.mxu0 0
          %660 = vmatpush1.bf16.msra.mxu0 0
          %661 = vmatprep.subr.bf16.mxu0 0
          %662 = vmatpush1.bf16.msra.mxu0 0
          %663 = vmatprep.mubr.bf16.mxu0 0
          %664 = vmatmul.mubr.bf16.gmra.mrb[0].mxu0 %v570
          %v665 = vpop.f32.mrb[0].mxu0
          %v666 = vadd.f32 0.0, %v665
          %v667 = vpop.f32.mrb[0].mxu0
          %v668 = vpop.f32.mrb[0].mxu0
          %v669 = vpop.f32.mrb[0].mxu0
          %670 = vdwg.mxu0
          %v671 = vpack.c.bf16 %v666, %v666
          %672 = vst.msk [vmem:[#allocation3] sm:$0xf] %vm613, %v671
          %673 = vst.msk [vmem:[#allocation5] sm:$0xff] %vm568, 0.0
          %674 = vst.msk [vmem:[#allocation6] sm:$0xff] %vm568, 0.0
          %vm675 = vcmask 8192
          %676 = vst.msk [vmem:[#allocation7] sm:$0x1] %vm675, -1e+30
        $region92: #{tpu_custom_call.1} parent=59 // pred_fallthru
          _
        %v677 = vld [vmem:[%s465] sm:$0xf]
        %v678 = vld [vmem:[%s465 + $0x4] sm:$0xf]
        %v679 = vld [vmem:[#allocation13] sm:$0xf]
        %v680 = vld [vmem:[#allocation13 + $0x4] sm:$0xf]
        %v681 = vld [vmem:[#allocation13 + $0x8] sm:$0xf]
        %v682 = vld [vmem:[#allocation13 + $0xc] sm:$0xf]
        %v685 = vunpack.c.l.b16 %v677
        %v686 = vunpack.c.l.b16 %v678
        %v687 = vpack.c.b16 %v686, %v685
        %v692 = vunpack.c.l.b16 %v679
        %v693 = vunpack.c.l.b16 %v680
        %v694 = vunpack.c.l.b16 %v681
        %v695 = vunpack.c.l.b16 %v682
        %v696 = vpack.c.b16 %v693, %v692
        %v697 = vpack.c.b16 %v695, %v694
        %vm700 = vcmask 261120
        %v702 = vsel %vm700, %v687, 0
        %704 = vmatprep.subr.bf16.mxu0 0
        %705 = vmatpush1.bf16.msra.mxu0 %v696
        %706 = vmatprep.subr.bf16.mxu0 0
        %707 = vmatpush1.bf16.msra.mxu0 %v697
        %708 = vmatprep.subr.bf16.mxu0 0
        %709 = vmatpush1.bf16.msra.mxu0 0
        %710 = vmatprep.subr.bf16.mxu0 0
        %711 = vmatpush1.bf16.msra.mxu0 0
        %712 = vmatprep.subr.bf16.mxu0 0
        %713 = vmatpush1.bf16.msra.mxu0 0
        %714 = vmatprep.subr.bf16.mxu0 0
        %715 = vmatpush1.bf16.msra.mxu0 0
        %716 = vmatprep.subr.bf16.mxu0 0
        %717 = vmatpush1.bf16.msra.mxu0 0
        %718 = vmatprep.subr.bf16.mxu0 0
        %719 = vmatpush1.bf16.msra.mxu0 0
        %720 = vmatprep.subr.bf16.mxu0 0
        %721 = vmatpush1.bf16.msra.mxu0 0
        %722 = vmatprep.subr.bf16.mxu0 0
        %723 = vmatpush1.bf16.msra.mxu0 0
        %724 = vmatprep.subr.bf16.mxu0 0
        %725 = vmatpush1.bf16.msra.mxu0 0
        %726 = vmatprep.subr.bf16.mxu0 0
        %727 = vmatpush1.bf16.msra.mxu0 0
        %728 = vmatprep.subr.bf16.mxu0 0
        %729 = vmatpush1.bf16.msra.mxu0 0
        %730 = vmatprep.subr.bf16.mxu0 0
        %731 = vmatpush1.bf16.msra.mxu0 0
        %732 = vmatprep.subr.bf16.mxu0 0
        %733 = vmatpush1.bf16.msra.mxu0 0
        %734 = vmatprep.subr.bf16.mxu0 0
        %735 = vmatpush1.bf16.msra.mxu0 0
        %736 = vmatprep.mubr.bf16.mxu0 0
        %737 = vmatmul.mubr.bf16.gmra.mrb[0].mxu0 %v702
        %v738 = vpop.f32.mrb[0].mxu0
        %v739 = vadd.f32 0.0, %v738
        %v740 = vpop.f32.mrb[0].mxu0
        %v741 = vpop.f32.mrb[0].mxu0
        %v742 = vadd.f32 0.0, %v741
        %v743 = vpop.f32.mrb[0].mxu0
        %744 = vdwg.mxu0
        %v745 = vpack.c.bf16 %v742, %v739
        %v746 = vld [vmem:[#allocation14] sm:$0xf]
        %v747 = vld [vmem:[#allocation14 + $0x4] sm:$0xf]
        %v748 = vld [vmem:[#allocation14 + $0x8] sm:$0xf]
        %v749 = vld [vmem:[#allocation14 + $0xc] sm:$0xf]
        %v754 = vunpack.c.l.b16 %v746
        %v755 = vunpack.c.l.b16 %v747
        %v756 = vunpack.c.l.b16 %v748
        %v757 = vunpack.c.l.b16 %v749
        %v758 = vpack.c.b16 %v755, %v754
        %v759 = vpack.c.b16 %v757, %v756
        %762 = vmatprep.subr.bf16.mxu0 0
        %763 = vmatpush1.bf16.msra.mxu0 %v758
        %764 = vmatprep.subr.bf16.mxu0 0
        %765 = vmatpush1.bf16.msra.mxu0 %v759
        %766 = vmatprep.subr.bf16.mxu0 0
        %767 = vmatpush1.bf16.msra.mxu0 0
        %768 = vmatprep.subr.bf16.mxu0 0
        %769 = vmatpush1.bf16.msra.mxu0 0
        %770 = vmatprep.subr.bf16.mxu0 0
        %771 = vmatpush1.bf16.msra.mxu0 0
        %772 = vmatprep.subr.bf16.mxu0 0
        %773 = vmatpush1.bf16.msra.mxu0 0
        %774 = vmatprep.subr.bf16.mxu0 0
        %775 = vmatpush1.bf16.msra.mxu0 0
        %776 = vmatprep.subr.bf16.mxu0 0
        %777 = vmatpush1.bf16.msra.mxu0 0
        %778 = vmatprep.subr.bf16.mxu0 0
        %779 = vmatpush1.bf16.msra.mxu0 0
        %780 = vmatprep.subr.bf16.mxu0 0
        %781 = vmatpush1.bf16.msra.mxu0 0
        %782 = vmatprep.subr.bf16.mxu0 0
        %783 = vmatpush1.bf16.msra.mxu0 0
        %784 = vmatprep.subr.bf16.mxu0 0
        %785 = vmatpush1.bf16.msra.mxu0 0
        %786 = vmatprep.subr.bf16.mxu0 0
        %787 = vmatpush1.bf16.msra.mxu0 0
        %788 = vmatprep.subr.bf16.mxu0 0
        %789 = vmatpush1.bf16.msra.mxu0 0
        %790 = vmatprep.subr.bf16.mxu0 0
        %791 = vmatpush1.bf16.msra.mxu0 0
        %792 = vmatprep.subr.bf16.mxu0 0
        %793 = vmatpush1.bf16.msra.mxu0 0
        %794 = vmatprep.mubr.bf16.mxu0 0
        %795 = vmatmul.mubr.bf16.gmra.mrb[0].mxu0 %v702
        %v796 = vpop.f32.mrb[0].mxu0
        %v797 = vadd.f32 0.0, %v796
        %v798 = vpop.f32.mrb[0].mxu0
        %v799 = vpop.f32.mrb[0].mxu0
        %v800 = vadd.f32 0.0, %v799
        %v801 = vpop.f32.mrb[0].mxu0
        %802 = vdwg.mxu0
        %v803 = vpack.c.bf16 %v800, %v797
        %v804 = vld [vmem:[#allocation2] sm:$0xf]
        %v805 = vld [vmem:[#allocation3] sm:$0xf]
        %vm806 = vcmask 130048
        %v808 = vsel %vm806, %v745, 0
        %v811 = vsel %vm806, %v804, 0
        %813 = vmatprep.subr.bf16.mxu0 0
        %814 = vmatpush1.bf16.xpose.msra.mxu0 %v811
        %815 = vmatprep.subr.bf16.mxu0 0
        %816 = vmatpush1.bf16.xpose.msra.mxu0 0
        %817 = vmatprep.subr.bf16.mxu0 0
        %818 = vmatpush1.bf16.xpose.msra.mxu0 0
        %819 = vmatprep.subr.bf16.mxu0 0
        %820 = vmatpush1.bf16.xpose.msra.mxu0 0
        %821 = vmatprep.subr.bf16.mxu0 0
        %822 = vmatpush1.bf16.xpose.msra.mxu0 0
        %823 = vmatprep.subr.bf16.mxu0 0
        %824 = vmatpush1.bf16.xpose.msra.mxu0 0
        %825 = vmatprep.subr.bf16.mxu0 0
        %826 = vmatpush1.bf16.xpose.msra.mxu0 0
        %827 = vmatprep.subr.bf16.mxu0 0
        %828 = vmatpush1.bf16.xpose.msra.mxu0 0
        %829 = vmatprep.subr.bf16.mxu0 0
        %830 = vmatpush1.bf16.xpose.msra.mxu0 0
        %831 = vmatprep.subr.bf16.mxu0 0
        %832 = vmatpush1.bf16.xpose.msra.mxu0 0
        %833 = vmatprep.subr.bf16.mxu0 0
        %834 = vmatpush1.bf16.xpose.msra.mxu0 0
        %835 = vmatprep.subr.bf16.mxu0 0
        %836 = vmatpush1.bf16.xpose.msra.mxu0 0
        %837 = vmatprep.subr.bf16.mxu0 0
        %838 = vmatpush1.bf16.xpose.msra.mxu0 0
        %839 = vmatprep.subr.bf16.mxu0 0
        %840 = vmatpush1.bf16.xpose.msra.mxu0 0
        %841 = vmatprep.subr.bf16.mxu0 0
        %842 = vmatpush1.bf16.xpose.msra.mxu0 0
        %843 = vmatprep.subr.bf16.mxu0 0
        %844 = vmatpush1.bf16.xpose.msra.mxu0 0
        %845 = vmatprep.mubr.bf16.mxu0 0
        %846 = vmatmul.mubr.bf16.gmra.mrb[0].mxu0 %v808
        %v847 = vpop.f32.mrb[0].mxu0
        %v848 = vadd.f32 0.0, %v847
        %v849 = vpop.f32.mrb[0].mxu0
        %v850 = vpop.f32.mrb[0].mxu0
        %v851 = vadd.f32 0.0, %v850
        %v852 = vpop.f32.mrb[0].mxu0
        %853 = vdwg.mxu0
        %vm854 = vcmask 64512
        %v855 = vsel %vm854, %v848, -inf
        %856 = vmax.xlane.f32.xlu0 %v855
        %v857 = vpop.xlane.xlu0 %856
        %v858 = vsel %vm854, %v851, -inf
        %859 = vmax.xlane.f32.xlu0 %v858
        %v860 = vpop.xlane.xlu0 %859
        %v861 = vmax.f32 %v857, %v860
        %v862 = vrot.slane %v861, 4
        %v863 = vmax.f32 %v861, %v862
        %v864 = vrot.slane %v863, 2
        %v865 = vmax.f32 %v863, %v864
        %v866 = vrot.slane %v865, 1
        %v867 = vmax.f32 %v865, %v866
        %v868 = vld [vmem:[#allocation7] sm:$0x1]
        %v869 = vmax.f32 %v868, %v867
        %vm870 = vcmask 0
        %871 = vst.msk [vmem:[#allocation7] sm:$0x1] %vm870, %v869
        %v872 = vsub.f32 %v868, %v869
        %v873 = vmul.f32 %v872, 1.442695
        %v874 = vpow.pop %v873
        %v876 = vlaneseq
        %v877 = vshrl.u32 %v876, 7
        %v878 = vsub.s32 0, %v877
        %v879 = vrot.slane %v869, %v878
        %880 = vset.pattern.permute.xlu0 0
        %881 = vperm.xlu0 %880, %v879
        %v882 = vpop.permute.xlu0 %881
        %v884 = vsub.f32 %v848, %v882
        %v885 = vsub.f32 %v851, %v882
        %v886 = vmul.f32 %v884, 1.442695
        %v887 = vpow.pop %v886
        %v888 = vmul.f32 %v885, 1.442695
        %v889 = vpow.pop %v888
        %v890 = vpack.c.bf16 %v889, %v887
        %v892 = vsel %vm854, %v890, 0
        %vm894 = vcmask 1043456
        %v896 = vsel %vm894, %v805, 0
        %898 = vmatprep.subr.bf16.mxu0 0
        %899 = vmatpush1.bf16.msra.mxu0 %v896
        %900 = vmatprep.subr.bf16.mxu0 0
        %901 = vmatpush1.bf16.msra.mxu0 0
        %902 = vmatprep.subr.bf16.mxu0 0
        %903 = vmatpush1.bf16.msra.mxu0 0
        %904 = vmatprep.subr.bf16.mxu0 0
        %905 = vmatpush1.bf16.msra.mxu0 0
        %906 = vmatprep.subr.bf16.mxu0 0
        %907 = vmatpush1.bf16.msra.mxu0 0
        %908 = vmatprep.subr.bf16.mxu0 0
        %909 = vmatpush1.bf16.msra.mxu0 0
        %910 = vmatprep.subr.bf16.mxu0 0
        %911 = vmatpush1.bf16.msra.mxu0 0
        %912 = vmatprep.subr.bf16.mxu0 0
        %913 = vmatpush1.bf16.msra.mxu0 0
        %914 = vmatprep.subr.bf16.mxu0 0
        %915 = vmatpush1.bf16.msra.mxu0 0
        %916 = vmatprep.subr.bf16.mxu0 0
        %917 = vmatpush1.bf16.msra.mxu0 0
        %918 = vmatprep.subr.bf16.mxu0 0
        %919 = vmatpush1.bf16.msra.mxu0 0
        %920 = vmatprep.subr.bf16.mxu0 0
        %921 = vmatpush1.bf16.msra.mxu0 0
        %922 = vmatprep.subr.bf16.mxu0 0
        %923 = vmatpush1.bf16.msra.mxu0 0
        %924 = vmatprep.subr.bf16.mxu0 0
        %925 = vmatpush1.bf16.msra.mxu0 0
        %926 = vmatprep.subr.bf16.mxu0 0
        %927 = vmatpush1.bf16.msra.mxu0 0
        %928 = vmatprep.subr.bf16.mxu0 0
        %929 = vmatpush1.bf16.msra.mxu0 0
        %930 = vmatprep.mubr.bf16.mxu0 0
        %931 = vmatmul.mubr.bf16.gmra.mrb[0].mxu0 %v892
        %v932 = vpop.f32.mrb[0].mxu0
        %v933 = vadd.f32 0.0, %v932
        %v934 = vpop.f32.mrb[0].mxu0
        %v935 = vpop.f32.mrb[0].mxu0
        %v936 = vadd.f32 0.0, %v935
        %v937 = vpop.f32.mrb[0].mxu0
        %938 = vdwg.mxu0
        %v940 = vsel %vm894, 1065369472, 0
        %942 = vmatprep.subr.bf16.mxu0 0
        %943 = vmatpush1.bf16.msra.mxu0 %v940
        %944 = vmatprep.subr.bf16.mxu0 0
        %945 = vmatpush1.bf16.msra.mxu0 0
        %946 = vmatprep.subr.bf16.mxu0 0
        %947 = vmatpush1.bf16.msra.mxu0 0
        %948 = vmatprep.subr.bf16.mxu0 0
        %949 = vmatpush1.bf16.msra.mxu0 0
        %950 = vmatprep.subr.bf16.mxu0 0
        %951 = vmatpush1.bf16.msra.mxu0 0
        %952 = vmatprep.subr.bf16.mxu0 0
        %953 = vmatpush1.bf16.msra.mxu0 0
        %954 = vmatprep.subr.bf16.mxu0 0
        %955 = vmatpush1.bf16.msra.mxu0 0
        %956 = vmatprep.subr.bf16.mxu0 0
        %957 = vmatpush1.bf16.msra.mxu0 0
        %958 = vmatprep.subr.bf16.mxu0 0
        %959 = vmatpush1.bf16.msra.mxu0 0
        %960 = vmatprep.subr.bf16.mxu0 0
        %961 = vmatpush1.bf16.msra.mxu0 0
        %962 = vmatprep.subr.bf16.mxu0 0
        %963 = vmatpush1.bf16.msra.mxu0 0
        %964 = vmatprep.subr.bf16.mxu0 0
        %965 = vmatpush1.bf16.msra.mxu0 0
        %966 = vmatprep.subr.bf16.mxu0 0
        %967 = vmatpush1.bf16.msra.mxu0 0
        %968 = vmatprep.subr.bf16.mxu0 0
        %969 = vmatpush1.bf16.msra.mxu0 0
        %970 = vmatprep.subr.bf16.mxu0 0
        %971 = vmatpush1.bf16.msra.mxu0 0
        %972 = vmatprep.subr.bf16.mxu0 0
        %973 = vmatpush1.bf16.msra.mxu0 0
        %974 = vmatprep.mubr.bf16.mxu0 0
        %975 = vmatmul.mubr.bf16.gmra.mrb[0].mxu0 %v892
        %v976 = vpop.f32.mrb[0].mxu0
        %v977 = vadd.f32 0.0, %v976
        %v978 = vpop.f32.mrb[0].mxu0
        %v979 = vpop.f32.mrb[0].mxu0
        %v980 = vadd.f32 0.0, %v979
        %v981 = vpop.f32.mrb[0].mxu0
        %982 = vdwg.mxu0
        %v983 = vmax.f32 %v977, 1e-30
        %v984 = vmax.f32 %v980, 1e-30
        %v985 = vrcp.pop %v983
        %v986 = vrcp.pop %v984
        %988 = vset.pattern.permute.xlu0 0
        %989 = vperm.xlu0 %988, %v985
        %v990 = vpop.permute.xlu0 %989
        %993 = vset.pattern.permute.xlu0 0
        %994 = vperm.xlu0 %993, %v986
        %v995 = vpop.permute.xlu0 %994
        %v997 = vmul.f32 %v933, %v990
        %v998 = vmul.f32 %v936, %v995
        %v999 = vpack.c.bf16 %v998, %v997
        %1000 = vst.msk [vmem:[#allocation4] sm:$0xff] %vm806, %v999
        %1001 = vxpose.xlu0.c.b16.start [1/8] %v890, 128
        %1002 = vxpose.xlu0.c.b16.cont [2/8] 0, 128
        %1003 = vxpose.xlu0.c.b16.cont [3/8] 0, 128
        %1004 = vxpose.xlu0.c.b16.cont [4/8] 0, 128
        %1005 = vxpose.xlu0.c.b16.cont [5/8] 0, 128
        %1006 = vxpose.xlu0.c.b16.cont [6/8] 0, 128
        %1007 = vxpose.xlu0.c.b16.cont [7/8] 0, 128
        %1008 = vxpose.xlu0.c.b16.end [8/8] 0, 128
        %v1009 = vpop.trf.xlu0
        %v1010 = vpop.trf.xlu0
        %v1011 = vpop.trf.xlu0
        %v1012 = vpop.trf.xlu0
        %v1013 = vpop.trf.xlu0
        %v1014 = vpop.trf.xlu0
        %v1015 = vpop.trf.xlu0
        %v1016 = vpop.trf.xlu0
        %v1018 = vsel %vm806, %v1009, 0
        %1020 = vmatprep.subr.bf16.mxu0 0
        %1021 = vmatpush1.bf16.msra.mxu0 %v803
        %1022 = vmatprep.subr.bf16.mxu0 0
        %1023 = vmatpush1.bf16.msra.mxu0 0
        %1024 = vmatprep.subr.bf16.mxu0 0
        %1025 = vmatpush1.bf16.msra.mxu0 0
        %1026 = vmatprep.subr.bf16.mxu0 0
        %1027 = vmatpush1.bf16.msra.mxu0 0
        %1028 = vmatprep.subr.bf16.mxu0 0
        %1029 = vmatpush1.bf16.msra.mxu0 0
        %1030 = vmatprep.subr.bf16.mxu0 0
        %1031 = vmatpush1.bf16.msra.mxu0 0
        %1032 = vmatprep.subr.bf16.mxu0 0
        %1033 = vmatpush1.bf16.msra.mxu0 0
        %1034 = vmatprep.subr.bf16.mxu0 0
        %1035 = vmatpush1.bf16.msra.mxu0 0
        %1036 = vmatprep.subr.bf16.mxu0 0
        %1037 = vmatpush1.bf16.msra.mxu0 0
        %1038 = vmatprep.subr.bf16.mxu0 0
        %1039 = vmatpush1.bf16.msra.mxu0 0
        %1040 = vmatprep.subr.bf16.mxu0 0
        %1041 = vmatpush1.bf16.msra.mxu0 0
        %1042 = vmatprep.subr.bf16.mxu0 0
        %1043 = vmatpush1.bf16.msra.mxu0 0
        %1044 = vmatprep.subr.bf16.mxu0 0
        %1045 = vmatpush1.bf16.msra.mxu0 0
        %1046 = vmatprep.subr.bf16.mxu0 0
        %1047 = vmatpush1.bf16.msra.mxu0 0
        %1048 = vmatprep.subr.bf16.mxu0 0
        %1049 = vmatpush1.bf16.msra.mxu0 0
        %1050 = vmatprep.subr.bf16.mxu0 0
        %1051 = vmatpush1.bf16.msra.mxu0 0
        %1052 = vmatprep.mubr.bf16.mxu0 0
        %1053 = vmatmul.mubr.bf16.gmra.mrb[0].mxu0 %v1018
        %v1054 = vpop.f32.mrb[0].mxu0
        %v1055 = vadd.f32 0.0, %v1054
        %v1056 = vpop.f32.mrb[0].mxu0
        %v1057 = vpop.f32.mrb[0].mxu0
        %v1058 = vpop.f32.mrb[0].mxu0
        %1059 = vdwg.mxu0
        %1060 = vmatprep.subr.bf16.mxu0 0
        %1061 = vmatpush1.bf16.msra.mxu0 1065369472
        %1062 = vmatprep.subr.bf16.mxu0 0
        %1063 = vmatpush1.bf16.msra.mxu0 0
        %1064 = vmatprep.subr.bf16.mxu0 0
        %1065 = vmatpush1.bf16.msra.mxu0 0
        %1066 = vmatprep.subr.bf16.mxu0 0
        %1067 = vmatpush1.bf16.msra.mxu0 0
        %1068 = vmatprep.subr.bf16.mxu0 0
        %1069 = vmatpush1.bf16.msra.mxu0 0
        %1070 = vmatprep.subr.bf16.mxu0 0
        %1071 = vmatpush1.bf16.msra.mxu0 0
        %1072 = vmatprep.subr.bf16.mxu0 0
        %1073 = vmatpush1.bf16.msra.mxu0 0
        %1074 = vmatprep.subr.bf16.mxu0 0
        %1075 = vmatpush1.bf16.msra.mxu0 0
        %1076 = vmatprep.subr.bf16.mxu0 0
        %1077 = vmatpush1.bf16.msra.mxu0 0
        %1078 = vmatprep.subr.bf16.mxu0 0
        %1079 = vmatpush1.bf16.msra.mxu0 0
        %1080 = vmatprep.subr.bf16.mxu0 0
        %1081 = vmatpush1.bf16.msra.mxu0 0
        %1082 = vmatprep.subr.bf16.mxu0 0
        %1083 = vmatpush1.bf16.msra.mxu0 0
        %1084 = vmatprep.subr.bf16.mxu0 0
        %1085 = vmatpush1.bf16.msra.mxu0 0
        %1086 = vmatprep.subr.bf16.mxu0 0
        %1087 = vmatpush1.bf16.msra.mxu0 0
        %1088 = vmatprep.subr.bf16.mxu0 0
        %1089 = vmatpush1.bf16.msra.mxu0 0
        %1090 = vmatprep.subr.bf16.mxu0 0
        %1091 = vmatpush1.bf16.msra.mxu0 0
        %1092 = vmatprep.mubr.bf16.mxu0 0
        %1093 = vmatmul.mubr.bf16.gmra.mrb[0].mxu0 %v1018
        %v1094 = vpop.f32.mrb[0].mxu0
        %v1095 = vadd.f32 0.0, %v1094
        %v1096 = vpop.f32.mrb[0].mxu0
        %v1097 = vpop.f32.mrb[0].mxu0
        %v1098 = vpop.f32.mrb[0].mxu0
        %1099 = vdwg.mxu0
        %v1100 = vld [vmem:[#allocation5] sm:$0xff]
        %v1102 = vlaneseq
        %v1103 = vshrl.u32 %v1102, 7
        %v1104 = vsub.s32 0, %v1103
        %v1105 = vrot.slane %v874, %v1104
        %1106 = vset.pattern.permute.xlu0 0
        %1107 = vperm.xlu0 %1106, %v1105
        %v1108 = vpop.permute.xlu0 %1107
        %v1110 = vmul.f32 %v1100, %v1108
        %v1111 = vadd.f32 %v1110, %v1055
        %1112 = vst.msk [vmem:[#allocation5] sm:$0xff] %vm806, %v1111
        %v1113 = vld [vmem:[#allocation6] sm:$0xff]
        %v1114 = vmul.f32 %v1113, %v1108
        %1116 = vset.pattern.permute.xlu0 0
        %1117 = vperm.xlu0 %1116, %v1095
        %v1118 = vpop.permute.xlu0 %1117
        %v1120 = vadd.f32 %v1114, %v1118
        %1121 = vst.msk [vmem:[#allocation6] sm:$0xff] %vm806, %v1120
        %v1122 = vld [vmem:[#allocation2] sm:$0xf]
        %v1123 = vld [vmem:[#allocation3] sm:$0xf]
        %1125 = vrot.lane.b32.xlu0 %v745, 112
        %v1126 = vpop.permute.xlu0 %1125
        %v1128 = vunpack.c.l.b16 %v1122
        %v1129 = vpack.c.b16 %v1128, %v1128
        %1130 = vrot.lane.b32.xlu0 %v1129, 112
        %v1131 = vpop.permute.xlu0 %1130
        %v1133 = vsel %vm806, %v1126, 0
        %v1136 = vsel %vm806, %v1131, 0
        %1138 = vmatprep.subr.bf16.mxu0 0
        %1139 = vmatpush1.bf16.xpose.msra.mxu0 %v1136
        %1140 = vmatprep.subr.bf16.mxu0 0
        %1141 = vmatpush1.bf16.xpose.msra.mxu0 0
        %1142 = vmatprep.subr.bf16.mxu0 0
        %1143 = vmatpush1.bf16.xpose.msra.mxu0 0
        %1144 = vmatprep.subr.bf16.mxu0 0
        %1145 = vmatpush1.bf16.xpose.msra.mxu0 0
        %1146 = vmatprep.subr.bf16.mxu0 0
        %1147 = vmatpush1.bf16.xpose.msra.mxu0 0
        %1148 = vmatprep.subr.bf16.mxu0 0
        %1149 = vmatpush1.bf16.xpose.msra.mxu0 0
        %1150 = vmatprep.subr.bf16.mxu0 0
        %1151 = vmatpush1.bf16.xpose.msra.mxu0 0
        %1152 = vmatprep.subr.bf16.mxu0 0
        %1153 = vmatpush1.bf16.xpose.msra.mxu0 0
        %1154 = vmatprep.subr.bf16.mxu0 0
        %1155 = vmatpush1.bf16.xpose.msra.mxu0 0
        %1156 = vmatprep.subr.bf16.mxu0 0
        %1157 = vmatpush1.bf16.xpose.msra.mxu0 0
        %1158 = vmatprep.subr.bf16.mxu0 0
        %1159 = vmatpush1.bf16.xpose.msra.mxu0 0
        %1160 = vmatprep.subr.bf16.mxu0 0
        %1161 = vmatpush1.bf16.xpose.msra.mxu0 0
        %1162 = vmatprep.subr.bf16.mxu0 0
        %1163 = vmatpush1.bf16.xpose.msra.mxu0 0
        %1164 = vmatprep.subr.bf16.mxu0 0
        %1165 = vmatpush1.bf16.xpose.msra.mxu0 0
        %1166 = vmatprep.subr.bf16.mxu0 0
        %1167 = vmatpush1.bf16.xpose.msra.mxu0 0
        %1168 = vmatprep.subr.bf16.mxu0 0
        %1169 = vmatpush1.bf16.xpose.msra.mxu0 0
        %1170 = vmatprep.mubr.bf16.mxu0 0
        %1171 = vmatmul.mubr.bf16.gmra.mrb[0].mxu0 %v1133
        %v1172 = vpop.f32.mrb[0].mxu0
        %v1173 = vadd.f32 0.0, %v1172
        %v1174 = vpop.f32.mrb[0].mxu0
        %v1175 = vpop.f32.mrb[0].mxu0
        %v1176 = vadd.f32 0.0, %v1175
        %v1177 = vpop.f32.mrb[0].mxu0
        %1178 = vdwg.mxu0
        %v1179 = vsel %vm854, %v1173, -inf
        %1180 = vmax.xlane.f32.xlu0 %v1179
        %v1181 = vpop.xlane.xlu0 %1180
        %v1182 = vsel %vm854, %v1176, -inf
        %1183 = vmax.xlane.f32.xlu0 %v1182
        %v1184 = vpop.xlane.xlu0 %1183
        %v1185 = vmax.f32 %v1181, %v1184
        %v1186 = vrot.slane %v1185, 4
        %v1187 = vmax.f32 %v1185, %v1186
        %v1188 = vrot.slane %v1187, 2
        %v1189 = vmax.f32 %v1187, %v1188
        %v1190 = vrot.slane %v1189, 1
        %v1191 = vmax.f32 %v1189, %v1190
        %v1192 = vld [vmem:[#allocation7] sm:$0x1]
        %v1193 = vmax.f32 %v1192, %v1191
        %vm1194 = vcmask 8200
        %1195 = vst.msk [vmem:[#allocation7] sm:$0x1] %vm1194, %v1193
        %v1196 = vsub.f32 %v1192, %v1193
        %v1197 = vmul.f32 %v1196, 1.442695
        %v1198 = vpow.pop %v1197
        %v1200 = vlaneseq
        %v1201 = vshrl.u32 %v1200, 7
        %v1202 = vsub.s32 0, %v1201
        %v1203 = vrot.slane %v1193, %v1202
        %1204 = vset.pattern.permute.xlu0 1
        %1205 = vperm.xlu0 %1204, %v1203
        %v1206 = vpop.permute.xlu0 %1205
        %v1208 = vsub.f32 %v1173, %v1206
        %v1209 = vsub.f32 %v1176, %v1206
        %v1210 = vmul.f32 %v1208, 1.442695
        %v1211 = vpow.pop %v1210
        %v1212 = vmul.f32 %v1209, 1.442695
        %v1213 = vpow.pop %v1212
        %v1214 = vpack.c.bf16 %v1213, %v1211
        %v1216 = vunpack.c.l.b16 %v1123
        %v1217 = vpack.c.b16 %v1216, %v1216
        %1218 = vrot.lane.b32.xlu0 %v1217, 112
        %v1219 = vpop.permute.xlu0 %1218
        %v1221 = vsel %vm854, %v1214, 0
        %v1224 = vsel %vm894, %v1219, 0
        %1226 = vmatprep.subr.bf16.mxu0 0
        %1227 = vmatpush1.bf16.msra.mxu0 %v1224
        %1228 = vmatprep.subr.bf16.mxu0 0
        %1229 = vmatpush1.bf16.msra.mxu0 0
        %1230 = vmatprep.subr.bf16.mxu0 0
        %1231 = vmatpush1.bf16.msra.mxu0 0
        %1232 = vmatprep.subr.bf16.mxu0 0
        %1233 = vmatpush1.bf16.msra.mxu0 0
        %1234 = vmatprep.subr.bf16.mxu0 0
        %1235 = vmatpush1.bf16.msra.mxu0 0
        %1236 = vmatprep.subr.bf16.mxu0 0
        %1237 = vmatpush1.bf16.msra.mxu0 0
        %1238 = vmatprep.subr.bf16.mxu0 0
        %1239 = vmatpush1.bf16.msra.mxu0 0
        %1240 = vmatprep.subr.bf16.mxu0 0
        %1241 = vmatpush1.bf16.msra.mxu0 0
        %1242 = vmatprep.subr.bf16.mxu0 0
        %1243 = vmatpush1.bf16.msra.mxu0 0
        %1244 = vmatprep.subr.bf16.mxu0 0
        %1245 = vmatpush1.bf16.msra.mxu0 0
        %1246 = vmatprep.subr.bf16.mxu0 0
        %1247 = vmatpush1.bf16.msra.mxu0 0
        %1248 = vmatprep.subr.bf16.mxu0 0
        %1249 = vmatpush1.bf16.msra.mxu0 0
        %1250 = vmatprep.subr.bf16.mxu0 0
        %1251 = vmatpush1.bf16.msra.mxu0 0
        %1252 = vmatprep.subr.bf16.mxu0 0
        %1253 = vmatpush1.bf16.msra.mxu0 0
        %1254 = vmatprep.subr.bf16.mxu0 0
        %1255 = vmatpush1.bf16.msra.mxu0 0
        %1256 = vmatprep.subr.bf16.mxu0 0
        %1257 = vmatpush1.bf16.msra.mxu0 0
        %1258 = vmatprep.mubr.bf16.mxu0 0
        %1259 = vmatmul.mubr.bf16.gmra.mrb[0].mxu0 %v1221
        %v1260 = vpop.f32.mrb[0].mxu0
        %v1261 = vadd.f32 0.0, %v1260
        %v1262 = vpop.f32.mrb[0].mxu0
        %v1263 = vpop.f32.mrb[0].mxu0
        %v1264 = vadd.f32 0.0, %v1263
        %v1265 = vpop.f32.mrb[0].mxu0
        %1266 = vdwg.mxu0
        %1267 = vmatprep.subr.bf16.mxu0 0
        %1268 = vmatpush1.bf16.msra.mxu0 %v940
        %1269 = vmatprep.subr.bf16.mxu0 0
        %1270 = vmatpush1.bf16.msra.mxu0 0
        %1271 = vmatprep.subr.bf16.mxu0 0
        %1272 = vmatpush1.bf16.msra.mxu0 0
        %1273 = vmatprep.subr.bf16.mxu0 0
        %1274 = vmatpush1.bf16.msra.mxu0 0
        %1275 = vmatprep.subr.bf16.mxu0 0
        %1276 = vmatpush1.bf16.msra.mxu0 0
        %1277 = vmatprep.subr.bf16.mxu0 0
        %1278 = vmatpush1.bf16.msra.mxu0 0
        %1279 = vmatprep.subr.bf16.mxu0 0
        %1280 = vmatpush1.bf16.msra.mxu0 0
        %1281 = vmatprep.subr.bf16.mxu0 0
        %1282 = vmatpush1.bf16.msra.mxu0 0
        %1283 = vmatprep.subr.bf16.mxu0 0
        %1284 = vmatpush1.bf16.msra.mxu0 0
        %1285 = vmatprep.subr.bf16.mxu0 0
        %1286 = vmatpush1.bf16.msra.mxu0 0
        %1287 = vmatprep.subr.bf16.mxu0 0
        %1288 = vmatpush1.bf16.msra.mxu0 0
        %1289 = vmatprep.subr.bf16.mxu0 0
        %1290 = vmatpush1.bf16.msra.mxu0 0
        %1291 = vmatprep.subr.bf16.mxu0 0
        %1292 = vmatpush1.bf16.msra.mxu0 0
        %1293 = vmatprep.subr.bf16.mxu0 0
        %1294 = vmatpush1.bf16.msra.mxu0 0
        %1295 = vmatprep.subr.bf16.mxu0 0
        %1296 = vmatpush1.bf16.msra.mxu0 0
        %1297 = vmatprep.subr.bf16.mxu0 0
        %1298 = vmatpush1.bf16.msra.mxu0 0
        %1299 = vmatprep.mubr.bf16.mxu0 0
        %1300 = vmatmul.mubr.bf16.gmra.mrb[0].mxu0 %v1221
        %v1301 = vpop.f32.mrb[0].mxu0
        %v1302 = vadd.f32 0.0, %v1301
        %v1303 = vpop.f32.mrb[0].mxu0
        %v1304 = vpop.f32.mrb[0].mxu0
        %v1305 = vadd.f32 0.0, %v1304
        %v1306 = vpop.f32.mrb[0].mxu0
        %1307 = vdwg.mxu0
        %v1308 = vmax.f32 %v1302, 1e-30
        %v1309 = vmax.f32 %v1305, 1e-30
        %v1310 = vrcp.pop %v1308
        %v1311 = vrcp.pop %v1309
        %1313 = vset.pattern.permute.xlu0 0
        %1314 = vperm.xlu0 %1313, %v1310
        %v1315 = vpop.permute.xlu0 %1314
        %1318 = vset.pattern.permute.xlu0 0
        %1319 = vperm.xlu0 %1318, %v1311
        %v1320 = vpop.permute.xlu0 %1319
        %v1322 = vmul.f32 %v1261, %v1315
        %v1323 = vmul.f32 %v1264, %v1320
        %v1324 = vpack.c.bf16 %v1323, %v1322
        %1326 = vrot.lane.b32.xlu0 %v1324, 16
        %v1327 = vpop.permute.xlu0 %1326
        %vm1329 = vcmask 261248
        %1330 = vst.msk [vmem:[#allocation4] sm:$0xff] %vm1329, %v1327
        %1331 = vxpose.xlu0.c.b16.start [1/8] %v1214, 128
        %1332 = vxpose.xlu0.c.b16.cont [2/8] 0, 128
        %1333 = vxpose.xlu0.c.b16.cont [3/8] 0, 128
        %1334 = vxpose.xlu0.c.b16.cont [4/8] 0, 128
        %1335 = vxpose.xlu0.c.b16.cont [5/8] 0, 128
        %1336 = vxpose.xlu0.c.b16.cont [6/8] 0, 128
        %1337 = vxpose.xlu0.c.b16.cont [7/8] 0, 128
        %1338 = vxpose.xlu0.c.b16.end [8/8] 0, 128
        %v1339 = vpop.trf.xlu0
        %v1340 = vpop.trf.xlu0
        %v1341 = vpop.trf.xlu0
        %v1342 = vpop.trf.xlu0
        %v1343 = vpop.trf.xlu0
        %v1344 = vpop.trf.xlu0
        %v1345 = vpop.trf.xlu0
        %v1346 = vpop.trf.xlu0
        %1348 = vrot.lane.b32.xlu0 %v803, 112
        %v1349 = vpop.permute.xlu0 %1348
        %v1352 = vsel %vm806, %v1339, 0
        %1354 = vmatprep.subr.bf16.mxu0 0
        %1355 = vmatpush1.bf16.msra.mxu0 %v1349
        %1356 = vmatprep.subr.bf16.mxu0 0
        %1357 = vmatpush1.bf16.msra.mxu0 0
        %1358 = vmatprep.subr.bf16.mxu0 0
        %1359 = vmatpush1.bf16.msra.mxu0 0
        %1360 = vmatprep.subr.bf16.mxu0 0
        %1361 = vmatpush1.bf16.msra.mxu0 0
        %1362 = vmatprep.subr.bf16.mxu0 0
        %1363 = vmatpush1.bf16.msra.mxu0 0
        %1364 = vmatprep.subr.bf16.mxu0 0
        %1365 = vmatpush1.bf16.msra.mxu0 0
        %1366 = vmatprep.subr.bf16.mxu0 0
        %1367 = vmatpush1.bf16.msra.mxu0 0
        %1368 = vmatprep.subr.bf16.mxu0 0
        %1369 = vmatpush1.bf16.msra.mxu0 0
        %1370 = vmatprep.subr.bf16.mxu0 0
        %1371 = vmatpush1.bf16.msra.mxu0 0
        %1372 = vmatprep.subr.bf16.mxu0 0
        %1373 = vmatpush1.bf16.msra.mxu0 0
        %1374 = vmatprep.subr.bf16.mxu0 0
        %1375 = vmatpush1.bf16.msra.mxu0 0
        %1376 = vmatprep.subr.bf16.mxu0 0
        %1377 = vmatpush1.bf16.msra.mxu0 0
        %1378 = vmatprep.subr.bf16.mxu0 0
        %1379 = vmatpush1.bf16.msra.mxu0 0
        %1380 = vmatprep.subr.bf16.mxu0 0
        %1381 = vmatpush1.bf16.msra.mxu0 0
        %1382 = vmatprep.subr.bf16.mxu0 0
        %1383 = vmatpush1.bf16.msra.mxu0 0
        %1384 = vmatprep.subr.bf16.mxu0 0
        %1385 = vmatpush1.bf16.msra.mxu0 0
        %1386 = vmatprep.mubr.bf16.mxu0 0
        %1387 = vmatmul.mubr.bf16.gmra.mrb[0].mxu0 %v1352
        %v1388 = vpop.f32.mrb[0].mxu0
        %v1389 = vadd.f32 0.0, %v1388
        %v1390 = vpop.f32.mrb[0].mxu0
        %v1391 = vpop.f32.mrb[0].mxu0
        %v1392 = vpop.f32.mrb[0].mxu0
        %1393 = vdwg.mxu0
        %1394 = vmatprep.subr.bf16.mxu0 0
        %1395 = vmatpush1.bf16.msra.mxu0 1065369472
        %1396 = vmatprep.subr.bf16.mxu0 0
        %1397 = vmatpush1.bf16.msra.mxu0 0
        %1398 = vmatprep.subr.bf16.mxu0 0
        %1399 = vmatpush1.bf16.msra.mxu0 0
        %1400 = vmatprep.subr.bf16.mxu0 0
        %1401 = vmatpush1.bf16.msra.mxu0 0
        %1402 = vmatprep.subr.bf16.mxu0 0
        %1403 = vmatpush1.bf16.msra.mxu0 0
        %1404 = vmatprep.subr.bf16.mxu0 0
        %1405 = vmatpush1.bf16.msra.mxu0 0
        %1406 = vmatprep.subr.bf16.mxu0 0
        %1407 = vmatpush1.bf16.msra.mxu0 0
        %1408 = vmatprep.subr.bf16.mxu0 0
        %1409 = vmatpush1.bf16.msra.mxu0 0
        %1410 = vmatprep.subr.bf16.mxu0 0
        %1411 = vmatpush1.bf16.msra.mxu0 0
        %1412 = vmatprep.subr.bf16.mxu0 0
        %1413 = vmatpush1.bf16.msra.mxu0 0
        %1414 = vmatprep.subr.bf16.mxu0 0
        %1415 = vmatpush1.bf16.msra.mxu0 0
        %1416 = vmatprep.subr.bf16.mxu0 0
        %1417 = vmatpush1.bf16.msra.mxu0 0
        %1418 = vmatprep.subr.bf16.mxu0 0
        %1419 = vmatpush1.bf16.msra.mxu0 0
        %1420 = vmatprep.subr.bf16.mxu0 0
        %1421 = vmatpush1.bf16.msra.mxu0 0
        %1422 = vmatprep.subr.bf16.mxu0 0
        %1423 = vmatpush1.bf16.msra.mxu0 0
        %1424 = vmatprep.subr.bf16.mxu0 0
        %1425 = vmatpush1.bf16.msra.mxu0 0
        %1426 = vmatprep.mubr.bf16.mxu0 0
        %1427 = vmatmul.mubr.bf16.gmra.mrb[0].mxu0 %v1352
        %v1428 = vpop.f32.mrb[0].mxu0
        %v1429 = vadd.f32 0.0, %v1428
        %v1430 = vpop.f32.mrb[0].mxu0
        %v1431 = vpop.f32.mrb[0].mxu0
        %v1432 = vpop.f32.mrb[0].mxu0
        %1433 = vdwg.mxu0
        %v1434 = vld [vmem:[#allocation5] sm:$0xff]
        %v1436 = vlaneseq
        %v1437 = vshrl.u32 %v1436, 7
        %v1438 = vsub.s32 0, %v1437
        %v1439 = vrot.slane %v1198, %v1438
        %1440 = vset.pattern.permute.xlu0 1
        %1441 = vperm.xlu0 %1440, %v1439
        %v1442 = vpop.permute.xlu0 %1441
        %v1444 = vmul.f32 %v1434, %v1442
        %1446 = vrot.lane.b32.xlu0 %v1389, 16
        %v1447 = vpop.permute.xlu0 %1446
        %v1449 = vadd.f32 %v1444, %v1447
        %1450 = vst.msk [vmem:[#allocation5] sm:$0xff] %vm1329, %v1449
        %v1451 = vld [vmem:[#allocation6] sm:$0xff]
        %v1452 = vmul.f32 %v1451, %v1442
        %1454 = vset.pattern.permute.xlu0 0
        %1455 = vperm.xlu0 %1454, %v1429
        %v1456 = vpop.permute.xlu0 %1455
        %v1458 = vadd.f32 %v1452, %v1456
        %1459 = vst.msk [vmem:[#allocation6] sm:$0xff] %vm1329, %v1458
        %v1460 = vld [vmem:[#allocation4] sm:$0xff]
        %v1461 = vld [vmem:[#allocation17] sm:$0xf]
        %v1462 = vld [vmem:[#allocation17 + $0x4] sm:$0xf]
        %v1463 = vld [vmem:[#allocation17 + $0x8] sm:$0xf]
        %v1464 = vld [vmem:[#allocation17 + $0xc] sm:$0xf]
        %v1465 = vld [vmem:[%s7] sm:$0x1]
        %v1467 = vlaneseq
        %v1468 = vshrl.u32 %v1467, 7
        %v1469 = vsub.s32 0, %v1468
        %v1470 = vrot.slane %v1465, %v1469
        %v1476 = vunpack.c.l.b16 %v1461
        %v1477 = vunpack.c.l.b16 %v1462
        %v1478 = vunpack.c.l.b16 %v1463
        %v1479 = vunpack.c.l.b16 %v1464
        %v1480 = vpack.c.b16 %v1477, %v1476
        %v1481 = vpack.c.b16 %v1479, %v1478
        %v1485 = vsel %vm700, %v1460, 0
        %1487 = vmatprep.subr.bf16.mxu0 0
        %1488 = vmatpush1.bf16.msra.mxu0 %v1480
        %1489 = vmatprep.subr.bf16.mxu0 0
        %1490 = vmatpush1.bf16.msra.mxu0 %v1481
        %1491 = vmatprep.subr.bf16.mxu0 0
        %1492 = vmatpush1.bf16.msra.mxu0 0
        %1493 = vmatprep.subr.bf16.mxu0 0
        %1494 = vmatpush1.bf16.msra.mxu0 0
        %1495 = vmatprep.subr.bf16.mxu0 0
        %1496 = vmatpush1.bf16.msra.mxu0 0
        %1497 = vmatprep.subr.bf16.mxu0 0
        %1498 = vmatpush1.bf16.msra.mxu0 0
        %1499 = vmatprep.subr.bf16.mxu0 0
        %1500 = vmatpush1.bf16.msra.mxu0 0
        %1501 = vmatprep.subr.bf16.mxu0 0
        %1502 = vmatpush1.bf16.msra.mxu0 0
        %1503 = vmatprep.subr.bf16.mxu0 0
        %1504 = vmatpush1.bf16.msra.mxu0 0
        %1505 = vmatprep.subr.bf16.mxu0 0
        %1506 = vmatpush1.bf16.msra.mxu0 0
        %1507 = vmatprep.subr.bf16.mxu0 0
        %1508 = vmatpush1.bf16.msra.mxu0 0
        %1509 = vmatprep.subr.bf16.mxu0 0
        %1510 = vmatpush1.bf16.msra.mxu0 0
        %1511 = vmatprep.subr.bf16.mxu0 0
        %1512 = vmatpush1.bf16.msra.mxu0 0
        %1513 = vmatprep.subr.bf16.mxu0 0
        %1514 = vmatpush1.bf16.msra.mxu0 0
        %1515 = vmatprep.subr.bf16.mxu0 0
        %1516 = vmatpush1.bf16.msra.mxu0 0
        %1517 = vmatprep.subr.bf16.mxu0 0
        %1518 = vmatpush1.bf16.msra.mxu0 0
        %1519 = vmatprep.mubr.bf16.mxu0 0
        %1520 = vmatmul.mubr.bf16.gmra.mrb[0].mxu0 %v1485
        %v1521 = vpop.f32.mrb[0].mxu0
        %v1522 = vadd.f32 %v1470, %v1521
        %v1523 = vpop.f32.mrb[0].mxu0
        %v1524 = vpop.f32.mrb[0].mxu0
        %v1525 = vadd.f32 %v1470, %v1524
        %v1526 = vpop.f32.mrb[0].mxu0
        %1527 = vdwg.mxu0
        %1528 = vst.msk [vmem:[%s535] sm:$0xff] %vm700, %v1522
        %1529 = vst.msk [vmem:[%s535 + $0x8] sm:$0xff] %vm700, %v1525
        %p1530 = scmp.eq.s32.totalorder %s42, 1
        // Predicated region
        $region93: #{tpu_custom_call.1} parent=59 // pred_check
          %p1531 = pneg %p1530
        $region94: #{tpu_custom_call.1} parent=59 // pred_check_branch
          %1533 = sbr.rel (%p1531) target = $region96
        $region95: #{tpu_custom_call.1} parent=59 // pred_region
          %v1534 = vld [vmem:[#allocation6] sm:$0xff]
          %v1535 = vmax.f32 %v1534, 1e-30
          %v1536 = vrcp.pop %v1535
          %v1537 = vld [vmem:[#allocation5] sm:$0xff]
          %v1538 = vmul.f32 %v1537, %v1536
          %v1539 = vpack.c.bf16 %v1538, %v1538
          %v1540 = vld [vmem:[#allocation19] sm:$0xf]
          %v1541 = vld [vmem:[#allocation19 + $0x4] sm:$0xf]
          %v1542 = vld [vmem:[#allocation19 + $0x8] sm:$0xf]
          %v1543 = vld [vmem:[#allocation19 + $0xc] sm:$0xf]
          %v1544 = vld [vmem:[%s9] sm:$0x1]
          %v1546 = vlaneseq
          %v1547 = vshrl.u32 %v1546, 7
          %v1548 = vsub.s32 0, %v1547
          %v1549 = vrot.slane %v1544, %v1548
          %v1555 = vunpack.c.l.b16 %v1540
          %v1556 = vunpack.c.l.b16 %v1541
          %v1557 = vunpack.c.l.b16 %v1542
          %v1558 = vunpack.c.l.b16 %v1543
          %v1559 = vpack.c.b16 %v1556, %v1555
          %v1560 = vpack.c.b16 %v1558, %v1557
          %v1564 = vsel %vm700, %v1539, 0
          %1566 = vmatprep.subr.bf16.mxu0 0
          %1567 = vmatpush1.bf16.msra.mxu0 %v1559
          %1568 = vmatprep.subr.bf16.mxu0 0
          %1569 = vmatpush1.bf16.msra.mxu0 %v1560
          %1570 = vmatprep.subr.bf16.mxu0 0
          %1571 = vmatpush1.bf16.msra.mxu0 0
          %1572 = vmatprep.subr.bf16.mxu0 0
          %1573 = vmatpush1.bf16.msra.mxu0 0
          %1574 = vmatprep.subr.bf16.mxu0 0
          %1575 = vmatpush1.bf16.msra.mxu0 0
          %1576 = vmatprep.subr.bf16.mxu0 0
          %1577 = vmatpush1.bf16.msra.mxu0 0
          %1578 = vmatprep.subr.bf16.mxu0 0
          %1579 = vmatpush1.bf16.msra.mxu0 0
          %1580 = vmatprep.subr.bf16.mxu0 0
          %1581 = vmatpush1.bf16.msra.mxu0 0
          %1582 = vmatprep.subr.bf16.mxu0 0
          %1583 = vmatpush1.bf16.msra.mxu0 0
          %1584 = vmatprep.subr.bf16.mxu0 0
          %1585 = vmatpush1.bf16.msra.mxu0 0
          %1586 = vmatprep.subr.bf16.mxu0 0
          %1587 = vmatpush1.bf16.msra.mxu0 0
          %1588 = vmatprep.subr.bf16.mxu0 0
          %1589 = vmatpush1.bf16.msra.mxu0 0
          %1590 = vmatprep.subr.bf16.mxu0 0
          %1591 = vmatpush1.bf16.msra.mxu0 0
          %1592 = vmatprep.subr.bf16.mxu0 0
          %1593 = vmatpush1.bf16.msra.mxu0 0
          %1594 = vmatprep.subr.bf16.mxu0 0
          %1595 = vmatpush1.bf16.msra.mxu0 0
          %1596 = vmatprep.subr.bf16.mxu0 0
          %1597 = vmatpush1.bf16.msra.mxu0 0
          %1598 = vmatprep.mubr.bf16.mxu0 0
          %1599 = vmatmul.mubr.bf16.gmra.mrb[0].mxu0 %v1564
          %v1600 = vpop.f32.mrb[0].mxu0
          %v1601 = vadd.f32 %v1549, %v1600
          %v1602 = vpop.f32.mrb[0].mxu0
          %v1603 = vpop.f32.mrb[0].mxu0
          %v1604 = vpop.f32.mrb[0].mxu0
          %1605 = vdwg.mxu0
          %1606 = vst.msk [vmem:[%s542] sm:$0xff] %vm700, %v1601
        $region96: #{tpu_custom_call.1} parent=59 // pred_fallthru
          _
        %s1607 = sand.u32 %s281, 1
        %s1608 = scalar_lea.sflag [#allocation10], %s1607
        %s1609 = sand.u32 %s281, 1
        %s1610 = smul.addr %s1609, 16
        %s1611 = scalar_lea.vmem [#allocation20], %s1610
        %s1612 = sand.u32 %s307, 1
        %s1613 = scalar_lea.sflag [#allocation22], %s1612
        %s1614 = sand.u32 %s307, 1
        %s1615 = smul.addr %s1614, 8
        %s1616 = scalar_lea.vmem [#allocation21], %s1615
        // Predicated region
        $region97: #{tpu_custom_call.1} parent=59 // pred_check
          %p1617 = pneg %p291
        $region98: #{tpu_custom_call.1} parent=59 // pred_check_branch
          %1619 = sbr.rel (%p1617) target = $region100
        $region99: #{tpu_custom_call.1} parent=59 // pred_region
          %s1620 = smul.u32 2, %s42
          %s1622 = ssub.s32 256, 256
          %1623 = vsyncadd %s1608, %s1622
          %s1624 = smul.addr %s41, 4
          %s1625 = sadd.s32 %s1620, %s1624
          %s1626 = smul.addr %s1625, 128
          %s1627 = scalar_lea.hbm %s10, %s1626
          %s1628 = sshll.u32 %s1611, 4
          %s1629 = int_to_ptr.vmem [resolvable:$true] %s1628
          %1634 = dma.vmem_to_hbm [thread:$0]  %s1629, 256, %s1627, %s1608, 128, 128, 8
        $region100: #{tpu_custom_call.1} parent=59 // pred_fallthru
          _
        // Predicated region
        $region101: #{tpu_custom_call.1} parent=59 // pred_check
          %p1635 = pneg %p317
        $region102: #{tpu_custom_call.1} parent=59 // pred_check_branch
          %1637 = sbr.rel (%p1635) target = $region104
        $region103: #{tpu_custom_call.1} parent=59 // pred_region
          %s1639 = ssub.s32 128, 128
          %1640 = vsyncadd %s1613, %s1639
          %s1641 = smul.addr %s41, 128
          %s1642 = scalar_lea.hbm %s11, %s1641
          %s1644 = sshll.u32 %s1616, 4
          %s1645 = int_to_ptr.vmem [resolvable:$true] %s1644
          %1647 = dma.vmem_to_hbm [thread:$0]  %s1645, 128, %s1642, %s1613
        $region104: #{tpu_custom_call.1} parent=59 // pred_fallthru
          _
      $region60: #{tpu_custom_call.1} parent=5 // pred_fallthru
        _
      %p1648 = scmp.le.s32.totalorder 2, %s32
      // Predicated region
      $region105: #{tpu_custom_call.1} parent=5 // pred_check
        %p1649 = pneg %p1648
      $region106: #{tpu_custom_call.1} parent=5 // pred_check_branch
        %1651 = sbr.rel (%p1649) target = $region108
      $region107: #{tpu_custom_call.1} parent=5 // pred_region
        %s1652 = ssub.s32 %s32, 2
        // Predicated region
        $region109: #{tpu_custom_call.1} parent=107 // pred_check
          %p1653 = pneg %p297
        $region110: #{tpu_custom_call.1} parent=107 // pred_check_branch
          %1655 = sbr.rel (%p1653) target = $region112
        $region111: #{tpu_custom_call.1} parent=107 // pred_region
          %s1656 = sand.u32 %s282, 1
          %s1657 = scalar_lea.sflag [#allocation10], %s1656
          %s1658 = sand.u32 %s282, 1
          %s1659 = smul.addr %s1658, 16
          %s1660 = scalar_lea.vmem [#allocation20], %s1659
          %1661 = dma.done %s1657, 256
        $region112: #{tpu_custom_call.1} parent=107 // pred_fallthru
          _
        // Predicated region
        $region113: #{tpu_custom_call.1} parent=107 // pred_check
          %p1662 = pneg %p323
        $region114: #{tpu_custom_call.1} parent=107 // pred_check_branch
          %1664 = sbr.rel (%p1662) target = $region116
        $region115: #{tpu_custom_call.1} parent=107 // pred_region
          %s1665 = sand.u32 %s308, 1
          %s1666 = scalar_lea.sflag [#allocation22], %s1665
          %s1667 = sand.u32 %s308, 1
          %s1668 = smul.addr %s1667, 8
          %s1669 = scalar_lea.vmem [#allocation21], %s1668
          %1670 = dma.done %s1666, 128
        $region116: #{tpu_custom_call.1} parent=107 // pred_fallthru
          _
      $region108: #{tpu_custom_call.1} parent=5 // pred_fallthru
        _
    $region6: #{tpu_custom_call.1} parent=1 // loop_footer
      %s36 = sadd.s32 1, %s32
    $region7: #{tpu_custom_call.1} parent=1 // loop_footer_branch
      %31 = sbr.rel target = $region3
    $region8: #{tpu_custom_call.1} parent=1 // loop_exit
      _
    %1671 = vsyncpa [#allocation9], 1
    %s1672 = scalar_lea.sflag [#allocation9], 1
    %1673 = vsyncpa %s1672, 1
    %1674 = vsyncpa [#allocation12], 1
    %s1675 = scalar_lea.sflag [#allocation12], 1
    %1676 = vsyncpa %s1675, 1
    %1677 = vsyncpa [#allocation15], 1
    %1678 = vsyncpa [#allocation18], 1
    %1679 = vsyncpa [#allocation10], 1
    %s1680 = scalar_lea.sflag [#allocation10], 1
    %1681 = vsyncpa %s1680, 1
    %1682 = vsyncpa [#allocation22], 1
    %s1683 = scalar_lea.sflag [#allocation22], 1
    %1684 = vsyncpa %s1683, 1

</llo_original>
